<compile_context>
chip_gen: v6e
topology: v6e:2x2x1
jax: 0.10.0
libtpu: 0.0.40
codegen_flags: <defaults>
</compile_context>

<pallas_src>
import functools

import jax
import jax.numpy as jnp
from jax.experimental import pallas as pl
from jax.experimental.pallas import tpu as pltpu

EPS = 1e-5
LANE = 128
_HALO = 8          # sublane-aligned left halo inside the padded VMEM slab


def _round_up(a, b):
    return (a + b - 1) // b * b


def _vmem_limit_bytes():
    # Budget scoped VMEM from the real chip capacity, leaving ~20% headroom.
    try:
        cap = int(pltpu.get_tpu_info().vmem_capacity_bytes)
    except Exception:
        cap = 64 * 1024 * 1024
    return max(32 * 1024 * 1024, min(int(cap * 0.8), 100 * 1024 * 1024))


_VMEM_LIMIT = _vmem_limit_bytes()


def _cparams():
    return pltpu.CompilerParams(
        dimension_semantics=("parallel",),
        vmem_limit_bytes=_VMEM_LIMIT,
    )


def _pad_axis(a, axis, size):
    if a.shape[axis] == size:
        return a
    pads = [(0, 0)] * a.ndim
    pads[axis] = (0, size - a.shape[axis])
    return jnp.pad(a, pads)


# ----------------------------- Pallas kernels ------------------------------ #

def _fill_padded(pad_ref, val):
    """Zero the padded VMEM slab and place `val` (H, W, K) at (+1, +_HALO)."""
    H, W = val.shape[0], val.shape[1]
    pad_ref[...] = jnp.zeros_like(pad_ref)
    pad_ref[1:H + 1, _HALO:_HALO + W, :] = val.astype(pad_ref.dtype)


def _acc_conv3x3(pad_ref, w_ref, Ho, Wo):
    """9-tap 3x3/stride-1 conv from the padded slab against (9, K, Ncp) weights;
    f32 MXU accumulation."""
    Kc = pad_ref.shape[-1]
    Ncp = w_ref.shape[-1]
    acc = jnp.zeros((Ho * Wo, Ncp), jnp.float32)
    for kh in range(3):
        for kw in range(3):
            c0 = _HALO - 1 + kw
            tap = pad_ref[kh:kh + Ho, c0:c0 + Wo, :].reshape(Ho * Wo, Kc)
            acc = acc + jnp.dot(tap, w_ref[kh * 3 + kw],
                                preferred_element_type=jnp.float32)
    return acc


def _conv1_fused_kernel(H, W, x_ref, s1_ref, t1_ref, w_ref, s2_ref, t2_ref,
                        o_ref, pad_ref):
    # bn1+relu1 (f32) -> bf16 padded slab -> in-kernel im2col conv -> bn2+relu2.
    a = jnp.maximum(x_ref[0] * s1_ref[...] + t1_ref[...], 0.0)
    _fill_padded(pad_ref, a)
    acc = _acc_conv3x3(pad_ref, w_ref, H, W)            # stride 1: Ho=H, Wo=W
    out = jnp.maximum(acc * s2_ref[...] + t2_ref[...], 0.0)
    o_ref[...] = out.reshape(o_ref.shape).astype(o_ref.dtype)


def _conv2_add_kernel(Ho, Wo, h_ref, r_ref, w_ref, o_ref, pad_ref):
    # conv2 (3x3, stride 1) fused with the identity-shortcut residual add.
    _fill_padded(pad_ref, h_ref[0])
    acc = _acc_conv3x3(pad_ref, w_ref, Ho, Wo)
    acc = acc + r_ref[0].astype(jnp.float32).reshape(Ho * Wo, r_ref.shape[-1])
    o_ref[...] = acc.reshape(o_ref.shape).astype(o_ref.dtype)


def _conv2_shortcut_kernel(Ho, Wo, h_ref, sc_ref, s_ref, t_ref, w_ref, wsc_ref,
                           o_ref, pad_ref):
    # conv2 fused with the 1x1 shortcut conv; the shortcut operand is activated
    # in-kernel as relu(x*s + t)  (s=1, t=0 when it is already post-bn1-relu1).
    _fill_padded(pad_ref, h_ref[0])
    acc = _acc_conv3x3(pad_ref, w_ref, Ho, Wo)
    sc = jnp.maximum(sc_ref[0].astype(jnp.float32) * s_ref[...] + t_ref[...],
                     0.0)
    sc = sc.astype(wsc_ref.dtype).reshape(Ho * Wo, sc_ref.shape[-1])
    acc = acc + jnp.dot(sc, wsc_ref[...], preferred_element_type=jnp.float32)
    o_ref[...] = acc.reshape(o_ref.shape).astype(o_ref.dtype)


def _bn_relu_kernel(x_ref, s_ref, t_ref, o_ref):
    o_ref[...] = jnp.maximum(x_ref[...] * s_ref[...] + t_ref[...],
                             0.0).astype(o_ref.dtype)


def _conv1_matmul_kernel(p_ref, w_ref, s_ref, t_ref, o_ref):
    acc = jnp.dot(p_ref[...], w_ref[...], preferred_element_type=jnp.float32)
    o_ref[...] = jnp.maximum(acc * s_ref[...] + t_ref[...],
                             0.0).astype(o_ref.dtype)


# ------------------------------ call wrappers ------------------------------ #

def _conv1_fused(x, s1, t1, w_taps, s2_row, t2_row):
    N, H, W, Cin_p = x.shape
    Ncp = w_taps.shape[-1]
    kern = functools.partial(_conv1_fused_kernel, H, W)
    return pl.pallas_call(
        kern,
        grid=(N,),
        in_specs=[
            pl.BlockSpec((1, H, W, Cin_p), lambda n: (n, 0, 0, 0)),
            pl.BlockSpec((1, 1, Cin_p), lambda n: (0, 0, 0)),
            pl.BlockSpec((1, 1, Cin_p), lambda n: (0, 0, 0)),
            pl.BlockSpec((9, Cin_p, Ncp), lambda n: (0, 0, 0)),
            pl.BlockSpec((1, Ncp), lambda n: (0, 0)),
            pl.BlockSpec((1, Ncp), lambda n: (0, 0)),
        ],
        out_specs=pl.BlockSpec((1, H, W, Ncp), lambda n: (n, 0, 0, 0)),
        out_shape=jax.ShapeDtypeStruct((N, H, W, Ncp), jnp.bfloat16),
        scratch_shapes=[pltpu.VMEM((H + 2, W + 2 * _HALO, Cin_p),
                                   jnp.bfloat16)],
        compiler_params=_cparams(),
    )(x, s1, t1, w_taps, s2_row, t2_row)


def _conv2_add(h, r, w_taps):
    N, Ho, Wo, Ncp = h.shape
    kern = functools.partial(_conv2_add_kernel, Ho, Wo)
    return pl.pallas_call(
        kern,
        grid=(N,),
        in_specs=[
            pl.BlockSpec((1, Ho, Wo, Ncp), lambda n: (n, 0, 0, 0)),
            pl.BlockSpec((1, Ho, Wo, Ncp), lambda n: (n, 0, 0, 0)),
            pl.BlockSpec((9, Ncp, Ncp), lambda n: (0, 0, 0)),
        ],
        out_specs=pl.BlockSpec((1, Ho, Wo, Ncp), lambda n: (n, 0, 0, 0)),
        out_shape=jax.ShapeDtypeStruct((N, Ho, Wo, Ncp), jnp.bfloat16),
        scratch_shapes=[pltpu.VMEM((Ho + 2, Wo + 2 * _HALO, Ncp),
                                   jnp.bfloat16)],
        compiler_params=_cparams(),
    )(h, r, w_taps)


def _conv2_shortcut(h, sc, sc_s, sc_t, w_taps, wsc):
    N, Ho, Wo, Ncp = h.shape
    Csc = sc.shape[-1]
    kern = functools.partial(_conv2_shortcut_kernel, Ho, Wo)
    return pl.pallas_call(
        kern,
        grid=(N,),
        in_specs=[
            pl.BlockSpec((1, Ho, Wo, Ncp), lambda n: (n, 0, 0, 0)),
            pl.BlockSpec((1, Ho, Wo, Csc), lambda n: (n, 0, 0, 0)),
            pl.BlockSpec((1, 1, Csc), lambda n: (0, 0, 0)),
            pl.BlockSpec((1, 1, Csc), lambda n: (0, 0, 0)),
            pl.BlockSpec((9, Ncp, Ncp), lambda n: (0, 0, 0)),
            pl.BlockSpec((Csc, Ncp), lambda n: (0, 0)),
        ],
        out_specs=pl.BlockSpec((1, Ho, Wo, Ncp), lambda n: (n, 0, 0, 0)),
        out_shape=jax.ShapeDtypeStruct((N, Ho, Wo, Ncp), jnp.bfloat16),
        scratch_shapes=[pltpu.VMEM((Ho + 2, Wo + 2 * _HALO, Ncp),
                                   jnp.bfloat16)],
        compiler_params=_cparams(),
    )(h, sc, sc_s, sc_t, w_taps, wsc)


def bn_relu(x4d, scale, shift):
    """relu(x*scale + shift) on NHWC -> bf16 NHWC (stride>1 fallback only)."""
    N, H, W, C = x4d.shape
    rows, cols = N * H, W * C
    x2 = x4d.reshape(rows, cols)
    s_row = jnp.tile(scale, W).reshape(1, cols).astype(jnp.float32)
    t_row = jnp.tile(shift, W).reshape(1, cols).astype(jnp.float32)
    rows_p = _round_up(rows, 8)
    tr = min(512, rows_p)
    rows_p = _round_up(rows_p, tr)
    if rows_p != rows:
        x2 = jnp.pad(x2, ((0, rows_p - rows), (0, 0)))
    out = pl.pallas_call(
        _bn_relu_kernel,
        grid=(rows_p // tr,),
        in_specs=[pl.BlockSpec((tr, cols), lambda i: (i, 0)),
                  pl.BlockSpec((1, cols), lambda i: (0, 0)),
                  pl.BlockSpec((1, cols), lambda i: (0, 0))],
        out_specs=pl.BlockSpec((tr, cols), lambda i: (i, 0)),
        out_shape=jax.ShapeDtypeStruct((rows_p, cols), jnp.bfloat16),
        compiler_params=_cparams(),
    )(x2, s_row, t_row)
    return out[:rows].reshape(N, H, W, C)


def _conv1_strided_matmul(p1, w1m, s2_row, t2_row):
    """Row-tiled (512) matmul with fused bn2+relu epilogue (stride>1 conv1)."""
    M, K1 = p1.shape
    Ncp = w1m.shape[-1]
    tm = min(512, _round_up(M, 8))
    Mp = _round_up(M, tm)
    if Mp != M:
        p1 = jnp.pad(p1, ((0, Mp - M), (0, 0)))
    out = pl.pallas_call(
        _conv1_matmul_kernel,
        grid=(Mp // tm,),
        in_specs=[pl.BlockSpec((tm, K1), lambda i: (i, 0)),
                  pl.BlockSpec((K1, Ncp), lambda i: (0, 0)),
                  pl.BlockSpec((1, Ncp), lambda i: (0, 0)),
                  pl.BlockSpec((1, Ncp), lambda i: (0, 0))],
        out_specs=pl.BlockSpec((tm, Ncp), lambda i: (i, 0)),
        out_shape=jax.ShapeDtypeStruct((Mp, Ncp), jnp.bfloat16),
        compiler_params=_cparams(),
    )(p1, w1m, s2_row, t2_row)
    return out[:M]


# ------------------------------- glue (JAX) -------------------------------- #

def _im2col3x3(x_nhwc, stride):
    """3x3 patches (padding=1) -> (N*Ho*Wo, 9*C); stride>1 fallback only."""
    N, H, W, C = x_nhwc.shape
    xp = jnp.pad(x_nhwc, ((0, 0), (1, 1), (1, 1), (0, 0)))
    Ho = (H + 2 - 3) // stride + 1
    Wo = (W + 2 - 3) // stride + 1
    cols = []
    for kh in range(3):
        for kw in range(3):
            cols.append(xp[:, kh:kh + (Ho - 1) * stride + 1:stride,
                            kw:kw + (Wo - 1) * stride + 1:stride, :])
    return jnp.concatenate(cols, axis=-1).reshape(N * Ho * Wo, 9 * C)


def _fold_bn(gamma, beta, mean, var):
    scale = gamma / jnp.sqrt(var + EPS)
    return scale, beta - mean * scale


def prepare_block_params(p, stride, equal_in_out):
    """Fold BN and pre-layout / pad / cast all weights once (cache across
    forward calls so the per-step path carries no weight re-packing)."""
    Cout, Cin = p["w1"].shape[0], p["w1"].shape[1]
    Ncp = _round_up(Cout, LANE)        # lane-dense matmul N dim
    Cin_p = _round_up(Cin, 16)         # bf16 sublane packing on the K dim
    s1, t1 = _fold_bn(p["g1"], p["b1"], p["m1"], p["v1"])
    s2, t2 = _fold_bn(p["g2"], p["b2"], p["m2"], p["v2"])
    w1 = jnp.transpose(p["w1"], (2, 3, 1, 0)).reshape(9, Cin, Cout)
    w2 = jnp.transpose(p["w2"], (2, 3, 1, 0)).reshape(9, Cout, Cout)
    prep = {
        "s1": s1.astype(jnp.float32),
        "t1": t1.astype(jnp.float32),
        "s2": s2.astype(jnp.float32),
        "t2": t2.astype(jnp.float32),
        "s1_3d": _pad_axis(s1, 0, Cin_p).reshape(1, 1, Cin_p).astype(jnp.float32),
        "t1_3d": _pad_axis(t1, 0, Cin_p).reshape(1, 1, Cin_p).astype(jnp.float32),
        "s2_row": _pad_axis(s2, 0, Ncp).reshape(1, Ncp).astype(jnp.float32),
        "t2_row": _pad_axis(t2, 0, Ncp).reshape(1, Ncp).astype(jnp.float32),
        "w1_taps": _pad_axis(_pad_axis(w1, 1, Cin_p), 2, Ncp).astype(jnp.bfloat16),
        "w2_taps": _pad_axis(_pad_axis(w2, 1, Ncp), 2, Ncp).astype(jnp.bfloat16),
    }
    if stride != 1:
        K1 = _round_up(9 * Cin, 16)
        prep["w1_mat"] = _pad_axis(_pad_axis(w1.reshape(9 * Cin, Cout), 0, K1),
                                   1, Ncp).astype(jnp.bfloat16)
    if not equal_in_out:
        wsc = p["wsc"].reshape(Cout, Cin).T
        prep["wsc"] = _pad_axis(_pad_axis(wsc, 0, Cin_p), 1,
                                Ncp).astype(jnp.bfloat16)
        prep["ones_sc"] = jnp.ones((1, 1, Cin_p), jnp.float32)
        prep["zeros_sc"] = jnp.zeros((1, 1, Cin_p), jnp.float32)
    return prep


@functools.partial(jax.jit, static_argnums=(2, 3))
def basic_block_forward(x_nchw, prep, stride, equal_in_out):
    """Pallas implementation of BasicBlock.forward (inference BN, droprate=0)."""
    if equal_in_out and stride != 1:
        raise ValueError("equal_in_out requires stride == 1 (identity add).")
    # TODO(synk): keep the whole network NHWC to avoid this layout round trip.
    x = jnp.transpose(x_nchw, (0, 2, 3, 1)).astype(jnp.float32)      # NHWC
    N, H, W, Cin = x.shape
    Cout = prep["s2"].shape[0]
    Ncp = prep["w1_taps"].shape[-1]
    Cin_p = prep["s1_3d"].shape[-1]
    Ho = (H + 2 - 3) // stride + 1
    Wo = (W + 2 - 3) // stride + 1

    if stride == 1:
        # conv1 fully fused: bn1+relu1 -> in-kernel 3x3 im2col -> bn2+relu2.
        x_p = _pad_axis(x, 3, Cin_p)
        h = _conv1_fused(x_p, prep["s1_3d"], prep["t1_3d"], prep["w1_taps"],
                         prep["s2_row"], prep["t2_row"])     # (N,H,W,Ncp) bf16
        sc_in, sc_s, sc_t = x_p, prep["s1_3d"], prep["t1_3d"]
    else:
        # TODO(synk): in-kernel im2col for the strided conv1; this rare path
        #             (first block of a WRN group) uses a bn_relu pass + XLA
        #             im2col + fused matmul instead.
        xa = bn_relu(x, prep["s1"], prep["t1"])              # (N,H,W,Cin) bf16
        p1 = _pad_axis(_im2col3x3(xa, stride), 1, prep["w1_mat"].shape[0])
        h = _conv1_strided_matmul(p1, prep["w1_mat"], prep["s2_row"],
                                  prep["t2_row"]).reshape(N, Ho, Wo, Ncp)
        sc_in = _pad_axis(xa[:, ::stride, ::stride, :], 3, Cin_p)
        sc_s, sc_t = prep["ones_sc"], prep["zeros_sc"]

    # droprate == 0.0 (module default) -> dropout is the identity.
    if equal_in_out:
        r = _pad_axis(x.astype(jnp.bfloat16), 3, Ncp)        # bf16 residual
        out = _conv2_add(h, r, prep["w2_taps"])
    else:
        out = _conv2_shortcut(h, sc_in, sc_s, sc_t, prep["w2_taps"],
                              prep["wsc"])
    out = out[..., :Cout]
    return jnp.transpose(out, (0, 3, 1, 2)).astype(jnp.float32)      # NCHW f32


# --------------------------- reference (pure JAX) --------------------------- #

def reference_forward(x, p, stride, equal_in_out):
    def bn(z, g, b, m, v):
        sc = (g / jnp.sqrt(v + EPS))[None, :, None, None]
        return (z - m[None, :, None, None]) * sc + b[None, :, None, None]

    def conv(z, w, s, pad):
        return jax.lax.conv_general_dilated(
            z, w, (s, s), [(pad, pad), (pad, pad)],
            dimension_numbers=("NCHW", "OIHW", "NCHW"),
            precision=jax.lax.Precision.HIGHEST)

    if not equal_in_out:
        x = jax.nn.relu(bn(x, p["g1"], p["b1"], p["m1"], p["v1"]))
        out = x
    else:
        out = jax.nn.relu(bn(x, p["g1"], p["b1"], p["m1"], p["v1"]))
    out = jax.nn.relu(bn(conv(out, p["w1"], stride, 1),
                         p["g2"], p["b2"], p["m2"], p["v2"]))
    out = conv(out, p["w2"], 1, 1)
    short = x if equal_in_out else conv(x, p["wsc"], stride, 0)
    return short + out


# ---------------------------------- main ----------------------------------- #

def make_params(key, cin, cout, equal_in_out):
    ks = jax.random.split(key, 16)
    p = {
        "g1": 1.0 + 0.1 * jax.random.normal(ks[0], (cin,), jnp.float32),
        "b1": 0.1 * jax.random.normal(ks[1], (cin,), jnp.float32),
        "m1": 0.1 * jax.random.normal(ks[2], (cin,), jnp.float32),
        "v1": jax.random.uniform(ks[3], (cin,), jnp.float32, 0.5, 1.5),
        "g2": 1.0 + 0.1 * jax.random.normal(ks[4], (cout,), jnp.float32),
        "b2": 0.1 * jax.random.normal(ks[5], (cout,), jnp.float32),
        "m2": 0.1 * jax.random.normal(ks[6], (cout,), jnp.float32),
        "v2": jax.random.uniform(ks[7], (cout,), jnp.float32, 0.5, 1.5),
        "w1": 0.1 * jax.random.normal(ks[8], (cout, cin, 3, 3), jnp.float32),
        "w2": 0.1 * jax.random.normal(ks[9], (cout, cout, 3, 3), jnp.float32),
    }
    if not equal_in_out:
        p["wsc"] = 0.1 * jax.random.normal(ks[10], (cout, cin, 1, 1), jnp.float32)
    return p


if __name__ == "__main__":
    key = jax.random.PRNGKey(0)
    kx, kp1, kp2 = jax.random.split(key, 3)

    # bf16 MXU operands / bf16 residual & output stores -> loosened tolerance.
    RTOL, ATOL = 3e-2, 5e-2

    # Case 1: in_planes != out_planes, stride 2 (fused 1x1-conv shortcut).
    N, Cin, Cout, H, W, stride = 2, 8, 16, 16, 16, 2
    x = jax.random.normal(kx, (N, Cin, H, W), jnp.float32)
    params = make_params(kp1, Cin, Cout, equal_in_out=False)
    prep = prepare_block_params(params, stride, False)
    y = jax.block_until_ready(basic_block_forward(x, prep, stride, False))
    y_ref = reference_forward(x, params, stride, False)
    assert y.shape == (N, Cout, H // stride, W // stride)
    assert jnp.allclose(y, y_ref, rtol=RTOL, atol=ATOL), "case1 mismatch"

    # Case 2: in_planes == out_planes, stride 1 (fused identity shortcut).
    params_eq = make_params(kp2, Cin, Cin, equal_in_out=True)
    prep_eq = prepare_block_params(params_eq, 1, True)
    y2 = jax.block_until_ready(basic_block_forward(x, prep_eq, 1, True))
    y2_ref = reference_forward(x, params_eq, 1, True)
    assert y2.shape == (N, Cin, H, W)
    assert jnp.allclose(y2, y2_ref, rtol=RTOL, atol=ATOL), "case2 mismatch"

    print("KERNEL_OK")
</pallas_src>

<mosaic_0001>
module attributes {stable_mosaic.version = 11 : i64} {
  func.func @_bn_relu_kernel(%arg0: i32, %arg1: memref<32x128xf32, #tpu.memory_space<vmem>>, %arg2: memref<1x128xf32, #tpu.memory_space<vmem>>, %arg3: memref<1x128xf32, #tpu.memory_space<vmem>>, %arg4: memref<32x128xbf16, #tpu.memory_space<vmem>>) attributes {dimension_semantics = [#tpu.dimension_semantics<parallel>], iteration_bounds = array<i64: 1>, scalar_prefetch = 0 : i64, scratch_operands = 0 : i64, tpu.core_type = #tpu.core_type<tc>, window_params = [{transform_indices = @transform_0, window_bounds = array<i64: 32, 128>}, {pipeline_mode = #tpu.pipeline_mode<synchronous>, transform_indices = @transform_1, window_bounds = array<i64: 1, 128>}, {pipeline_mode = #tpu.pipeline_mode<synchronous>, transform_indices = @transform_2, window_bounds = array<i64: 1, 128>}, {transform_indices = @transform_3, window_bounds = array<i64: 32, 128>}]} {
    %c0 = arith.constant 0 : index
    %c0_0 = arith.constant 0 : index
    %0 = vector.load %arg1[%c0, %c0_0] : memref<32x128xf32, #tpu.memory_space<vmem>>, vector<32x128xf32>
    %c0_1 = arith.constant 0 : index
    %c0_2 = arith.constant 0 : index
    %1 = vector.load %arg2[%c0_1, %c0_2] : memref<1x128xf32, #tpu.memory_space<vmem>>, vector<1x128xf32>
    %2 = vector.broadcast %1 : vector<1x128xf32> to vector<32x128xf32>
    %3 = arith.mulf %0, %2 : vector<32x128xf32>
    %c0_3 = arith.constant 0 : index
    %c0_4 = arith.constant 0 : index
    %4 = vector.load %arg3[%c0_3, %c0_4] : memref<1x128xf32, #tpu.memory_space<vmem>>, vector<1x128xf32>
    %5 = vector.broadcast %4 : vector<1x128xf32> to vector<32x128xf32>
    %6 = arith.addf %3, %5 : vector<32x128xf32>
    %cst = arith.constant 0.000000e+00 : f32
    %7 = vector.broadcast %cst : f32 to vector<32x128xf32>
    %8 = arith.maximumf %6, %7 : vector<32x128xf32>
    %9 = arith.truncf %8 : vector<32x128xf32> to vector<32x128xbf16>
    %c0_5 = arith.constant 0 : index
    %c0_6 = arith.constant 0 : index
    %10 = vector.load %arg4[%c0_5, %c0_6] : memref<32x128xbf16, #tpu.memory_space<vmem>>, vector<32x128xbf16>
    tpu.vector_store %arg4[%c0_5, %c0_6], %9 {strides = array<i32>} : memref<32x128xbf16, #tpu.memory_space<vmem>>, vector<32x128xbf16>,
    return
  }
  func.func @transform_0(%arg0: i32) -> (i32, i32) {
    %c0_i32 = arith.constant 0 : i32
    %c0_i32_0 = arith.constant 0 : i32
    return %arg0, %c0_i32 : i32, i32
  }
  func.func @transform_1(%arg0: i32) -> (i32, i32) {
    %c0_i32 = arith.constant 0 : i32
    %c0_i32_0 = arith.constant 0 : i32
    %c0_i32_1 = arith.constant 0 : i32
    return %c0_i32, %c0_i32_0 : i32, i32
  }
  func.func @transform_2(%arg0: i32) -> (i32, i32) {
    %c0_i32 = arith.constant 0 : i32
    %c0_i32_0 = arith.constant 0 : i32
    %c0_i32_1 = arith.constant 0 : i32
    return %c0_i32, %c0_i32_0 : i32, i32
  }
  func.func @transform_3(%arg0: i32) -> (i32, i32) {
    %c0_i32 = arith.constant 0 : i32
    %c0_i32_0 = arith.constant 0 : i32
    return %arg0, %c0_i32 : i32, i32
  }
}

module attributes {stable_mosaic.version = 11 : i64} {
  func.func @_conv2_shortcut_kernel(%arg0: i32, %arg1: memref<1x8x8x128xbf16, #tpu.memory_space<vmem>>, %arg2: memref<1x8x8x16xbf16, #tpu.memory_space<vmem>>, %arg3: memref<1x1x16xf32, #tpu.memory_space<vmem>>, %arg4: memref<1x1x16xf32, #tpu.memory_space<vmem>>, %arg5: memref<9x128x128xbf16, #tpu.memory_space<vmem>>, %arg6: memref<16x128xbf16, #tpu.memory_space<vmem>>, %arg7: memref<1x8x8x128xbf16, #tpu.memory_space<vmem>>, %arg8: memref<10x24x128xbf16, #tpu.memory_space<vmem>>) attributes {dimension_semantics = [#tpu.dimension_semantics<parallel>], iteration_bounds = array<i64: 2>, scalar_prefetch = 0 : i64, scratch_operands = 1 : i64, tpu.core_type = #tpu.core_type<tc>, window_params = [{transform_indices = @transform_0, window_bounds = array<i64: 1, 8, 8, 128>}, {transform_indices = @transform_1, window_bounds = array<i64: 1, 8, 8, 16>}, {pipeline_mode = #tpu.pipeline_mode<synchronous>, transform_indices = @transform_2, window_bounds = array<i64: 1, 1, 16>}, {pipeline_mode = #tpu.pipeline_mode<synchronous>, transform_indices = @transform_3, window_bounds = array<i64: 1, 1, 16>}, {pipeline_mode = #tpu.pipeline_mode<synchronous>, transform_indices = @transform_4, window_bounds = array<i64: 9, 128, 128>}, {pipeline_mode = #tpu.pipeline_mode<synchronous>, transform_indices = @transform_5, window_bounds = array<i64: 16, 128>}, {transform_indices = @transform_6, window_bounds = array<i64: 1, 8, 8, 128>}]} {
    %c0 = arith.constant 0 : index
    %c0_0 = arith.constant 0 : index
    %c0_1 = arith.constant 0 : index
    %c0_2 = arith.constant 0 : index
    %0 = vector.load %arg1[%c0, %c0_0, %c0_1, %c0_2] : memref<1x8x8x128xbf16, #tpu.memory_space<vmem>>, vector<1x8x8x128xbf16>
    %1 = vector.shape_cast %0 : vector<1x8x8x128xbf16> to vector<8x8x128xbf16>
    %cst = arith.constant 0.000000e+00 : bf16
    %2 = vector.broadcast %cst : bf16 to vector<10x24x128xbf16>
    %c0_3 = arith.constant 0 : index
    %c0_4 = arith.constant 0 : index
    %c0_5 = arith.constant 0 : index
    %3 = vector.load %arg8[%c0_3, %c0_4, %c0_5] : memref<10x24x128xbf16, #tpu.memory_space<vmem>>, vector<10x24x128xbf16>
    tpu.vector_store %arg8[%c0_3, %c0_4, %c0_5], %2 {strides = array<i32>} : memref<10x24x128xbf16, #tpu.memory_space<vmem>>, vector<10x24x128xbf16>,
    %c1 = arith.constant 1 : index
    %c8 = arith.constant 8 : index
    %c0_6 = arith.constant 0 : index
    %4 = vector.load %arg8[%c1, %c8, %c0_6] : memref<10x24x128xbf16, #tpu.memory_space<vmem>>, vector<8x8x128xbf16>
    tpu.vector_store %arg8[%c1, %c8, %c0_6], %1 {strides = array<i32>} : memref<10x24x128xbf16, #tpu.memory_space<vmem>>, vector<8x8x128xbf16>,
    %cst_7 = arith.constant 0.000000e+00 : f32
    %5 = vector.broadcast %cst_7 : f32 to vector<64x128xf32>
    %c0_8 = arith.constant 0 : index
    %c7 = arith.constant 7 : index
    %c0_9 = arith.constant 0 : index
    %6 = vector.load %arg8[%c0_8, %c7, %c0_9] : memref<10x24x128xbf16, #tpu.memory_space<vmem>>, vector<8x8x128xbf16>
    %7 = vector.shape_cast %6 : vector<8x8x128xbf16> to vector<64x128xbf16>
    %c0_10 = arith.constant 0 : index
    %c0_11 = arith.constant 0 : index
    %c0_12 = arith.constant 0 : index
    %8 = vector.load %arg5[%c0_10, %c0_11, %c0_12] : memref<9x128x128xbf16, #tpu.memory_space<vmem>>, vector<1x128x128xbf16>
    %9 = vector.shape_cast %8 : vector<1x128x128xbf16> to vector<128x128xbf16>
    %cst_13 = arith.constant dense<0.000000e+00> : vector<64x128xf32>
    %10 = tpu.matmul %7, %9, %cst_13 {dimension_numbers = #tpu.dot_dimension_numbers<[1], [0], [0], [1], [0, 0, 1, 1], [], []>} : vector<64x128xbf16>, vector<128x128xbf16>, vector<64x128xf32> -> vector<64x128xf32>
    %11 = arith.addf %5, %10 : vector<64x128xf32>
    %c0_14 = arith.constant 0 : index
    %c8_15 = arith.constant 8 : index
    %c0_16 = arith.constant 0 : index
    %12 = vector.load %arg8[%c0_14, %c8_15, %c0_16] : memref<10x24x128xbf16, #tpu.memory_space<vmem>>, vector<8x8x128xbf16>
    %13 = vector.shape_cast %12 : vector<8x8x128xbf16> to vector<64x128xbf16>
    %c1_17 = arith.constant 1 : index
    %c0_18 = arith.constant 0 : index
    %c0_19 = arith.constant 0 : index
    %14 = vector.load %arg5[%c1_17, %c0_18, %c0_19] : memref<9x128x128xbf16, #tpu.memory_space<vmem>>, vector<1x128x128xbf16>
    %15 = vector.shape_cast %14 : vector<1x128x128xbf16> to vector<128x128xbf16>
    %cst_20 = arith.constant dense<0.000000e+00> : vector<64x128xf32>
    %16 = tpu.matmul %13, %15, %cst_20 {dimension_numbers = #tpu.dot_dimension_numbers<[1], [0], [0], [1], [0, 0, 1, 1], [], []>} : vector<64x128xbf16>, vector<128x128xbf16>, vector<64x128xf32> -> vector<64x128xf32>
    %17 = arith.addf %11, %16 : vector<64x128xf32>
    %c0_21 = arith.constant 0 : index
    %c9 = arith.constant 9 : index
    %c0_22 = arith.constant 0 : index
    %18 = vector.load %arg8[%c0_21, %c9, %c0_22] : memref<10x24x128xbf16, #tpu.memory_space<vmem>>, vector<8x8x128xbf16>
    %19 = vector.shape_cast %18 : vector<8x8x128xbf16> to vector<64x128xbf16>
    %c2 = arith.constant 2 : index
    %c0_23 = arith.constant 0 : index
    %c0_24 = arith.constant 0 : index
    %20 = vector.load %arg5[%c2, %c0_23, %c0_24] : memref<9x128x128xbf16, #tpu.memory_space<vmem>>, vector<1x128x128xbf16>
    %21 = vector.shape_cast %20 : vector<1x128x128xbf16> to vector<128x128xbf16>
    %cst_25 = arith.constant dense<0.000000e+00> : vector<64x128xf32>
    %22 = tpu.matmul %19, %21, %cst_25 {dimension_numbers = #tpu.dot_dimension_numbers<[1], [0], [0], [1], [0, 0, 1, 1], [], []>} : vector<64x128xbf16>, vector<128x128xbf16>, vector<64x128xf32> -> vector<64x128xf32>
    %23 = arith.addf %17, %22 : vector<64x128xf32>
    %c1_26 = arith.constant 1 : index
    %c7_27 = arith.constant 7 : index
    %c0_28 = arith.constant 0 : index
    %24 = vector.load %arg8[%c1_26, %c7_27, %c0_28] : memref<10x24x128xbf16, #tpu.memory_space<vmem>>, vector<8x8x128xbf16>
    %25 = vector.shape_cast %24 : vector<8x8x128xbf16> to vector<64x128xbf16>
    %c3 = arith.constant 3 : index
    %c0_29 = arith.constant 0 : index
    %c0_30 = arith.constant 0 : index
    %26 = vector.load %arg5[%c3, %c0_29, %c0_30] : memref<9x128x128xbf16, #tpu.memory_space<vmem>>, vector<1x128x128xbf16>
    %27 = vector.shape_cast %26 : vector<1x128x128xbf16> to vector<128x128xbf16>
    %cst_31 = arith.constant dense<0.000000e+00> : vector<64x128xf32>
    %28 = tpu.matmul %25, %27, %cst_31 {dimension_numbers = #tpu.dot_dimension_numbers<[1], [0], [0], [1], [0, 0, 1, 1], [], []>} : vector<64x128xbf16>, vector<128x128xbf16>, vector<64x128xf32> -> vector<64x128xf32>
    %29 = arith.addf %23, %28 : vector<64x128xf32>
    %c1_32 = arith.constant 1 : index
    %c8_33 = arith.constant 8 : index
    %c0_34 = arith.constant 0 : index
    %30 = vector.load %arg8[%c1_32, %c8_33, %c0_34] : memref<10x24x128xbf16, #tpu.memory_space<vmem>>, vector<8x8x128xbf16>
    %31 = vector.shape_cast %30 : vector<8x8x128xbf16> to vector<64x128xbf16>
    %c4 = arith.constant 4 : index
    %c0_35 = arith.constant 0 : index
    %c0_36 = arith.constant 0 : index
    %32 = vector.load %arg5[%c4, %c0_35, %c0_36] : memref<9x128x128xbf16, #tpu.memory_space<vmem>>, vector<1x128x128xbf16>
    %33 = vector.shape_cast %32 : vector<1x128x128xbf16> to vector<128x128xbf16>
    %cst_37 = arith.constant dense<0.000000e+00> : vector<64x128xf32>
    %34 = tpu.matmul %31, %33, %cst_37 {dimension_numbers = #tpu.dot_dimension_numbers<[1], [0], [0], [1], [0, 0, 1, 1], [], []>} : vector<64x128xbf16>, vector<128x128xbf16>, vector<64x128xf32> -> vector<64x128xf32>
    %35 = arith.addf %29, %34 : vector<64x128xf32>
    %c1_38 = arith.constant 1 : index
    %c9_39 = arith.constant 9 : index
    %c0_40 = arith.constant 0 : index
    %36 = vector.load %arg8[%c1_38, %c9_39, %c0_40] : memref<10x24x128xbf16, #tpu.memory_space<vmem>>, vector<8x8x128xbf16>
    %37 = vector.shape_cast %36 : vector<8x8x128xbf16> to vector<64x128xbf16>
    %c5 = arith.constant 5 : index
    %c0_41 = arith.constant 0 : index
    %c0_42 = arith.constant 0 : index
    %38 = vector.load %arg5[%c5, %c0_41, %c0_42] : memref<9x128x128xbf16, #tpu.memory_space<vmem>>, vector<1x128x128xbf16>
    %39 = vector.shape_cast %38 : vector<1x128x128xbf16> to vector<128x128xbf16>
    %cst_43 = arith.constant dense<0.000000e+00> : vector<64x128xf32>
    %40 = tpu.matmul %37, %39, %cst_43 {dimension_numbers = #tpu.dot_dimension_numbers<[1], [0], [0], [1], [0, 0, 1, 1], [], []>} : vector<64x128xbf16>, vector<128x128xbf16>, vector<64x128xf32> -> vector<64x128xf32>
    %41 = arith.addf %35, %40 : vector<64x128xf32>
    %c2_44 = arith.constant 2 : index
    %c7_45 = arith.constant 7 : index
    %c0_46 = arith.constant 0 : index
    %42 = vector.load %arg8[%c2_44, %c7_45, %c0_46] : memref<10x24x128xbf16, #tpu.memory_space<vmem>>, vector<8x8x128xbf16>
    %43 = vector.shape_cast %42 : vector<8x8x128xbf16> to vector<64x128xbf16>
    %c6 = arith.constant 6 : index
    %c0_47 = arith.constant 0 : index
    %c0_48 = arith.constant 0 : index
    %44 = vector.load %arg5[%c6, %c0_47, %c0_48] : memref<9x128x128xbf16, #tpu.memory_space<vmem>>, vector<1x128x128xbf16>
    %45 = vector.shape_cast %44 : vector<1x128x128xbf16> to vector<128x128xbf16>
    %cst_49 = arith.constant dense<0.000000e+00> : vector<64x128xf32>
    %46 = tpu.matmul %43, %45, %cst_49 {dimension_numbers = #tpu.dot_dimension_numbers<[1], [0], [0], [1], [0, 0, 1, 1], [], []>} : vector<64x128xbf16>, vector<128x128xbf16>, vector<64x128xf32> -> vector<64x128xf32>
    %47 = arith.addf %41, %46 : vector<64x128xf32>
    %c2_50 = arith.constant 2 : index
    %c8_51 = arith.constant 8 : index
    %c0_52 = arith.constant 0 : index
    %48 = vector.load %arg8[%c2_50, %c8_51, %c0_52] : memref<10x24x128xbf16, #tpu.memory_space<vmem>>, vector<8x8x128xbf16>
    %49 = vector.shape_cast %48 : vector<8x8x128xbf16> to vector<64x128xbf16>
    %c7_53 = arith.constant 7 : index
    %c0_54 = arith.constant 0 : index
    %c0_55 = arith.constant 0 : index
    %50 = vector.load %arg5[%c7_53, %c0_54, %c0_55] : memref<9x128x128xbf16, #tpu.memory_space<vmem>>, vector<1x128x128xbf16>
    %51 = vector.shape_cast %50 : vector<1x128x128xbf16> to vector<128x128xbf16>
    %cst_56 = arith.constant dense<0.000000e+00> : vector<64x128xf32>
    %52 = tpu.matmul %49, %51, %cst_56 {dimension_numbers = #tpu.dot_dimension_numbers<[1], [0], [0], [1], [0, 0, 1, 1], [], []>} : vector<64x128xbf16>, vector<128x128xbf16>, vector<64x128xf32> -> vector<64x128xf32>
    %53 = arith.addf %47, %52 : vector<64x128xf32>
    %c2_57 = arith.constant 2 : index
    %c9_58 = arith.constant 9 : index
    %c0_59 = arith.constant 0 : index
    %54 = vector.load %arg8[%c2_57, %c9_58, %c0_59] : memref<10x24x128xbf16, #tpu.memory_space<vmem>>, vector<8x8x128xbf16>
    %55 = vector.shape_cast %54 : vector<8x8x128xbf16> to vector<64x128xbf16>
    %c8_60 = arith.constant 8 : index
    %c0_61 = arith.constant 0 : index
    %c0_62 = arith.constant 0 : index
    %56 = vector.load %arg5[%c8_60, %c0_61, %c0_62] : memref<9x128x128xbf16, #tpu.memory_space<vmem>>, vector<1x128x128xbf16>
    %57 = vector.shape_cast %56 : vector<1x128x128xbf16> to vector<128x128xbf16>
    %cst_63 = arith.constant dense<0.000000e+00> : vector<64x128xf32>
    %58 = tpu.matmul %55, %57, %cst_63 {dimension_numbers = #tpu.dot_dimension_numbers<[1], [0], [0], [1], [0, 0, 1, 1], [], []>} : vector<64x128xbf16>, vector<128x128xbf16>, vector<64x128xf32> -> vector<64x128xf32>
    %59 = arith.addf %53, %58 : vector<64x128xf32>
    %c0_64 = arith.constant 0 : index
    %c0_65 = arith.constant 0 : index
    %c0_66 = arith.constant 0 : index
    %c0_67 = arith.constant 0 : index
    %60 = vector.load %arg2[%c0_64, %c0_65, %c0_66, %c0_67] : memref<1x8x8x16xbf16, #tpu.memory_space<vmem>>, vector<1x8x8x16xbf16>
    %61 = vector.shape_cast %60 : vector<1x8x8x16xbf16> to vector<8x8x16xbf16>
    %62 = arith.extf %61 : vector<8x8x16xbf16> to vector<8x8x16xf32>
    %c0_68 = arith.constant 0 : index
    %c0_69 = arith.constant 0 : index
    %c0_70 = arith.constant 0 : index
    %63 = vector.load %arg3[%c0_68, %c0_69, %c0_70] : memref<1x1x16xf32, #tpu.memory_space<vmem>>, vector<1x1x16xf32>
    %64 = vector.broadcast %63 : vector<1x1x16xf32> to vector<8x8x16xf32>
    %65 = arith.mulf %62, %64 : vector<8x8x16xf32>
    %c0_71 = arith.constant 0 : index
    %c0_72 = arith.constant 0 : index
    %c0_73 = arith.constant 0 : index
    %66 = vector.load %arg4[%c0_71, %c0_72, %c0_73] : memref<1x1x16xf32, #tpu.memory_space<vmem>>, vector<1x1x16xf32>
    %67 = vector.broadcast %66 : vector<1x1x16xf32> to vector<8x8x16xf32>
    %68 = arith.addf %65, %67 : vector<8x8x16xf32>
    %cst_74 = arith.constant 0.000000e+00 : f32
    %69 = vector.broadcast %cst_74 : f32 to vector<8x8x16xf32>
    %70 = arith.maximumf %68, %69 : vector<8x8x16xf32>
    %71 = arith.truncf %70 : vector<8x8x16xf32> to vector<8x8x16xbf16>
    %72 = vector.shape_cast %71 : vector<8x8x16xbf16> to vector<64x16xbf16>
    %c0_75 = arith.constant 0 : index
    %c0_76 = arith.constant 0 : index
    %73 = vector.load %arg6[%c0_75, %c0_76] : memref<16x128xbf16, #tpu.memory_space<vmem>>, vector<16x128xbf16>
    %cst_77 = arith.constant dense<0.000000e+00> : vector<64x128xf32>
    %74 = tpu.matmul %72, %73, %cst_77 {dimension_numbers = #tpu.dot_dimension_numbers<[1], [0], [0], [1], [0, 0, 1, 1], [], []>} : vector<64x16xbf16>, vector<16x128xbf16>, vector<64x128xf32> -> vector<64x128xf32>
    %75 = arith.addf %59, %74 : vector<64x128xf32>
    %76 = vector.shape_cast %75 : vector<64x128xf32> to vector<1x8x8x128xf32>
    %77 = arith.truncf %76 : vector<1x8x8x128xf32> to vector<1x8x8x128xbf16>
    %c0_78 = arith.constant 0 : index
    %c0_79 = arith.constant 0 : index
    %c0_80 = arith.constant 0 : index
    %c0_81 = arith.constant 0 : index
    %78 = vector.load %arg7[%c0_78, %c0_79, %c0_80, %c0_81] : memref<1x8x8x128xbf16, #tpu.memory_space<vmem>>, vector<1x8x8x128xbf16>
    tpu.vector_store %arg7[%c0_78, %c0_79, %c0_80, %c0_81], %77 {strides = array<i32>} : memref<1x8x8x128xbf16, #tpu.memory_space<vmem>>, vector<1x8x8x128xbf16>,
    return
  }
  func.func @transform_0(%arg0: i32) -> (i32, i32, i32, i32) {
    %c0_i32 = arith.constant 0 : i32
    %c0_i32_0 = arith.constant 0 : i32
    %c0_i32_1 = arith.constant 0 : i32
    %c0_i32_2 = arith.constant 0 : i32
    return %arg0, %c0_i32, %c0_i32_0, %c0_i32_1 : i32, i32, i32, i32
  }
  func.func @transform_1(%arg0: i32) -> (i32, i32, i32, i32) {
    %c0_i32 = arith.constant 0 : i32
    %c0_i32_0 = arith.constant 0 : i32
    %c0_i32_1 = arith.constant 0 : i32
    %c0_i32_2 = arith.constant 0 : i32
    return %arg0, %c0_i32, %c0_i32_0, %c0_i32_1 : i32, i32, i32, i32
  }
  func.func @transform_2(%arg0: i32) -> (i32, i32, i32) {
    %c0_i32 = arith.constant 0 : i32
    %c0_i32_0 = arith.constant 0 : i32
    %c0_i32_1 = arith.constant 0 : i32
    %c0_i32_2 = arith.constant 0 : i32
    return %c0_i32, %c0_i32_0, %c0_i32_1 : i32, i32, i32
  }
  func.func @transform_3(%arg0: i32) -> (i32, i32, i32) {
    %c0_i32 = arith.constant 0 : i32
    %c0_i32_0 = arith.constant 0 : i32
    %c0_i32_1 = arith.constant 0 : i32
    %c0_i32_2 = arith.constant 0 : i32
    return %c0_i32, %c0_i32_0, %c0_i32_1 : i32, i32, i32
  }
  func.func @transform_4(%arg0: i32) -> (i32, i32, i32) {
    %c0_i32 = arith.constant 0 : i32
    %c0_i32_0 = arith.constant 0 : i32
    %c0_i32_1 = arith.constant 0 : i32
    %c0_i32_2 = arith.constant 0 : i32
    return %c0_i32, %c0_i32_0, %c0_i32_1 : i32, i32, i32
  }
  func.func @transform_5(%arg0: i32) -> (i32, i32) {
    %c0_i32 = arith.constant 0 : i32
    %c0_i32_0 = arith.constant 0 : i32
    %c0_i32_1 = arith.constant 0 : i32
    return %c0_i32, %c0_i32_0 : i32, i32
  }
  func.func @transform_6(%arg0: i32) -> (i32, i32, i32, i32) {
    %c0_i32 = arith.constant 0 : i32
    %c0_i32_0 = arith.constant 0 : i32
    %c0_i32_1 = arith.constant 0 : i32
    %c0_i32_2 = arith.constant 0 : i32
    return %arg0, %c0_i32, %c0_i32_0, %c0_i32_1 : i32, i32, i32, i32
  }
}

module attributes {stable_mosaic.version = 11 : i64} {
  func.func @_conv1_matmul_kernel(%arg0: i32, %arg1: memref<128x80xbf16, #tpu.memory_space<vmem>>, %arg2: memref<80x128xbf16, #tpu.memory_space<vmem>>, %arg3: memref<1x128xf32, #tpu.memory_space<vmem>>, %arg4: memref<1x128xf32, #tpu.memory_space<vmem>>, %arg5: memref<128x128xbf16, #tpu.memory_space<vmem>>) attributes {dimension_semantics = [#tpu.dimension_semantics<parallel>], iteration_bounds = array<i64: 1>, scalar_prefetch = 0 : i64, scratch_operands = 0 : i64, tpu.core_type = #tpu.core_type<tc>, window_params = [{transform_indices = @transform_0, window_bounds = array<i64: 128, 80>}, {pipeline_mode = #tpu.pipeline_mode<synchronous>, transform_indices = @transform_1, window_bounds = array<i64: 80, 128>}, {pipeline_mode = #tpu.pipeline_mode<synchronous>, transform_indices = @transform_2, window_bounds = array<i64: 1, 128>}, {pipeline_mode = #tpu.pipeline_mode<synchronous>, transform_indices = @transform_3, window_bounds = array<i64: 1, 128>}, {transform_indices = @transform_4, window_bounds = array<i64: 128, 128>}]} {
    %c0 = arith.constant 0 : index
    %c0_0 = arith.constant 0 : index
    %0 = vector.load %arg1[%c0, %c0_0] : memref<128x80xbf16, #tpu.memory_space<vmem>>, vector<128x80xbf16>
    %c0_1 = arith.constant 0 : index
    %c0_2 = arith.constant 0 : index
    %1 = vector.load %arg2[%c0_1, %c0_2] : memref<80x128xbf16, #tpu.memory_space<vmem>>, vector<80x128xbf16>
    %cst = arith.constant dense<0.000000e+00> : vector<128x128xf32>
    %2 = tpu.matmul %0, %1, %cst {dimension_numbers = #tpu.dot_dimension_numbers<[1], [0], [0], [1], [0, 0, 1, 1], [], []>} : vector<128x80xbf16>, vector<80x128xbf16>, vector<128x128xf32> -> vector<128x128xf32>
    %c0_3 = arith.constant 0 : index
    %c0_4 = arith.constant 0 : index
    %3 = vector.load %arg3[%c0_3, %c0_4] : memref<1x128xf32, #tpu.memory_space<vmem>>, vector<1x128xf32>
    %4 = vector.broadcast %3 : vector<1x128xf32> to vector<128x128xf32>
    %5 = arith.mulf %2, %4 : vector<128x128xf32>
    %c0_5 = arith.constant 0 : index
    %c0_6 = arith.constant 0 : index
    %6 = vector.load %arg4[%c0_5, %c0_6] : memref<1x128xf32, #tpu.memory_space<vmem>>, vector<1x128xf32>
    %7 = vector.broadcast %6 : vector<1x128xf32> to vector<128x128xf32>
    %8 = arith.addf %5, %7 : vector<128x128xf32>
    %cst_7 = arith.constant 0.000000e+00 : f32
    %9 = vector.broadcast %cst_7 : f32 to vector<128x128xf32>
    %10 = arith.maximumf %8, %9 : vector<128x128xf32>
    %11 = arith.truncf %10 : vector<128x128xf32> to vector<128x128xbf16>
    %c0_8 = arith.constant 0 : index
    %c0_9 = arith.constant 0 : index
    %12 = vector.load %arg5[%c0_8, %c0_9] : memref<128x128xbf16, #tpu.memory_space<vmem>>, vector<128x128xbf16>
    tpu.vector_store %arg5[%c0_8, %c0_9], %11 {strides = array<i32>} : memref<128x128xbf16, #tpu.memory_space<vmem>>, vector<128x128xbf16>,
    return
  }
  func.func @transform_0(%arg0: i32) -> (i32, i32) {
    %c0_i32 = arith.constant 0 : i32
    %c0_i32_0 = arith.constant 0 : i32
    return %arg0, %c0_i32 : i32, i32
  }
  func.func @transform_1(%arg0: i32) -> (i32, i32) {
    %c0_i32 = arith.constant 0 : i32
    %c0_i32_0 = arith.constant 0 : i32
    %c0_i32_1 = arith.constant 0 : i32
    return %c0_i32, %c0_i32_0 : i32, i32
  }
  func.func @transform_2(%arg0: i32) -> (i32, i32) {
    %c0_i32 = arith.constant 0 : i32
    %c0_i32_0 = arith.constant 0 : i32
    %c0_i32_1 = arith.constant 0 : i32
    return %c0_i32, %c0_i32_0 : i32, i32
  }
  func.func @transform_3(%arg0: i32) -> (i32, i32) {
    %c0_i32 = arith.constant 0 : i32
    %c0_i32_0 = arith.constant 0 : i32
    %c0_i32_1 = arith.constant 0 : i32
    return %c0_i32, %c0_i32_0 : i32, i32
  }
  func.func @transform_4(%arg0: i32) -> (i32, i32) {
    %c0_i32 = arith.constant 0 : i32
    %c0_i32_0 = arith.constant 0 : i32
    return %arg0, %c0_i32 : i32, i32
  }
}

</mosaic_0001>

<llo_original>
// kernel: tile.14
$region0: #{tile.14}
  %s0 = inlined_call_operand.vmem [shape: f32[16,8], index: 0, kind: input, shape index: {}]
  %s1 = inlined_call_operand.vmem [shape: f32[1,128], index: 1, kind: output, shape index: {}]
  $region1: #{tile.14} parent=0
    #allocation0 [shape = 'u8[4096]{0}', space=vmem, size = 0x1000, scoped, tag = 'scoped mem for output reshape']
    %v2 = vld [vmem:[%s0] sm:$0x1]
    %vm3 = vcmask 64512
    %4 = vst.msk [vmem:[#allocation0] sm:$0x1] %vm3, %v2
    %s5 = scalar_lea.vmem %s0, 15
    %v6 = vld [vmem:[%s5] sm:$0x1]
    %7 = vrot.lane.b32.xlu0 %v6, 120
    %v8 = vpop.permute.xlu0 %7
    %vm9 = vcmask 1048512
    %10 = vst.msk [vmem:[#allocation0] sm:$0x1] %vm9, %v8
    %s11 = scalar_lea.vmem %s0, 14
    %v12 = vld [vmem:[%s11] sm:$0x1]
    %13 = vrot.lane.b32.xlu0 %v12, 112
    %v14 = vpop.permute.xlu0 %13
    %vm15 = vcmask 982912
    %16 = vst.msk [vmem:[#allocation0] sm:$0x1] %vm15, %v14
    %s17 = scalar_lea.vmem %s0, 13
    %v18 = vld [vmem:[%s17] sm:$0x1]
    %19 = vrot.lane.b32.xlu0 %v18, 104
    %v20 = vpop.permute.xlu0 %19
    %vm21 = vcmask 917312
    %22 = vst.msk [vmem:[#allocation0] sm:$0x1] %vm21, %v20
    %s23 = scalar_lea.vmem %s0, 12
    %v24 = vld [vmem:[%s23] sm:$0x1]
    %25 = vrot.lane.b32.xlu0 %v24, 96
    %v26 = vpop.permute.xlu0 %25
    %vm27 = vcmask 851712
    %28 = vst.msk [vmem:[#allocation0] sm:$0x1] %vm27, %v26
    %s29 = scalar_lea.vmem %s0, 11
    %v30 = vld [vmem:[%s29] sm:$0x1]
    %31 = vrot.lane.b32.xlu0 %v30, 88
    %v32 = vpop.permute.xlu0 %31
    %vm33 = vcmask 786112
    %34 = vst.msk [vmem:[#allocation0] sm:$0x1] %vm33, %v32
    %s35 = scalar_lea.vmem %s0, 10
    %v36 = vld [vmem:[%s35] sm:$0x1]
    %37 = vrot.lane.b32.xlu0 %v36, 80
    %v38 = vpop.permute.xlu0 %37
    %vm39 = vcmask 720512
    %40 = vst.msk [vmem:[#allocation0] sm:$0x1] %vm39, %v38
    %s41 = scalar_lea.vmem %s0, 9
    %v42 = vld [vmem:[%s41] sm:$0x1]
    %43 = vrot.lane.b32.xlu0 %v42, 72
    %v44 = vpop.permute.xlu0 %43
    %vm45 = vcmask 654912
    %46 = vst.msk [vmem:[#allocation0] sm:$0x1] %vm45, %v44
    %s47 = scalar_lea.vmem %s0, 8
    %v48 = vld [vmem:[%s47] sm:$0x1]
    %49 = vrot.lane.b32.xlu0 %v48, 64
    %v50 = vpop.permute.xlu0 %49
    %vm51 = vcmask 589312
    %52 = vst.msk [vmem:[#allocation0] sm:$0x1] %vm51, %v50
    %s53 = scalar_lea.vmem %s0, 7
    %v54 = vld [vmem:[%s53] sm:$0x1]
    %55 = vrot.lane.b32.xlu0 %v54, 56
    %v56 = vpop.permute.xlu0 %55
    %vm57 = vcmask 523712
    %58 = vst.msk [vmem:[#allocation0] sm:$0x1] %vm57, %v56
    %s59 = scalar_lea.vmem %s0, 6
    %v60 = vld [vmem:[%s59] sm:$0x1]
    %61 = vrot.lane.b32.xlu0 %v60, 48
    %v62 = vpop.permute.xlu0 %61
    %vm63 = vcmask 458112
    %64 = vst.msk [vmem:[#allocation0] sm:$0x1] %vm63, %v62
    %s65 = scalar_lea.vmem %s0, 5
    %v66 = vld [vmem:[%s65] sm:$0x1]
    %67 = vrot.lane.b32.xlu0 %v66, 40
    %v68 = vpop.permute.xlu0 %67
    %vm69 = vcmask 392512
    %70 = vst.msk [vmem:[#allocation0] sm:$0x1] %vm69, %v68
    %s71 = scalar_lea.vmem %s0, 4
    %v72 = vld [vmem:[%s71] sm:$0x1]
    %73 = vrot.lane.b32.xlu0 %v72, 32
    %v74 = vpop.permute.xlu0 %73
    %vm75 = vcmask 326912
    %76 = vst.msk [vmem:[#allocation0] sm:$0x1] %vm75, %v74
    %s77 = scalar_lea.vmem %s0, 3
    %v78 = vld [vmem:[%s77] sm:$0x1]
    %79 = vrot.lane.b32.xlu0 %v78, 24
    %v80 = vpop.permute.xlu0 %79
    %vm81 = vcmask 261312
    %82 = vst.msk [vmem:[#allocation0] sm:$0x1] %vm81, %v80
    %s83 = scalar_lea.vmem %s0, 2
    %v84 = vld [vmem:[%s83] sm:$0x1]
    %85 = vrot.lane.b32.xlu0 %v84, 16
    %v86 = vpop.permute.xlu0 %85
    %vm87 = vcmask 195712
    %88 = vst.msk [vmem:[#allocation0] sm:$0x1] %vm87, %v86
    %s89 = scalar_lea.vmem %s0, 1
    %v90 = vld [vmem:[%s89] sm:$0x1]
    %91 = vrot.lane.b32.xlu0 %v90, 8
    %v92 = vpop.permute.xlu0 %91
    %vm93 = vcmask 130112
    %94 = vst.msk [vmem:[#allocation0] sm:$0x1] %vm93, %v92
    %s96 = sshll.u32 1, 1
    %s97 = ssub.s32 %s96, 1
    %v99 = vld [vmem:[#allocation0] sm:%s97]
    %s100 = sshll.u32 1, 1
    %s101 = ssub.s32 %s100, 1
    %102 = vst [vmem:[%s1] sm:%s101] %v99

// kernel: tile.13
$region0: #{tile.13}
  #allocation0 [shape = 's32[1]{0}', space=sflag, size = 0x4, scoped, tag = 'scoped memory for tile.13']
  %s0 = inlined_call_operand.vmem [shape: f32[8], index: 0, kind: input, shape index: {}]
  %s1 = inlined_call_operand.vmem [shape: f32[16,8], index: 1, kind: output, shape index: {}]
  // Predicated region
  $region2: #{tile.13} parent=0 // pred_check
    _
  $region3: #{tile.13} parent=0 // pred_check_branch
    %3 = sbr.rel (0) target = $region5
  $region4: #{tile.13} parent=0 // pred_region
    _
  $region5: #{tile.13} parent=0 // pred_fallthru
    _
  %v4 = vld [vmem:[%s0] ss:$0 sm:$0xff]
  %5 = vst [vmem:[%s1] sm:$0xff] %v4
  %s6 = scalar_lea.vmem %s1, 8
  %7 = vst [vmem:[%s6] sm:$0xff] %v4

// kernel: basic_block_forward.3
$region0: #{basic_block_forward.3}
  #allocation0 [shape = 'u32[]', space=smem, size = 0x4, offset = 0x4, fixed_abs, tag = 'smem constant byte address 0x4 - core index']
  #allocation1 [shape = 'u32[144,128]{1,0:T(1,128)}', space=vmem, size = 0x12000, scoped, tag = 'internal scratch']
  %s0 = inlined_call_operand.vmem [shape: f32[32,128], index: 0, kind: input, shape index: {}]
  %s1 = inlined_call_operand.vmem [shape: f32[1,128], index: 1, kind: input, shape index: {}]
  %s2 = inlined_call_operand.vmem [shape: f32[1,128], index: 2, kind: input, shape index: {}]
  %s3 = inlined_call_operand.vmem [shape: bf16[32,128], index: 3, kind: output, shape index: {}]
  %s4 = sld [smem:[#allocation0]]
  $region22: #{basic_block_forward.3} parent=0
    _
  %s6 = ssub.s32 1, %s4
  %s7 = scalar_select 0, %s6, %s4
  // Predicated region
  $region2: #{basic_block_forward.3} parent=0 // pred_check
    _
  $region3: #{basic_block_forward.3} parent=0 // pred_check_branch
    %9 = sbr.rel (0) target = $region5
  $region4: #{basic_block_forward.3} parent=0 // pred_region
    _
  $region5: #{basic_block_forward.3} parent=0 // pred_fallthru
    _
  // Predicated region
  $region6: #{basic_block_forward.3} parent=0 // pred_check
    _
  $region7: #{basic_block_forward.3} parent=0 // pred_check_branch
    %11 = sbr.rel (0) target = $region9
  $region8: #{basic_block_forward.3} parent=0 // pred_region
    _
  $region9: #{basic_block_forward.3} parent=0 // pred_fallthru
    _
  // Predicated region
  $region10: #{basic_block_forward.3} parent=0 // pred_check
    _
  $region11: #{basic_block_forward.3} parent=0 // pred_check_branch
    %13 = sbr.rel (0) target = $region13
  $region12: #{basic_block_forward.3} parent=0 // pred_region
    _
  $region13: #{basic_block_forward.3} parent=0 // pred_fallthru
    _
  %v14 = vld [vmem:[%s0] sm:$0xff]
  %v15 = vld [vmem:[%s0 + $0x8] sm:$0xff]
  %v16 = vld [vmem:[%s0 + $0x10] sm:$0xff]
  %v17 = vld [vmem:[%s0 + $0x18] sm:$0xff]
  %v18 = vld [vmem:[%s1] sm:$0x1]
  %v20 = vlaneseq
  %v21 = vshrl.u32 %v20, 7
  %v22 = vsub.s32 0, %v21
  %v23 = vrot.slane %v18, %v22
  %v25 = vmul.f32 %v14, %v23
  %v26 = vmul.f32 %v15, %v23
  %v27 = vmul.f32 %v16, %v23
  %v28 = vmul.f32 %v17, %v23
  %v29 = vld [vmem:[%s2] sm:$0x1]
  %v31 = vlaneseq
  %v32 = vshrl.u32 %v31, 7
  %v33 = vsub.s32 0, %v32
  %v34 = vrot.slane %v29, %v33
  %v36 = vadd.f32 %v25, %v34
  %v37 = vadd.f32 %v26, %v34
  %v38 = vadd.f32 %v27, %v34
  %v39 = vadd.f32 %v28, %v34
  %v40 = vmax.f32 %v36, 0.0
  %v41 = vmax.f32 %v37, 0.0
  %v42 = vmax.f32 %v38, 0.0
  %v43 = vmax.f32 %v39, 0.0
  %v44 = vpack.c.bf16 %v41, %v40
  %v45 = vpack.c.bf16 %v43, %v42
  %v48 = vunpack.c.l.b16 %v44
  %v49 = vunpack.c.h.b16 %v44
  %v50 = vunpack.c.l.b16 %v45
  %v51 = vunpack.c.h.b16 %v45
  %v52 = vpack.c.b16 %v48, %v48
  %v53 = vpack.c.b16 %v49, %v49
  %v54 = vpack.c.b16 %v50, %v50
  %v55 = vpack.c.b16 %v51, %v51
  %60 = vst [vmem:[%s3] sm:$0xf] %v52
  %61 = vst [vmem:[%s3 + $0x4] sm:$0xf] %v53
  %62 = vst [vmem:[%s3 + $0x8] sm:$0xf] %v54
  %63 = vst [vmem:[%s3 + $0xc] sm:$0xf] %v55
  // Predicated region
  $region14: #{basic_block_forward.3} parent=0 // pred_check
    _
  $region15: #{basic_block_forward.3} parent=0 // pred_check_branch
    %65 = sbr.rel (0) target = $region17
  $region16: #{basic_block_forward.3} parent=0 // pred_region
    _
  $region17: #{basic_block_forward.3} parent=0 // pred_fallthru
    _
  // Predicated region
  $region18: #{basic_block_forward.3} parent=0 // pred_check
    _
  $region19: #{basic_block_forward.3} parent=0 // pred_check_branch
    %67 = sbr.rel (0) target = $region21
  $region20: #{basic_block_forward.3} parent=0 // pred_region
    _
  $region21: #{basic_block_forward.3} parent=0 // pred_fallthru
    _

// kernel: basic_block_forward.4
$region0: #{basic_block_forward.4}
  #allocation0 [shape = 'u32[]', space=smem, size = 0x4, offset = 0x4, fixed_abs, tag = 'smem constant byte address 0x4 - core index']
  #allocation1 [shape = 'u32[144,128]{1,0:T(1,128)}', space=vmem, size = 0x12000, scoped, tag = 'internal scratch']
  %s0 = inlined_call_operand.vmem [shape: bf16[128,80], index: 0, kind: input, shape index: {}]
  %s1 = inlined_call_operand.vmem [shape: bf16[80,128], index: 1, kind: input, shape index: {}]
  %s2 = inlined_call_operand.vmem [shape: f32[1,128], index: 2, kind: input, shape index: {}]
  %s3 = inlined_call_operand.vmem [shape: f32[1,128], index: 3, kind: input, shape index: {}]
  %s4 = inlined_call_operand.vmem [shape: bf16[128,128], index: 4, kind: output, shape index: {}]
  %s5 = sld [smem:[#allocation0]]
  $region26: #{basic_block_forward.4} parent=0
    _
  %s7 = ssub.s32 1, %s5
  %s8 = scalar_select 0, %s7, %s5
  // Predicated region
  $region2: #{basic_block_forward.4} parent=0 // pred_check
    _
  $region3: #{basic_block_forward.4} parent=0 // pred_check_branch
    %10 = sbr.rel (0) target = $region5
  $region4: #{basic_block_forward.4} parent=0 // pred_region
    _
  $region5: #{basic_block_forward.4} parent=0 // pred_fallthru
    _
  // Predicated region
  $region6: #{basic_block_forward.4} parent=0 // pred_check
    _
  $region7: #{basic_block_forward.4} parent=0 // pred_check_branch
    %12 = sbr.rel (0) target = $region9
  $region8: #{basic_block_forward.4} parent=0 // pred_region
    _
  $region9: #{basic_block_forward.4} parent=0 // pred_fallthru
    _
  // Predicated region
  $region10: #{basic_block_forward.4} parent=0 // pred_check
    _
  $region11: #{basic_block_forward.4} parent=0 // pred_check_branch
    %14 = sbr.rel (0) target = $region13
  $region12: #{basic_block_forward.4} parent=0 // pred_region
    _
  $region13: #{basic_block_forward.4} parent=0 // pred_fallthru
    _
  // Predicated region
  $region14: #{basic_block_forward.4} parent=0 // pred_check
    _
  $region15: #{basic_block_forward.4} parent=0 // pred_check_branch
    %16 = sbr.rel (0) target = $region17
  $region16: #{basic_block_forward.4} parent=0 // pred_region
    _
  $region17: #{basic_block_forward.4} parent=0 // pred_fallthru
    _
  %v18 = vld [vmem:[%s0] sm:$0xf]
  %v19 = vld [vmem:[%s0 + $0x4] sm:$0xf]
  %v20 = vld [vmem:[%s0 + $0x8] sm:$0xf]
  %v21 = vld [vmem:[%s0 + $0xc] sm:$0xf]
  %v22 = vld [vmem:[%s0 + $0x10] sm:$0xf]
  %v23 = vld [vmem:[%s0 + $0x14] sm:$0xf]
  %v24 = vld [vmem:[%s0 + $0x18] sm:$0xf]
  %v25 = vld [vmem:[%s0 + $0x1c] sm:$0xf]
  %v26 = vld [vmem:[%s0 + $0x20] sm:$0xf]
  %v27 = vld [vmem:[%s0 + $0x24] sm:$0xf]
  %v28 = vld [vmem:[%s0 + $0x28] sm:$0xf]
  %v29 = vld [vmem:[%s0 + $0x2c] sm:$0xf]
  %v30 = vld [vmem:[%s0 + $0x30] sm:$0xf]
  %v31 = vld [vmem:[%s0 + $0x34] sm:$0xf]
  %v32 = vld [vmem:[%s0 + $0x38] sm:$0xf]
  %v33 = vld [vmem:[%s0 + $0x3c] sm:$0xf]
  %v34 = vld [vmem:[%s1] sm:$0xf]
  %v35 = vld [vmem:[%s1 + $0x4] sm:$0xf]
  %v36 = vld [vmem:[%s1 + $0x8] sm:$0xf]
  %v37 = vld [vmem:[%s1 + $0xc] sm:$0xf]
  %v38 = vld [vmem:[%s1 + $0x10] sm:$0xf]
  %v39 = vld [vmem:[%s1 + $0x14] sm:$0xf]
  %v40 = vld [vmem:[%s1 + $0x18] sm:$0xf]
  %v41 = vld [vmem:[%s1 + $0x1c] sm:$0xf]
  %v42 = vld [vmem:[%s1 + $0x20] sm:$0xf]
  %v43 = vld [vmem:[%s1 + $0x24] sm:$0xf]
  %v60 = vunpack.c.l.b16 %v18
  %v61 = vunpack.c.l.b16 %v19
  %v62 = vunpack.c.l.b16 %v20
  %v63 = vunpack.c.l.b16 %v21
  %v64 = vunpack.c.l.b16 %v22
  %v65 = vunpack.c.l.b16 %v23
  %v66 = vunpack.c.l.b16 %v24
  %v67 = vunpack.c.l.b16 %v25
  %v68 = vunpack.c.l.b16 %v26
  %v69 = vunpack.c.l.b16 %v27
  %v70 = vunpack.c.l.b16 %v28
  %v71 = vunpack.c.l.b16 %v29
  %v72 = vunpack.c.l.b16 %v30
  %v73 = vunpack.c.l.b16 %v31
  %v74 = vunpack.c.l.b16 %v32
  %v75 = vunpack.c.l.b16 %v33
  %v76 = vpack.c.b16 %v61, %v60
  %v77 = vpack.c.b16 %v63, %v62
  %v78 = vpack.c.b16 %v65, %v64
  %v79 = vpack.c.b16 %v67, %v66
  %v80 = vpack.c.b16 %v69, %v68
  %v81 = vpack.c.b16 %v71, %v70
  %v82 = vpack.c.b16 %v73, %v72
  %v83 = vpack.c.b16 %v75, %v74
  %v94 = vunpack.c.l.b16 %v34
  %v95 = vunpack.c.l.b16 %v35
  %v96 = vunpack.c.l.b16 %v36
  %v97 = vunpack.c.l.b16 %v37
  %v98 = vunpack.c.l.b16 %v38
  %v99 = vunpack.c.l.b16 %v39
  %v100 = vunpack.c.l.b16 %v40
  %v101 = vunpack.c.l.b16 %v41
  %v102 = vunpack.c.l.b16 %v42
  %v103 = vunpack.c.l.b16 %v43
  %v104 = vpack.c.b16 %v95, %v94
  %v105 = vpack.c.b16 %v97, %v96
  %v106 = vpack.c.b16 %v99, %v98
  %v107 = vpack.c.b16 %v101, %v100
  %v108 = vpack.c.b16 %v103, %v102
  %vm114 = vcmask 654336
  %v116 = vsel %vm114, %v76, 0
  %v119 = vsel %vm114, %v77, 0
  %v122 = vsel %vm114, %v78, 0
  %v125 = vsel %vm114, %v79, 0
  %v128 = vsel %vm114, %v80, 0
  %v131 = vsel %vm114, %v81, 0
  %v134 = vsel %vm114, %v82, 0
  %v137 = vsel %vm114, %v83, 0
  %139 = vmatprep.subr.bf16.mxu0 0
  %140 = vmatpush1.bf16.msra.mxu0 0
  %141 = vmatprep.subr.bf16.mxu0 0
  %142 = vmatpush1.bf16.msra.mxu0 0
  %143 = vmatprep.subr.bf16.mxu0 0
  %144 = vmatpush1.bf16.msra.mxu0 0
  %145 = vmatprep.subr.bf16.mxu0 0
  %146 = vmatpush1.bf16.msra.mxu0 %v108
  %147 = vmatprep.subr.bf16.mxu0 0
  %148 = vmatpush1.bf16.msra.mxu0 %v107
  %149 = vmatprep.subr.bf16.mxu0 0
  %150 = vmatpush1.bf16.msra.mxu0 %v106
  %151 = vmatprep.subr.bf16.mxu0 0
  %152 = vmatpush1.bf16.msra.mxu0 %v105
  %153 = vmatprep.subr.bf16.mxu0 0
  %154 = vmatpush1.bf16.msra.mxu0 %v104
  %155 = vmatprep.subr.bf16.mxu0 0
  %156 = vmatpush2.bf16.msra.mxu0 0
  %157 = vmatprep.subr.bf16.mxu0 0
  %158 = vmatpush2.bf16.msra.mxu0 0
  %159 = vmatprep.subr.bf16.mxu0 0
  %160 = vmatpush2.bf16.msra.mxu0 0
  %161 = vmatprep.subr.bf16.mxu0 0
  %162 = vmatpush2.bf16.msra.mxu0 0
  %163 = vmatprep.subr.bf16.mxu0 0
  %164 = vmatpush2.bf16.msra.mxu0 0
  %165 = vmatprep.subr.bf16.mxu0 0
  %166 = vmatpush2.bf16.msra.mxu0 0
  %167 = vmatprep.subr.bf16.mxu0 0
  %168 = vmatpush2.bf16.msra.mxu0 0
  %169 = vmatprep.subr.bf16.mxu0 0
  %170 = vmatpush2.bf16.msra.mxu0 0
  %171 = vmatprep.mubr.bf16.mxu0 0
  %172 = vmatmul.mubr.bf16.gmra.mxu0 %v116
  %v173 = vpop.f32.mrf.mxu0
  %v174 = vadd.f32 0.0, %v173
  %v175 = vpop.f32.mrf.mxu0
  %v176 = vpop.f32.mrf.mxu0
  %v177 = vadd.f32 0.0, %v176
  %v178 = vpop.f32.mrf.mxu0
  %179 = vmatprep.mubr.bf16.mxu0 0
  %180 = vmatmul.mubr.bf16.gmra.mxu0 %v119
  %v181 = vpop.f32.mrf.mxu0
  %v182 = vadd.f32 0.0, %v181
  %v183 = vpop.f32.mrf.mxu0
  %v184 = vpop.f32.mrf.mxu0
  %v185 = vadd.f32 0.0, %v184
  %v186 = vpop.f32.mrf.mxu0
  %187 = vmatprep.mubr.bf16.mxu0 0
  %188 = vmatmul.mubr.bf16.gmra.mxu0 %v122
  %v189 = vpop.f32.mrf.mxu0
  %v190 = vadd.f32 0.0, %v189
  %v191 = vpop.f32.mrf.mxu0
  %v192 = vpop.f32.mrf.mxu0
  %v193 = vadd.f32 0.0, %v192
  %v194 = vpop.f32.mrf.mxu0
  %195 = vmatprep.mubr.bf16.mxu0 0
  %196 = vmatmul.mubr.bf16.gmra.mxu0 %v125
  %v197 = vpop.f32.mrf.mxu0
  %v198 = vadd.f32 0.0, %v197
  %v199 = vpop.f32.mrf.mxu0
  %v200 = vpop.f32.mrf.mxu0
  %v201 = vadd.f32 0.0, %v200
  %v202 = vpop.f32.mrf.mxu0
  %203 = vmatprep.mubr.bf16.mxu0 0
  %204 = vmatmul.mubr.bf16.gmra.mxu0 %v128
  %v205 = vpop.f32.mrf.mxu0
  %v206 = vadd.f32 0.0, %v205
  %v207 = vpop.f32.mrf.mxu0
  %v208 = vpop.f32.mrf.mxu0
  %v209 = vadd.f32 0.0, %v208
  %v210 = vpop.f32.mrf.mxu0
  %211 = vmatprep.mubr.bf16.mxu0 0
  %212 = vmatmul.mubr.bf16.gmra.mxu0 %v131
  %v213 = vpop.f32.mrf.mxu0
  %v214 = vadd.f32 0.0, %v213
  %v215 = vpop.f32.mrf.mxu0
  %v216 = vpop.f32.mrf.mxu0
  %v217 = vadd.f32 0.0, %v216
  %v218 = vpop.f32.mrf.mxu0
  %219 = vmatprep.mubr.bf16.mxu0 0
  %220 = vmatmul.mubr.bf16.gmra.mxu0 %v134
  %v221 = vpop.f32.mrf.mxu0
  %v222 = vadd.f32 0.0, %v221
  %v223 = vpop.f32.mrf.mxu0
  %v224 = vpop.f32.mrf.mxu0
  %v225 = vadd.f32 0.0, %v224
  %v226 = vpop.f32.mrf.mxu0
  %227 = vmatprep.mubr.bf16.mxu0 0
  %228 = vmatmul.mubr.bf16.gmra.mxu0 %v137
  %v229 = vpop.f32.mrf.mxu0
  %v230 = vadd.f32 0.0, %v229
  %v231 = vpop.f32.mrf.mxu0
  %v232 = vpop.f32.mrf.mxu0
  %v233 = vadd.f32 0.0, %v232
  %v234 = vpop.f32.mrf.mxu0
  %235 = vdwg.mxu0
  %v236 = vld [vmem:[%s2] sm:$0x1]
  %v238 = vlaneseq
  %v239 = vshrl.u32 %v238, 7
  %v240 = vsub.s32 0, %v239
  %v241 = vrot.slane %v236, %v240
  %v243 = vmul.f32 %v174, %v241
  %v244 = vmul.f32 %v177, %v241
  %v245 = vmul.f32 %v182, %v241
  %v246 = vmul.f32 %v185, %v241
  %v247 = vmul.f32 %v190, %v241
  %v248 = vmul.f32 %v193, %v241
  %v249 = vmul.f32 %v198, %v241
  %v250 = vmul.f32 %v201, %v241
  %v251 = vmul.f32 %v206, %v241
  %v252 = vmul.f32 %v209, %v241
  %v253 = vmul.f32 %v214, %v241
  %v254 = vmul.f32 %v217, %v241
  %v255 = vmul.f32 %v222, %v241
  %v256 = vmul.f32 %v225, %v241
  %v257 = vmul.f32 %v230, %v241
  %v258 = vmul.f32 %v233, %v241
  %v259 = vld [vmem:[%s3] sm:$0x1]
  %v261 = vlaneseq
  %v262 = vshrl.u32 %v261, 7
  %v263 = vsub.s32 0, %v262
  %v264 = vrot.slane %v259, %v263
  %v266 = vadd.f32 %v243, %v264
  %v267 = vadd.f32 %v244, %v264
  %v268 = vadd.f32 %v245, %v264
  %v269 = vadd.f32 %v246, %v264
  %v270 = vadd.f32 %v247, %v264
  %v271 = vadd.f32 %v248, %v264
  %v272 = vadd.f32 %v249, %v264
  %v273 = vadd.f32 %v250, %v264
  %v274 = vadd.f32 %v251, %v264
  %v275 = vadd.f32 %v252, %v264
  %v276 = vadd.f32 %v253, %v264
  %v277 = vadd.f32 %v254, %v264
  %v278 = vadd.f32 %v255, %v264
  %v279 = vadd.f32 %v256, %v264
  %v280 = vadd.f32 %v257, %v264
  %v281 = vadd.f32 %v258, %v264
  %v282 = vmax.f32 %v266, 0.0
  %v283 = vmax.f32 %v267, 0.0
  %v284 = vmax.f32 %v268, 0.0
  %v285 = vmax.f32 %v269, 0.0
  %v286 = vmax.f32 %v270, 0.0
  %v287 = vmax.f32 %v271, 0.0
  %v288 = vmax.f32 %v272, 0.0
  %v289 = vmax.f32 %v273, 0.0
  %v290 = vmax.f32 %v274, 0.0
  %v291 = vmax.f32 %v275, 0.0
  %v292 = vmax.f32 %v276, 0.0
  %v293 = vmax.f32 %v277, 0.0
  %v294 = vmax.f32 %v278, 0.0
  %v295 = vmax.f32 %v279, 0.0
  %v296 = vmax.f32 %v280, 0.0
  %v297 = vmax.f32 %v281, 0.0
  %v298 = vpack.c.bf16 %v283, %v282
  %v299 = vpack.c.bf16 %v285, %v284
  %v300 = vpack.c.bf16 %v287, %v286
  %v301 = vpack.c.bf16 %v289, %v288
  %v302 = vpack.c.bf16 %v291, %v290
  %v303 = vpack.c.bf16 %v293, %v292
  %v304 = vpack.c.bf16 %v295, %v294
  %v305 = vpack.c.bf16 %v297, %v296
  %v314 = vunpack.c.l.b16 %v298
  %v315 = vunpack.c.h.b16 %v298
  %v316 = vunpack.c.l.b16 %v299
  %v317 = vunpack.c.h.b16 %v299
  %v318 = vunpack.c.l.b16 %v300
  %v319 = vunpack.c.h.b16 %v300
  %v320 = vunpack.c.l.b16 %v301
  %v321 = vunpack.c.h.b16 %v301
  %v322 = vunpack.c.l.b16 %v302
  %v323 = vunpack.c.h.b16 %v302
  %v324 = vunpack.c.l.b16 %v303
  %v325 = vunpack.c.h.b16 %v303
  %v326 = vunpack.c.l.b16 %v304
  %v327 = vunpack.c.h.b16 %v304
  %v328 = vunpack.c.l.b16 %v305
  %v329 = vunpack.c.h.b16 %v305
  %v330 = vpack.c.b16 %v314, %v314
  %v331 = vpack.c.b16 %v315, %v315
  %v332 = vpack.c.b16 %v316, %v316
  %v333 = vpack.c.b16 %v317, %v317
  %v334 = vpack.c.b16 %v318, %v318
  %v335 = vpack.c.b16 %v319, %v319
  %v336 = vpack.c.b16 %v320, %v320
  %v337 = vpack.c.b16 %v321, %v321
  %v338 = vpack.c.b16 %v322, %v322
  %v339 = vpack.c.b16 %v323, %v323
  %v340 = vpack.c.b16 %v324, %v324
  %v341 = vpack.c.b16 %v325, %v325
  %v342 = vpack.c.b16 %v326, %v326
  %v343 = vpack.c.b16 %v327, %v327
  %v344 = vpack.c.b16 %v328, %v328
  %v345 = vpack.c.b16 %v329, %v329
  %362 = vst [vmem:[%s4] sm:$0xf] %v330
  %363 = vst [vmem:[%s4 + $0x4] sm:$0xf] %v331
  %364 = vst [vmem:[%s4 + $0x8] sm:$0xf] %v332
  %365 = vst [vmem:[%s4 + $0xc] sm:$0xf] %v333
  %366 = vst [vmem:[%s4 + $0x10] sm:$0xf] %v334
  %367 = vst [vmem:[%s4 + $0x14] sm:$0xf] %v335
  %368 = vst [vmem:[%s4 + $0x18] sm:$0xf] %v336
  %369 = vst [vmem:[%s4 + $0x1c] sm:$0xf] %v337
  %370 = vst [vmem:[%s4 + $0x20] sm:$0xf] %v338
  %371 = vst [vmem:[%s4 + $0x24] sm:$0xf] %v339
  %372 = vst [vmem:[%s4 + $0x28] sm:$0xf] %v340
  %373 = vst [vmem:[%s4 + $0x2c] sm:$0xf] %v341
  %374 = vst [vmem:[%s4 + $0x30] sm:$0xf] %v342
  %375 = vst [vmem:[%s4 + $0x34] sm:$0xf] %v343
  %376 = vst [vmem:[%s4 + $0x38] sm:$0xf] %v344
  %377 = vst [vmem:[%s4 + $0x3c] sm:$0xf] %v345
  // Predicated region
  $region18: #{basic_block_forward.4} parent=0 // pred_check
    _
  $region19: #{basic_block_forward.4} parent=0 // pred_check_branch
    %379 = sbr.rel (0) target = $region21
  $region20: #{basic_block_forward.4} parent=0 // pred_region
    _
  $region21: #{basic_block_forward.4} parent=0 // pred_fallthru
    _
  // Predicated region
  $region22: #{basic_block_forward.4} parent=0 // pred_check
    _
  $region23: #{basic_block_forward.4} parent=0 // pred_check_branch
    %381 = sbr.rel (0) target = $region25
  $region24: #{basic_block_forward.4} parent=0 // pred_region
    _
  $region25: #{basic_block_forward.4} parent=0 // pred_fallthru
    _

// kernel: basic_block_forward.5
$region0: #{basic_block_forward.5}
  #allocation0 [shape = 'u32[]', space=smem, size = 0x4, offset = 0x4, fixed_abs, tag = 'smem constant byte address 0x4 - core index']
  #allocation1 [shape = 'u32[144,128]{1,0:T(1,128)}', space=vmem, size = 0x12000, scoped, tag = 'internal scratch']
  #allocation2 [shape = 'bf16[10,24,128]{2,1,0:T(8,128)(2,1)}', space=vmem, size = 0xf000, scoped, tag = 'scratch operand']
  %s0 = inlined_call_operand.vmem [shape: bf16[2,8,8,128], index: 0, kind: input, shape index: {}]
  %s1 = inlined_call_operand.vmem [shape: bf16[2,8,8,16], index: 1, kind: input, shape index: {}]
  %s2 = inlined_call_operand.vmem [shape: f32[1,1,16], index: 2, kind: input, shape index: {}]
  %s3 = inlined_call_operand.vmem [shape: f32[1,1,16], index: 3, kind: input, shape index: {}]
  %s4 = inlined_call_operand.vmem [shape: bf16[9,128,128], index: 4, kind: input, shape index: {}]
  %s5 = inlined_call_operand.vmem [shape: bf16[16,128], index: 5, kind: input, shape index: {}]
  %s6 = inlined_call_operand.vmem [shape: bf16[2,8,8,128], index: 6, kind: output, shape index: {}]
  %s7 = sld [smem:[#allocation0]]
  $region57: #{basic_block_forward.5} parent=0
    _
  %s9 = ssub.s32 1, %s7
  %s10 = scalar_select 0, %s9, %s7
  loop: start=0, step=1, limit=4
  $region2: #{basic_block_forward.5} parent=0 // loop_pre_header
    _
  $region3: #{basic_block_forward.5} parent=0 // loop_header
    %s12 = sphi 0, %s16
    %p13 = scmp.ge.s32.totalorder %s12, 4
    %s22 = sphi 0, %s24
    %s25 = sphi 0, %s22
    %s26 = sphi 0, %s25
    %s42 = sphi 0, %s26
    %s48 = sphi 0, %s50
    %s51 = sphi 0, %s48
    %s52 = sphi 0, %s51
    %s68 = sphi 0, %s52
    %s72 = sphi 0, %s72
    %s74 = sphi 0, %s72
    %s75 = sphi 0, %s74
    %s89 = sphi 0, %s75
    %s93 = sphi 0, %s93
    %s95 = sphi 0, %s93
    %s96 = sphi 0, %s95
    %s110 = sphi 0, %s96
    %s114 = sphi 0, %s114
    %s116 = sphi 0, %s114
    %s117 = sphi 0, %s116
    %s131 = sphi 0, %s117
    %s135 = sphi 0, %s135
    %s137 = sphi 0, %s135
    %s138 = sphi 0, %s137
    %s152 = sphi 0, %s138
    %s158 = sphi 0, %s160
    %s161 = sphi 0, %s158
    %s162 = sphi 0, %s161
    %s178 = sphi 0, %s162
  $region4: #{basic_block_forward.5} parent=0 // loop_header_branch
    %15 = sbr.rel (%p13) target = $region8
  $region5: #{basic_block_forward.5} parent=0 // loop_body
    %s17 = ssub.s32 %s12, 1
    %s18 = ssub.s32 %s12, 2
    %s19 = sadd.s32 %s12, 1
    %s20 = ssub.s32 %s12, %s19
    %p21 = scmp.eq.s32.totalorder %s20, 0
    %s23 = sadd.s32 %s22, 1
    %s24 = scalar_select %p21, %s22, %s23
    %p27 = pneg %p21
    %p28 = scmp.eq.s32.totalorder %s12, 1
    %p29 = por %p27, %p28
    %p30 = scmp.ne.s32.totalorder %s22, %s25
    %p31 = scmp.eq.s32.totalorder %s12, 0
    %p32 = por %p30, %p31
    %p33 = scmp.ne.s32.totalorder %s22, %s25
    %p34 = scmp.eq.s32.totalorder %s17, 1
    %p35 = por %p33, %p34
    %p36 = scmp.ne.s32.totalorder %s25, %s26
    %p37 = scmp.eq.s32.totalorder %s17, 0
    %p38 = por %p36, %p37
    %p39 = scmp.ne.s32.totalorder %s25, %s26
    %p40 = scmp.eq.s32.totalorder %s18, 1
    %p41 = por %p39, %p40
    %p43 = scmp.ne.s32.totalorder %s26, %s42
    %p44 = scmp.eq.s32.totalorder %s18, 0
    %p45 = por %p43, %p44
    %s46 = ssub.s32 %s12, %s19
    %p47 = scmp.eq.s32.totalorder %s46, 0
    %s49 = sadd.s32 %s48, 1
    %s50 = scalar_select %p47, %s48, %s49
    %p53 = pneg %p47
    %p54 = scmp.eq.s32.totalorder %s12, 1
    %p55 = por %p53, %p54
    %p56 = scmp.ne.s32.totalorder %s48, %s51
    %p57 = scmp.eq.s32.totalorder %s12, 0
    %p58 = por %p56, %p57
    %p59 = scmp.ne.s32.totalorder %s48, %s51
    %p60 = scmp.eq.s32.totalorder %s17, 1
    %p61 = por %p59, %p60
    %p62 = scmp.ne.s32.totalorder %s51, %s52
    %p63 = scmp.eq.s32.totalorder %s17, 0
    %p64 = por %p62, %p63
    %p65 = scmp.ne.s32.totalorder %s51, %s52
    %p66 = scmp.eq.s32.totalorder %s18, 1
    %p67 = por %p65, %p66
    %p69 = scmp.ne.s32.totalorder %s52, %s68
    %p70 = scmp.eq.s32.totalorder %s18, 0
    %p71 = por %p69, %p70
    %s73 = sadd.s32 %s72, 1
    %p76 = scmp.eq.s32.totalorder %s12, 1
    %p77 = scmp.ne.s32.totalorder %s72, %s74
    %p78 = scmp.eq.s32.totalorder %s12, 0
    %p79 = por %p77, %p78
    %p80 = scmp.ne.s32.totalorder %s72, %s74
    %p81 = scmp.eq.s32.totalorder %s17, 1
    %p82 = por %p80, %p81
    %p83 = scmp.ne.s32.totalorder %s74, %s75
    %p84 = scmp.eq.s32.totalorder %s17, 0
    %p85 = por %p83, %p84
    %p86 = scmp.ne.s32.totalorder %s74, %s75
    %p87 = scmp.eq.s32.totalorder %s18, 1
    %p88 = por %p86, %p87
    %p90 = scmp.ne.s32.totalorder %s75, %s89
    %p91 = scmp.eq.s32.totalorder %s18, 0
    %p92 = por %p90, %p91
    %s94 = sadd.s32 %s93, 1
    %p97 = scmp.eq.s32.totalorder %s12, 1
    %p98 = scmp.ne.s32.totalorder %s93, %s95
    %p99 = scmp.eq.s32.totalorder %s12, 0
    %p100 = por %p98, %p99
    %p101 = scmp.ne.s32.totalorder %s93, %s95
    %p102 = scmp.eq.s32.totalorder %s17, 1
    %p103 = por %p101, %p102
    %p104 = scmp.ne.s32.totalorder %s95, %s96
    %p105 = scmp.eq.s32.totalorder %s17, 0
    %p106 = por %p104, %p105
    %p107 = scmp.ne.s32.totalorder %s95, %s96
    %p108 = scmp.eq.s32.totalorder %s18, 1
    %p109 = por %p107, %p108
    %p111 = scmp.ne.s32.totalorder %s96, %s110
    %p112 = scmp.eq.s32.totalorder %s18, 0
    %p113 = por %p111, %p112
    %s115 = sadd.s32 %s114, 1
    %p118 = scmp.eq.s32.totalorder %s12, 1
    %p119 = scmp.ne.s32.totalorder %s114, %s116
    %p120 = scmp.eq.s32.totalorder %s12, 0
    %p121 = por %p119, %p120
    %p122 = scmp.ne.s32.totalorder %s114, %s116
    %p123 = scmp.eq.s32.totalorder %s17, 1
    %p124 = por %p122, %p123
    %p125 = scmp.ne.s32.totalorder %s116, %s117
    %p126 = scmp.eq.s32.totalorder %s17, 0
    %p127 = por %p125, %p126
    %p128 = scmp.ne.s32.totalorder %s116, %s117
    %p129 = scmp.eq.s32.totalorder %s18, 1
    %p130 = por %p128, %p129
    %p132 = scmp.ne.s32.totalorder %s117, %s131
    %p133 = scmp.eq.s32.totalorder %s18, 0
    %p134 = por %p132, %p133
    %s136 = sadd.s32 %s135, 1
    %p139 = scmp.eq.s32.totalorder %s12, 1
    %p140 = scmp.ne.s32.totalorder %s135, %s137
    %p141 = scmp.eq.s32.totalorder %s12, 0
    %p142 = por %p140, %p141
    %p143 = scmp.ne.s32.totalorder %s135, %s137
    %p144 = scmp.eq.s32.totalorder %s17, 1
    %p145 = por %p143, %p144
    %p146 = scmp.ne.s32.totalorder %s137, %s138
    %p147 = scmp.eq.s32.totalorder %s17, 0
    %p148 = por %p146, %p147
    %p149 = scmp.ne.s32.totalorder %s137, %s138
    %p150 = scmp.eq.s32.totalorder %s18, 1
    %p151 = por %p149, %p150
    %p153 = scmp.ne.s32.totalorder %s138, %s152
    %p154 = scmp.eq.s32.totalorder %s18, 0
    %p155 = por %p153, %p154
    %s156 = ssub.s32 %s12, %s19
    %p157 = scmp.eq.s32.totalorder %s156, 0
    %s159 = sadd.s32 %s158, 1
    %s160 = scalar_select %p157, %s158, %s159
    %p163 = pneg %p157
    %p164 = scmp.eq.s32.totalorder %s12, 1
    %p165 = por %p163, %p164
    %p166 = scmp.ne.s32.totalorder %s158, %s161
    %p167 = scmp.eq.s32.totalorder %s12, 0
    %p168 = por %p166, %p167
    %p169 = scmp.ne.s32.totalorder %s158, %s161
    %p170 = scmp.eq.s32.totalorder %s17, 1
    %p171 = por %p169, %p170
    %p172 = scmp.ne.s32.totalorder %s161, %s162
    %p173 = scmp.eq.s32.totalorder %s17, 0
    %p174 = por %p172, %p173
    %p175 = scmp.ne.s32.totalorder %s161, %s162
    %p176 = scmp.eq.s32.totalorder %s18, 1
    %p177 = por %p175, %p176
    %p179 = scmp.ne.s32.totalorder %s162, %s178
    %p180 = scmp.eq.s32.totalorder %s18, 0
    %p181 = por %p179, %p180
    %p182 = scmp.le.s32.totalorder 1, %s12
    %p183 = scmp.lt.s32.totalorder %s12, 3
    %p184 = pnand %p182, %p183
    %p185 = pneg %p184
    // Predicated region
    $region9: #{basic_block_forward.5} parent=5 // pred_check
      _
    $region10: #{basic_block_forward.5} parent=5 // pred_check_branch
      %187 = sbr.rel (%p184) target = $region12
    $region11: #{basic_block_forward.5} parent=5 // pred_region
      %s188 = ssub.s32 %s12, 1
      // Predicated region
      $region13: #{basic_block_forward.5} parent=11 // pred_check
        %p189 = pneg %p85
      $region14: #{basic_block_forward.5} parent=11 // pred_check_branch
        %191 = sbr.rel (%p189) target = $region16
      $region15: #{basic_block_forward.5} parent=11 // pred_region
        _
      $region16: #{basic_block_forward.5} parent=11 // pred_fallthru
        _
      // Predicated region
      $region17: #{basic_block_forward.5} parent=11 // pred_check
        %p192 = pneg %p106
      $region18: #{basic_block_forward.5} parent=11 // pred_check_branch
        %194 = sbr.rel (%p192) target = $region20
      $region19: #{basic_block_forward.5} parent=11 // pred_region
        _
      $region20: #{basic_block_forward.5} parent=11 // pred_fallthru
        _
      // Predicated region
      $region21: #{basic_block_forward.5} parent=11 // pred_check
        %p195 = pneg %p127
      $region22: #{basic_block_forward.5} parent=11 // pred_check_branch
        %197 = sbr.rel (%p195) target = $region24
      $region23: #{basic_block_forward.5} parent=11 // pred_region
        _
      $region24: #{basic_block_forward.5} parent=11 // pred_fallthru
        _
      // Predicated region
      $region25: #{basic_block_forward.5} parent=11 // pred_check
        %p198 = pneg %p148
      $region26: #{basic_block_forward.5} parent=11 // pred_check_branch
        %200 = sbr.rel (%p198) target = $region28
      $region27: #{basic_block_forward.5} parent=11 // pred_region
        _
      $region28: #{basic_block_forward.5} parent=11 // pred_fallthru
        _
    $region12: #{basic_block_forward.5} parent=5 // pred_fallthru
      _
    %p201 = scmp.lt.s32.totalorder %s12, 2
    // Predicated region
    $region29: #{basic_block_forward.5} parent=5 // pred_check
      %p202 = pneg %p201
    $region30: #{basic_block_forward.5} parent=5 // pred_check_branch
      %204 = sbr.rel (%p202) target = $region32
    $region31: #{basic_block_forward.5} parent=5 // pred_region
      // Predicated region
      $region33: #{basic_block_forward.5} parent=31 // pred_check
        %p205 = pneg %p32
      $region34: #{basic_block_forward.5} parent=31 // pred_check_branch
        %207 = sbr.rel (%p205) target = $region36
      $region35: #{basic_block_forward.5} parent=31 // pred_region
        %p208 = scmp.lt.s32.totalorder %s12, 1
        %s209 = scalar_select %p208, %s12, 1
        %s210 = smul.addr %s209, 8
        %s211 = smul.addr %s210, 4
        %s212 = scalar_lea.vmem %s0, %s211
      $region36: #{basic_block_forward.5} parent=31 // pred_fallthru
        _
      // Predicated region
      $region37: #{basic_block_forward.5} parent=31 // pred_check
        %p213 = pneg %p58
      $region38: #{basic_block_forward.5} parent=31 // pred_check_branch
        %215 = sbr.rel (%p213) target = $region40
      $region39: #{basic_block_forward.5} parent=31 // pred_region
        %p216 = scmp.lt.s32.totalorder %s12, 1
        %s217 = scalar_select %p216, %s12, 1
        %s218 = smul.addr %s217, 8
        %s219 = smul.addr %s218, 4
        %s220 = scalar_lea.vmem %s1, %s219
      $region40: #{basic_block_forward.5} parent=31 // pred_fallthru
        _
    $region32: #{basic_block_forward.5} parent=5 // pred_fallthru
      _
    %p221 = scmp.le.s32.totalorder 1, %s12
    %p222 = scmp.lt.s32.totalorder %s12, 3
    %p223 = pnand %p221, %p222
    %p224 = pneg %p223
    // Predicated region
    $region41: #{basic_block_forward.5} parent=5 // pred_check
      _
    $region42: #{basic_block_forward.5} parent=5 // pred_check_branch
      %226 = sbr.rel (%p223) target = $region44
    $region43: #{basic_block_forward.5} parent=5 // pred_region
      %s227 = ssub.s32 %s12, 1
      %p228 = scmp.lt.s32.totalorder %s17, 1
      %s229 = scalar_select %p228, %s17, 1
      %s230 = smul.addr %s229, 8
      %s231 = smul.addr %s230, 4
      %s232 = scalar_lea.vmem %s0, %s231
      %p233 = pneg %p38
      %p234 = pneg %p35
      %p235 = scmp.lt.s32.totalorder %s17, 1
      %s236 = scalar_select %p235, %s17, 1
      %s237 = smul.addr %s236, 8
      %s238 = smul.addr %s237, 4
      %s239 = scalar_lea.vmem %s1, %s238
      %p240 = pneg %p64
      %p241 = pneg %p61
      %p242 = pneg %p85
      %p243 = pneg %p82
      %p244 = pneg %p106
      %p245 = pneg %p103
      %p246 = pneg %p127
      %p247 = pneg %p124
      %p248 = pneg %p148
      %p249 = pneg %p145
      %p250 = pneg %p174
      %p251 = pneg %p171
      %p252 = scmp.lt.s32.totalorder %s17, 1
      %s253 = scalar_select %p252, %s17, 1
      %s254 = smul.addr %s253, 8
      %s255 = smul.addr %s254, 4
      %s256 = scalar_lea.vmem %s6, %s255
      %p257 = scmp.lt.s32.totalorder %s17, 1
      %s258 = scalar_select %p257, %s17, 1
      %s259 = smul.addr %s258, 8
      %s260 = smul.addr %s259, 4
      %s261 = scalar_lea.vmem %s0, %s260
      %p262 = scmp.lt.s32.totalorder %s17, 1
      %s263 = scalar_select %p262, %s17, 1
      %s264 = smul.addr %s263, 8
      %s265 = smul.addr %s264, 4
      %s266 = scalar_lea.vmem %s1, %s265
      %p267 = scmp.lt.s32.totalorder %s17, 1
      %s268 = scalar_select %p267, %s17, 1
      %s269 = smul.addr %s268, 8
      %s270 = smul.addr %s269, 4
      %s271 = scalar_lea.vmem %s6, %s270
      %v273 = vld [vmem:[%s261] sm:$0xf]
      %v274 = vld [vmem:[%s261 + $0x4] sm:$0xf]
      %v275 = vld [vmem:[%s261 + $0x8] sm:$0xf]
      %v276 = vld [vmem:[%s261 + $0xc] sm:$0xf]
      %v277 = vld [vmem:[%s261 + $0x10] sm:$0xf]
      %v278 = vld [vmem:[%s261 + $0x14] sm:$0xf]
      %v279 = vld [vmem:[%s261 + $0x18] sm:$0xf]
      %v280 = vld [vmem:[%s261 + $0x1c] sm:$0xf]
      %281 = vst [vmem:[#allocation2] sm:$0xf] 0
      %282 = vst [vmem:[#allocation2 + $0x4] sm:$0xf] 0
      %283 = vst [vmem:[#allocation2 + $0x8] sm:$0xf] 0
      %284 = vst [vmem:[#allocation2 + $0xc] sm:$0xf] 0
      %285 = vst [vmem:[#allocation2 + $0x10] sm:$0xf] 0
      %286 = vst [vmem:[#allocation2 + $0x14] sm:$0xf] 0
      %287 = vst [vmem:[#allocation2 + $0x18] sm:$0xf] 0
      %288 = vst [vmem:[#allocation2 + $0x1c] sm:$0xf] 0
      %289 = vst [vmem:[#allocation2 + $0x20] sm:$0xf] 0
      %290 = vst [vmem:[#allocation2 + $0x24] sm:$0xf] 0
      %291 = vst [vmem:[#allocation2 + $0x28] sm:$0xf] 0
      %292 = vst [vmem:[#allocation2 + $0x2c] sm:$0xf] 0
      %293 = vst [vmem:[#allocation2 + $0x30] sm:$0xf] 0
      %294 = vst [vmem:[#allocation2 + $0x34] sm:$0xf] 0
      %295 = vst [vmem:[#allocation2 + $0x38] sm:$0xf] 0
      %296 = vst [vmem:[#allocation2 + $0x3c] sm:$0xf] 0
      %297 = vst [vmem:[#allocation2 + $0x40] sm:$0xf] 0
      %298 = vst [vmem:[#allocation2 + $0x44] sm:$0xf] 0
      %299 = vst [vmem:[#allocation2 + $0x48] sm:$0xf] 0
      %300 = vst [vmem:[#allocation2 + $0x4c] sm:$0xf] 0
      %301 = vst [vmem:[#allocation2 + $0x50] sm:$0xf] 0
      %302 = vst [vmem:[#allocation2 + $0x54] sm:$0xf] 0
      %303 = vst [vmem:[#allocation2 + $0x58] sm:$0xf] 0
      %304 = vst [vmem:[#allocation2 + $0x5c] sm:$0xf] 0
      %305 = vst [vmem:[#allocation2 + $0x60] sm:$0xf] 0
      %306 = vst [vmem:[#allocation2 + $0x64] sm:$0xf] 0
      %307 = vst [vmem:[#allocation2 + $0x68] sm:$0xf] 0
      %308 = vst [vmem:[#allocation2 + $0x6c] sm:$0xf] 0
      %309 = vst [vmem:[#allocation2 + $0x70] sm:$0xf] 0
      %310 = vst [vmem:[#allocation2 + $0x74] sm:$0xf] 0
      %s311 = scalar_lea.vmem [#allocation2], 12
      %312 = vst [vmem:[%s311 + $0x4] sm:$0xf] %v273
      %313 = vst [vmem:[%s311 + $0x10] sm:$0xf] %v274
      %314 = vst [vmem:[%s311 + $0x1c] sm:$0xf] %v275
      %315 = vst [vmem:[%s311 + $0x28] sm:$0xf] %v276
      %316 = vst [vmem:[%s311 + $0x34] sm:$0xf] %v277
      %317 = vst [vmem:[%s311 + $0x40] sm:$0xf] %v278
      %318 = vst [vmem:[%s311 + $0x4c] sm:$0xf] %v279
      %319 = vst [vmem:[%s311 + $0x58] sm:$0xf] %v280
      %v320 = vld [vmem:[#allocation2] sm:$0x8]
      %v321 = vld [vmem:[#allocation2 + $0x4] sm:$0xf]
      %v322 = vld [vmem:[#allocation2 + $0xc] sm:$0x8]
      %v323 = vld [vmem:[#allocation2 + $0x10] sm:$0xf]
      %v324 = vld [vmem:[#allocation2 + $0x18] sm:$0x8]
      %v325 = vld [vmem:[#allocation2 + $0x1c] sm:$0xf]
      %v326 = vld [vmem:[#allocation2 + $0x24] sm:$0x8]
      %v327 = vld [vmem:[#allocation2 + $0x28] sm:$0xf]
      %v328 = vld [vmem:[#allocation2 + $0x30] sm:$0x8]
      %v329 = vld [vmem:[#allocation2 + $0x34] sm:$0xf]
      %v330 = vld [vmem:[#allocation2 + $0x3c] sm:$0x8]
      %v331 = vld [vmem:[#allocation2 + $0x40] sm:$0xf]
      %v332 = vld [vmem:[#allocation2 + $0x48] sm:$0x8]
      %v333 = vld [vmem:[#allocation2 + $0x4c] sm:$0xf]
      %v334 = vld [vmem:[#allocation2 + $0x54] sm:$0x8]
      %v335 = vld [vmem:[#allocation2 + $0x58] sm:$0xf]
      %vm336 = vsmask.f32 256
      %vm337 = vsmask.f32 4368
      %vm338 = vmor %vm336, %vm337
      %v340 = vshrl.u32 %v320, 16
      %v342 = vrot.slane %v340, 7
      %v343 = vrot.slane %v342, 4
      %v345 = vshrl.u32 %v321, 16
      %v347 = vrot.slane %v345, 7
      %v348 = vshll.u32 %v321, 16
      %v350 = vor.u32 %v347, %v348
      %v351 = vsel %vm338, %v343, %v350
      %v353 = vshrl.u32 %v322, 16
      %v355 = vrot.slane %v353, 7
      %v356 = vrot.slane %v355, 4
      %v358 = vshrl.u32 %v323, 16
      %v360 = vrot.slane %v358, 7
      %v361 = vshll.u32 %v323, 16
      %v363 = vor.u32 %v360, %v361
      %v364 = vsel %vm338, %v356, %v363
      %v366 = vshrl.u32 %v324, 16
      %v368 = vrot.slane %v366, 7
      %v369 = vrot.slane %v368, 4
      %v371 = vshrl.u32 %v325, 16
      %v373 = vrot.slane %v371, 7
      %v374 = vshll.u32 %v325, 16
      %v376 = vor.u32 %v373, %v374
      %v377 = vsel %vm338, %v369, %v376
      %v379 = vshrl.u32 %v326, 16
      %v381 = vrot.slane %v379, 7
      %v382 = vrot.slane %v381, 4
      %v384 = vshrl.u32 %v327, 16
      %v386 = vrot.slane %v384, 7
      %v387 = vshll.u32 %v327, 16
      %v389 = vor.u32 %v386, %v387
      %v390 = vsel %vm338, %v382, %v389
      %v392 = vshrl.u32 %v328, 16
      %v394 = vrot.slane %v392, 7
      %v395 = vrot.slane %v394, 4
      %v397 = vshrl.u32 %v329, 16
      %v399 = vrot.slane %v397, 7
      %v400 = vshll.u32 %v329, 16
      %v402 = vor.u32 %v399, %v400
      %v403 = vsel %vm338, %v395, %v402
      %v405 = vshrl.u32 %v330, 16
      %v407 = vrot.slane %v405, 7
      %v408 = vrot.slane %v407, 4
      %v410 = vshrl.u32 %v331, 16
      %v412 = vrot.slane %v410, 7
      %v413 = vshll.u32 %v331, 16
      %v415 = vor.u32 %v412, %v413
      %v416 = vsel %vm338, %v408, %v415
      %v418 = vshrl.u32 %v332, 16
      %v420 = vrot.slane %v418, 7
      %v421 = vrot.slane %v420, 4
      %v423 = vshrl.u32 %v333, 16
      %v425 = vrot.slane %v423, 7
      %v426 = vshll.u32 %v333, 16
      %v428 = vor.u32 %v425, %v426
      %v429 = vsel %vm338, %v421, %v428
      %v431 = vshrl.u32 %v334, 16
      %v433 = vrot.slane %v431, 7
      %v434 = vrot.slane %v433, 4
      %v436 = vshrl.u32 %v335, 16
      %v438 = vrot.slane %v436, 7
      %v439 = vshll.u32 %v335, 16
      %v441 = vor.u32 %v438, %v439
      %v442 = vsel %vm338, %v434, %v441
      %v443 = vld [vmem:[%s4] sm:$0xf]
      %v444 = vld [vmem:[%s4 + $0x4] sm:$0xf]
      %v445 = vld [vmem:[%s4 + $0x8] sm:$0xf]
      %v446 = vld [vmem:[%s4 + $0xc] sm:$0xf]
      %v447 = vld [vmem:[%s4 + $0x10] sm:$0xf]
      %v448 = vld [vmem:[%s4 + $0x14] sm:$0xf]
      %v449 = vld [vmem:[%s4 + $0x18] sm:$0xf]
      %v450 = vld [vmem:[%s4 + $0x1c] sm:$0xf]
      %v451 = vld [vmem:[%s4 + $0x20] sm:$0xf]
      %v452 = vld [vmem:[%s4 + $0x24] sm:$0xf]
      %v453 = vld [vmem:[%s4 + $0x28] sm:$0xf]
      %v454 = vld [vmem:[%s4 + $0x2c] sm:$0xf]
      %v455 = vld [vmem:[%s4 + $0x30] sm:$0xf]
      %v456 = vld [vmem:[%s4 + $0x34] sm:$0xf]
      %v457 = vld [vmem:[%s4 + $0x38] sm:$0xf]
      %v458 = vld [vmem:[%s4 + $0x3c] sm:$0xf]
      %s459 = scalar_lea.vmem %s4, 64
      %v460 = vld [vmem:[%s459] sm:$0xf]
      %v461 = vld [vmem:[%s459 + $0x4] sm:$0xf]
      %v462 = vld [vmem:[%s459 + $0x8] sm:$0xf]
      %v463 = vld [vmem:[%s459 + $0xc] sm:$0xf]
      %v464 = vld [vmem:[%s459 + $0x10] sm:$0xf]
      %v465 = vld [vmem:[%s459 + $0x14] sm:$0xf]
      %v466 = vld [vmem:[%s459 + $0x18] sm:$0xf]
      %v467 = vld [vmem:[%s459 + $0x1c] sm:$0xf]
      %v468 = vld [vmem:[%s459 + $0x20] sm:$0xf]
      %v469 = vld [vmem:[%s459 + $0x24] sm:$0xf]
      %v470 = vld [vmem:[%s459 + $0x28] sm:$0xf]
      %v471 = vld [vmem:[%s459 + $0x2c] sm:$0xf]
      %v472 = vld [vmem:[%s459 + $0x30] sm:$0xf]
      %v473 = vld [vmem:[%s459 + $0x34] sm:$0xf]
      %v474 = vld [vmem:[%s459 + $0x38] sm:$0xf]
      %v475 = vld [vmem:[%s459 + $0x3c] sm:$0xf]
      %v484 = vunpack.c.l.b16 %v321
      %v485 = vunpack.c.l.b16 %v323
      %v486 = vunpack.c.l.b16 %v325
      %v487 = vunpack.c.l.b16 %v327
      %v488 = vunpack.c.l.b16 %v329
      %v489 = vunpack.c.l.b16 %v331
      %v490 = vunpack.c.l.b16 %v333
      %v491 = vunpack.c.l.b16 %v335
      %v492 = vpack.c.b16 %v485, %v484
      %v493 = vpack.c.b16 %v487, %v486
      %v494 = vpack.c.b16 %v489, %v488
      %v495 = vpack.c.b16 %v491, %v490
      %v516 = vunpack.c.l.b16 %v460
      %v517 = vunpack.c.l.b16 %v461
      %v518 = vunpack.c.l.b16 %v462
      %v519 = vunpack.c.l.b16 %v463
      %v520 = vunpack.c.l.b16 %v464
      %v521 = vunpack.c.l.b16 %v465
      %v522 = vunpack.c.l.b16 %v466
      %v523 = vunpack.c.l.b16 %v467
      %v524 = vunpack.c.l.b16 %v468
      %v525 = vunpack.c.l.b16 %v469
      %v526 = vunpack.c.l.b16 %v470
      %v527 = vunpack.c.l.b16 %v471
      %v528 = vunpack.c.l.b16 %v472
      %v529 = vunpack.c.l.b16 %v473
      %v530 = vunpack.c.l.b16 %v474
      %v531 = vunpack.c.l.b16 %v475
      %v532 = vpack.c.b16 %v517, %v516
      %v533 = vpack.c.b16 %v519, %v518
      %v534 = vpack.c.b16 %v521, %v520
      %v535 = vpack.c.b16 %v523, %v522
      %v536 = vpack.c.b16 %v525, %v524
      %v537 = vpack.c.b16 %v527, %v526
      %v538 = vpack.c.b16 %v529, %v528
      %v539 = vpack.c.b16 %v531, %v530
      %548 = vmatprep.subr.bf16.mxu0 0
      %549 = vmatpush1.bf16.msra.mxu0 %v539
      %550 = vmatprep.subr.bf16.mxu0 0
      %551 = vmatpush1.bf16.msra.mxu0 %v538
      %552 = vmatprep.subr.bf16.mxu0 0
      %553 = vmatpush1.bf16.msra.mxu0 %v537
      %554 = vmatprep.subr.bf16.mxu0 0
      %555 = vmatpush1.bf16.msra.mxu0 %v536
      %556 = vmatprep.subr.bf16.mxu0 0
      %557 = vmatpush1.bf16.msra.mxu0 %v535
      %558 = vmatprep.subr.bf16.mxu0 0
      %559 = vmatpush1.bf16.msra.mxu0 %v534
      %560 = vmatprep.subr.bf16.mxu0 0
      %561 = vmatpush1.bf16.msra.mxu0 %v533
      %562 = vmatprep.subr.bf16.mxu0 0
      %563 = vmatpush1.bf16.msra.mxu0 %v532
      %564 = vmatprep.subr.bf16.mxu0 0
      %565 = vmatpush2.bf16.msra.mxu0 0
      %566 = vmatprep.subr.bf16.mxu0 0
      %567 = vmatpush2.bf16.msra.mxu0 0
      %568 = vmatprep.subr.bf16.mxu0 0
      %569 = vmatpush2.bf16.msra.mxu0 0
      %570 = vmatprep.subr.bf16.mxu0 0
      %571 = vmatpush2.bf16.msra.mxu0 0
      %572 = vmatprep.subr.bf16.mxu0 0
      %573 = vmatpush2.bf16.msra.mxu0 0
      %574 = vmatprep.subr.bf16.mxu0 0
      %575 = vmatpush2.bf16.msra.mxu0 0
      %576 = vmatprep.subr.bf16.mxu0 0
      %577 = vmatpush2.bf16.msra.mxu0 0
      %578 = vmatprep.subr.bf16.mxu0 0
      %579 = vmatpush2.bf16.msra.mxu0 0
      %580 = vmatprep.mubr.bf16.mxu0 0
      %581 = vmatmul.mubr.bf16.gmra.mxu0 %v492
      %v582 = vpop.f32.mrf.mxu0
      %v583 = vadd.f32 0.0, %v582
      %v584 = vpop.f32.mrf.mxu0
      %v585 = vpop.f32.mrf.mxu0
      %v586 = vadd.f32 0.0, %v585
      %v587 = vpop.f32.mrf.mxu0
      %588 = vmatprep.mubr.bf16.mxu0 0
      %589 = vmatmul.mubr.bf16.gmra.mxu0 %v493
      %v590 = vpop.f32.mrf.mxu0
      %v591 = vadd.f32 0.0, %v590
      %v592 = vpop.f32.mrf.mxu0
      %v593 = vpop.f32.mrf.mxu0
      %v594 = vadd.f32 0.0, %v593
      %v595 = vpop.f32.mrf.mxu0
      %596 = vmatprep.mubr.bf16.mxu0 0
      %597 = vmatmul.mubr.bf16.gmra.mxu0 %v494
      %v598 = vpop.f32.mrf.mxu0
      %v599 = vadd.f32 0.0, %v598
      %v600 = vpop.f32.mrf.mxu0
      %v601 = vpop.f32.mrf.mxu0
      %v602 = vadd.f32 0.0, %v601
      %v603 = vpop.f32.mrf.mxu0
      %604 = vmatprep.mubr.bf16.mxu0 0
      %605 = vmatmul.mubr.bf16.gmra.mxu0 %v495
      %v606 = vpop.f32.mrf.mxu0
      %v607 = vadd.f32 0.0, %v606
      %v608 = vpop.f32.mrf.mxu0
      %v609 = vpop.f32.mrf.mxu0
      %v610 = vadd.f32 0.0, %v609
      %v611 = vpop.f32.mrf.mxu0
      %612 = vdwg.mxu0
      %v613 = vunpack.c.l.b16 %v351
      %v614 = vunpack.c.l.b16 %v364
      %v615 = vunpack.c.l.b16 %v377
      %v616 = vunpack.c.l.b16 %v390
      %v617 = vunpack.c.l.b16 %v403
      %v618 = vunpack.c.l.b16 %v416
      %v619 = vunpack.c.l.b16 %v429
      %v620 = vunpack.c.l.b16 %v442
      %v621 = vpack.c.b16 %v614, %v613
      %v622 = vpack.c.b16 %v616, %v615
      %v623 = vpack.c.b16 %v618, %v617
      %v624 = vpack.c.b16 %v620, %v619
      %v645 = vunpack.c.l.b16 %v443
      %v646 = vunpack.c.l.b16 %v444
      %v647 = vunpack.c.l.b16 %v445
      %v648 = vunpack.c.l.b16 %v446
      %v649 = vunpack.c.l.b16 %v447
      %v650 = vunpack.c.l.b16 %v448
      %v651 = vunpack.c.l.b16 %v449
      %v652 = vunpack.c.l.b16 %v450
      %v653 = vunpack.c.l.b16 %v451
      %v654 = vunpack.c.l.b16 %v452
      %v655 = vunpack.c.l.b16 %v453
      %v656 = vunpack.c.l.b16 %v454
      %v657 = vunpack.c.l.b16 %v455
      %v658 = vunpack.c.l.b16 %v456
      %v659 = vunpack.c.l.b16 %v457
      %v660 = vunpack.c.l.b16 %v458
      %v661 = vpack.c.b16 %v646, %v645
      %v662 = vpack.c.b16 %v648, %v647
      %v663 = vpack.c.b16 %v650, %v649
      %v664 = vpack.c.b16 %v652, %v651
      %v665 = vpack.c.b16 %v654, %v653
      %v666 = vpack.c.b16 %v656, %v655
      %v667 = vpack.c.b16 %v658, %v657
      %v668 = vpack.c.b16 %v660, %v659
      %677 = vmatprep.subr.bf16.mxu0 0
      %678 = vmatpush1.bf16.msra.mxu0 %v668
      %679 = vmatprep.subr.bf16.mxu0 0
      %680 = vmatpush1.bf16.msra.mxu0 %v667
      %681 = vmatprep.subr.bf16.mxu0 0
      %682 = vmatpush1.bf16.msra.mxu0 %v666
      %683 = vmatprep.subr.bf16.mxu0 0
      %684 = vmatpush1.bf16.msra.mxu0 %v665
      %685 = vmatprep.subr.bf16.mxu0 0
      %686 = vmatpush1.bf16.msra.mxu0 %v664
      %687 = vmatprep.subr.bf16.mxu0 0
      %688 = vmatpush1.bf16.msra.mxu0 %v663
      %689 = vmatprep.subr.bf16.mxu0 0
      %690 = vmatpush1.bf16.msra.mxu0 %v662
      %691 = vmatprep.subr.bf16.mxu0 0
      %692 = vmatpush1.bf16.msra.mxu0 %v661
      %693 = vmatprep.subr.bf16.mxu0 0
      %694 = vmatpush2.bf16.msra.mxu0 0
      %695 = vmatprep.subr.bf16.mxu0 0
      %696 = vmatpush2.bf16.msra.mxu0 0
      %697 = vmatprep.subr.bf16.mxu0 0
      %698 = vmatpush2.bf16.msra.mxu0 0
      %699 = vmatprep.subr.bf16.mxu0 0
      %700 = vmatpush2.bf16.msra.mxu0 0
      %701 = vmatprep.subr.bf16.mxu0 0
      %702 = vmatpush2.bf16.msra.mxu0 0
      %703 = vmatprep.subr.bf16.mxu0 0
      %704 = vmatpush2.bf16.msra.mxu0 0
      %705 = vmatprep.subr.bf16.mxu0 0
      %706 = vmatpush2.bf16.msra.mxu0 0
      %707 = vmatprep.subr.bf16.mxu0 0
      %708 = vmatpush2.bf16.msra.mxu0 0
      %709 = vmatprep.mubr.bf16.mxu0 0
      %710 = vmatmul.mubr.bf16.gmra.mxu0 %v621
      %v711 = vpop.f32.mrf.mxu0
      %v712 = vadd.f32 %v583, %v711
      %v713 = vpop.f32.mrf.mxu0
      %v714 = vpop.f32.mrf.mxu0
      %v715 = vadd.f32 %v586, %v714
      %v716 = vpop.f32.mrf.mxu0
      %717 = vmatprep.mubr.bf16.mxu0 0
      %718 = vmatmul.mubr.bf16.gmra.mxu0 %v622
      %v719 = vpop.f32.mrf.mxu0
      %v720 = vadd.f32 %v591, %v719
      %v721 = vpop.f32.mrf.mxu0
      %v722 = vpop.f32.mrf.mxu0
      %v723 = vadd.f32 %v594, %v722
      %v724 = vpop.f32.mrf.mxu0
      %725 = vmatprep.mubr.bf16.mxu0 0
      %726 = vmatmul.mubr.bf16.gmra.mxu0 %v623
      %v727 = vpop.f32.mrf.mxu0
      %v728 = vadd.f32 %v599, %v727
      %v729 = vpop.f32.mrf.mxu0
      %v730 = vpop.f32.mrf.mxu0
      %v731 = vadd.f32 %v602, %v730
      %v732 = vpop.f32.mrf.mxu0
      %733 = vmatprep.mubr.bf16.mxu0 0
      %734 = vmatmul.mubr.bf16.gmra.mxu0 %v624
      %v735 = vpop.f32.mrf.mxu0
      %v736 = vadd.f32 %v607, %v735
      %v737 = vpop.f32.mrf.mxu0
      %v738 = vpop.f32.mrf.mxu0
      %v739 = vadd.f32 %v610, %v738
      %v740 = vpop.f32.mrf.mxu0
      %741 = vdwg.mxu0
      %v742 = vld [vmem:[#allocation2 + $0x4] sm:$0xf]
      %v743 = vld [vmem:[#allocation2 + $0x8] sm:$0x1]
      %v744 = vld [vmem:[#allocation2 + $0x10] sm:$0xf]
      %v745 = vld [vmem:[#allocation2 + $0x14] sm:$0x1]
      %v746 = vld [vmem:[#allocation2 + $0x1c] sm:$0xf]
      %v747 = vld [vmem:[#allocation2 + $0x20] sm:$0x1]
      %v748 = vld [vmem:[#allocation2 + $0x28] sm:$0xf]
      %v749 = vld [vmem:[#allocation2 + $0x2c] sm:$0x1]
      %v750 = vld [vmem:[#allocation2 + $0x34] sm:$0xf]
      %v751 = vld [vmem:[#allocation2 + $0x38] sm:$0x1]
      %v752 = vld [vmem:[#allocation2 + $0x40] sm:$0xf]
      %v753 = vld [vmem:[#allocation2 + $0x44] sm:$0x1]
      %v754 = vld [vmem:[#allocation2 + $0x4c] sm:$0xf]
      %v755 = vld [vmem:[#allocation2 + $0x50] sm:$0x1]
      %v756 = vld [vmem:[#allocation2 + $0x58] sm:$0xf]
      %v757 = vld [vmem:[#allocation2 + $0x5c] sm:$0x1]
      %vm758 = vsmask.f32 3328
      %vm759 = vsmask.f32 7440
      %vm760 = vmor %vm758, %vm759
      %v762 = vshrl.u32 %v742, 16
      %v764 = vrot.slane %v762, 4
      %v765 = vshll.u32 %v742, 16
      %v767 = vrot.slane %v765, 5
      %v768 = vor.u32 %v764, %v767
      %v769 = vrot.slane %v768, 4
      %v771 = vshll.u32 %v743, 16
      %v773 = vrot.slane %v771, 5
      %v774 = vsel %vm760, %v769, %v773
      %v776 = vshrl.u32 %v744, 16
      %v778 = vrot.slane %v776, 4
      %v779 = vshll.u32 %v744, 16
      %v781 = vrot.slane %v779, 5
      %v782 = vor.u32 %v778, %v781
      %v783 = vrot.slane %v782, 4
      %v785 = vshll.u32 %v745, 16
      %v787 = vrot.slane %v785, 5
      %v788 = vsel %vm760, %v783, %v787
      %v790 = vshrl.u32 %v746, 16
      %v792 = vrot.slane %v790, 4
      %v793 = vshll.u32 %v746, 16
      %v795 = vrot.slane %v793, 5
      %v796 = vor.u32 %v792, %v795
      %v797 = vrot.slane %v796, 4
      %v799 = vshll.u32 %v747, 16
      %v801 = vrot.slane %v799, 5
      %v802 = vsel %vm760, %v797, %v801
      %v804 = vshrl.u32 %v748, 16
      %v806 = vrot.slane %v804, 4
      %v807 = vshll.u32 %v748, 16
      %v809 = vrot.slane %v807, 5
      %v810 = vor.u32 %v806, %v809
      %v811 = vrot.slane %v810, 4
      %v813 = vshll.u32 %v749, 16
      %v815 = vrot.slane %v813, 5
      %v816 = vsel %vm760, %v811, %v815
      %v818 = vshrl.u32 %v750, 16
      %v820 = vrot.slane %v818, 4
      %v821 = vshll.u32 %v750, 16
      %v823 = vrot.slane %v821, 5
      %v824 = vor.u32 %v820, %v823
      %v825 = vrot.slane %v824, 4
      %v827 = vshll.u32 %v751, 16
      %v829 = vrot.slane %v827, 5
      %v830 = vsel %vm760, %v825, %v829
      %v832 = vshrl.u32 %v752, 16
      %v834 = vrot.slane %v832, 4
      %v835 = vshll.u32 %v752, 16
      %v837 = vrot.slane %v835, 5
      %v838 = vor.u32 %v834, %v837
      %v839 = vrot.slane %v838, 4
      %v841 = vshll.u32 %v753, 16
      %v843 = vrot.slane %v841, 5
      %v844 = vsel %vm760, %v839, %v843
      %v846 = vshrl.u32 %v754, 16
      %v848 = vrot.slane %v846, 4
      %v849 = vshll.u32 %v754, 16
      %v851 = vrot.slane %v849, 5
      %v852 = vor.u32 %v848, %v851
      %v853 = vrot.slane %v852, 4
      %v855 = vshll.u32 %v755, 16
      %v857 = vrot.slane %v855, 5
      %v858 = vsel %vm760, %v853, %v857
      %v860 = vshrl.u32 %v756, 16
      %v862 = vrot.slane %v860, 4
      %v863 = vshll.u32 %v756, 16
      %v865 = vrot.slane %v863, 5
      %v866 = vor.u32 %v862, %v865
      %v867 = vrot.slane %v866, 4
      %v869 = vshll.u32 %v757, 16
      %v871 = vrot.slane %v869, 5
      %v872 = vsel %vm760, %v867, %v871
      %s873 = scalar_lea.vmem %s4, 128
      %v874 = vld [vmem:[%s873] sm:$0xf]
      %v875 = vld [vmem:[%s873 + $0x4] sm:$0xf]
      %v876 = vld [vmem:[%s873 + $0x8] sm:$0xf]
      %v877 = vld [vmem:[%s873 + $0xc] sm:$0xf]
      %v878 = vld [vmem:[%s873 + $0x10] sm:$0xf]
      %v879 = vld [vmem:[%s873 + $0x14] sm:$0xf]
      %v880 = vld [vmem:[%s873 + $0x18] sm:$0xf]
      %v881 = vld [vmem:[%s873 + $0x1c] sm:$0xf]
      %v882 = vld [vmem:[%s873 + $0x20] sm:$0xf]
      %v883 = vld [vmem:[%s873 + $0x24] sm:$0xf]
      %v884 = vld [vmem:[%s873 + $0x28] sm:$0xf]
      %v885 = vld [vmem:[%s873 + $0x2c] sm:$0xf]
      %v886 = vld [vmem:[%s873 + $0x30] sm:$0xf]
      %v887 = vld [vmem:[%s873 + $0x34] sm:$0xf]
      %v888 = vld [vmem:[%s873 + $0x38] sm:$0xf]
      %v889 = vld [vmem:[%s873 + $0x3c] sm:$0xf]
      %v890 = vunpack.c.l.b16 %v774
      %v891 = vunpack.c.l.b16 %v788
      %v892 = vunpack.c.l.b16 %v802
      %v893 = vunpack.c.l.b16 %v816
      %v894 = vunpack.c.l.b16 %v830
      %v895 = vunpack.c.l.b16 %v844
      %v896 = vunpack.c.l.b16 %v858
      %v897 = vunpack.c.l.b16 %v872
      %v898 = vpack.c.b16 %v891, %v890
      %v899 = vpack.c.b16 %v893, %v892
      %v900 = vpack.c.b16 %v895, %v894
      %v901 = vpack.c.b16 %v897, %v896
      %v922 = vunpack.c.l.b16 %v874
      %v923 = vunpack.c.l.b16 %v875
      %v924 = vunpack.c.l.b16 %v876
      %v925 = vunpack.c.l.b16 %v877
      %v926 = vunpack.c.l.b16 %v878
      %v927 = vunpack.c.l.b16 %v879
      %v928 = vunpack.c.l.b16 %v880
      %v929 = vunpack.c.l.b16 %v881
      %v930 = vunpack.c.l.b16 %v882
      %v931 = vunpack.c.l.b16 %v883
      %v932 = vunpack.c.l.b16 %v884
      %v933 = vunpack.c.l.b16 %v885
      %v934 = vunpack.c.l.b16 %v886
      %v935 = vunpack.c.l.b16 %v887
      %v936 = vunpack.c.l.b16 %v888
      %v937 = vunpack.c.l.b16 %v889
      %v938 = vpack.c.b16 %v923, %v922
      %v939 = vpack.c.b16 %v925, %v924
      %v940 = vpack.c.b16 %v927, %v926
      %v941 = vpack.c.b16 %v929, %v928
      %v942 = vpack.c.b16 %v931, %v930
      %v943 = vpack.c.b16 %v933, %v932
      %v944 = vpack.c.b16 %v935, %v934
      %v945 = vpack.c.b16 %v937, %v936
      %954 = vmatprep.subr.bf16.mxu0 0
      %955 = vmatpush1.bf16.msra.mxu0 %v945
      %956 = vmatprep.subr.bf16.mxu0 0
      %957 = vmatpush1.bf16.msra.mxu0 %v944
      %958 = vmatprep.subr.bf16.mxu0 0
      %959 = vmatpush1.bf16.msra.mxu0 %v943
      %960 = vmatprep.subr.bf16.mxu0 0
      %961 = vmatpush1.bf16.msra.mxu0 %v942
      %962 = vmatprep.subr.bf16.mxu0 0
      %963 = vmatpush1.bf16.msra.mxu0 %v941
      %964 = vmatprep.subr.bf16.mxu0 0
      %965 = vmatpush1.bf16.msra.mxu0 %v940
      %966 = vmatprep.subr.bf16.mxu0 0
      %967 = vmatpush1.bf16.msra.mxu0 %v939
      %968 = vmatprep.subr.bf16.mxu0 0
      %969 = vmatpush1.bf16.msra.mxu0 %v938
      %970 = vmatprep.subr.bf16.mxu0 0
      %971 = vmatpush2.bf16.msra.mxu0 0
      %972 = vmatprep.subr.bf16.mxu0 0
      %973 = vmatpush2.bf16.msra.mxu0 0
      %974 = vmatprep.subr.bf16.mxu0 0
      %975 = vmatpush2.bf16.msra.mxu0 0
      %976 = vmatprep.subr.bf16.mxu0 0
      %977 = vmatpush2.bf16.msra.mxu0 0
      %978 = vmatprep.subr.bf16.mxu0 0
      %979 = vmatpush2.bf16.msra.mxu0 0
      %980 = vmatprep.subr.bf16.mxu0 0
      %981 = vmatpush2.bf16.msra.mxu0 0
      %982 = vmatprep.subr.bf16.mxu0 0
      %983 = vmatpush2.bf16.msra.mxu0 0
      %984 = vmatprep.subr.bf16.mxu0 0
      %985 = vmatpush2.bf16.msra.mxu0 0
      %986 = vmatprep.mubr.bf16.mxu0 0
      %987 = vmatmul.mubr.bf16.gmra.mxu0 %v898
      %v988 = vpop.f32.mrf.mxu0
      %v989 = vadd.f32 0.0, %v988
      %v990 = vpop.f32.mrf.mxu0
      %v991 = vpop.f32.mrf.mxu0
      %v992 = vadd.f32 0.0, %v991
      %v993 = vpop.f32.mrf.mxu0
      %994 = vmatprep.mubr.bf16.mxu0 0
      %995 = vmatmul.mubr.bf16.gmra.mxu0 %v899
      %v996 = vpop.f32.mrf.mxu0
      %v997 = vadd.f32 0.0, %v996
      %v998 = vpop.f32.mrf.mxu0
      %v999 = vpop.f32.mrf.mxu0
      %v1000 = vadd.f32 0.0, %v999
      %v1001 = vpop.f32.mrf.mxu0
      %1002 = vmatprep.mubr.bf16.mxu0 0
      %1003 = vmatmul.mubr.bf16.gmra.mxu0 %v900
      %v1004 = vpop.f32.mrf.mxu0
      %v1005 = vadd.f32 0.0, %v1004
      %v1006 = vpop.f32.mrf.mxu0
      %v1007 = vpop.f32.mrf.mxu0
      %v1008 = vadd.f32 0.0, %v1007
      %v1009 = vpop.f32.mrf.mxu0
      %1010 = vmatprep.mubr.bf16.mxu0 0
      %1011 = vmatmul.mubr.bf16.gmra.mxu0 %v901
      %v1012 = vpop.f32.mrf.mxu0
      %v1013 = vadd.f32 0.0, %v1012
      %v1014 = vpop.f32.mrf.mxu0
      %v1015 = vpop.f32.mrf.mxu0
      %v1016 = vadd.f32 0.0, %v1015
      %v1017 = vpop.f32.mrf.mxu0
      %1018 = vdwg.mxu0
      %v1019 = vadd.f32 %v712, %v989
      %v1020 = vadd.f32 %v715, %v992
      %v1021 = vadd.f32 %v720, %v997
      %v1022 = vadd.f32 %v723, %v1000
      %v1023 = vadd.f32 %v728, %v1005
      %v1024 = vadd.f32 %v731, %v1008
      %v1025 = vadd.f32 %v736, %v1013
      %v1026 = vadd.f32 %v739, %v1016
      %v1027 = vld [vmem:[%s311] sm:$0x8]
      %v1028 = vld [vmem:[%s311 + $0x4] sm:$0xf]
      %v1029 = vld [vmem:[%s311 + $0xc] sm:$0x8]
      %v1030 = vld [vmem:[%s311 + $0x10] sm:$0xf]
      %v1031 = vld [vmem:[%s311 + $0x18] sm:$0x8]
      %v1032 = vld [vmem:[%s311 + $0x1c] sm:$0xf]
      %v1033 = vld [vmem:[%s311 + $0x24] sm:$0x8]
      %v1034 = vld [vmem:[%s311 + $0x28] sm:$0xf]
      %v1035 = vld [vmem:[%s311 + $0x30] sm:$0x8]
      %v1036 = vld [vmem:[%s311 + $0x34] sm:$0xf]
      %v1037 = vld [vmem:[%s311 + $0x3c] sm:$0x8]
      %v1038 = vld [vmem:[%s311 + $0x40] sm:$0xf]
      %v1039 = vld [vmem:[%s311 + $0x48] sm:$0x8]
      %v1040 = vld [vmem:[%s311 + $0x4c] sm:$0xf]
      %v1041 = vld [vmem:[%s311 + $0x54] sm:$0x8]
      %v1042 = vld [vmem:[%s311 + $0x58] sm:$0xf]
      %v1044 = vshrl.u32 %v1027, 16
      %v1046 = vrot.slane %v1044, 7
      %v1047 = vrot.slane %v1046, 4
      %v1049 = vshrl.u32 %v1028, 16
      %v1051 = vrot.slane %v1049, 7
      %v1052 = vshll.u32 %v1028, 16
      %v1054 = vor.u32 %v1051, %v1052
      %v1055 = vsel %vm338, %v1047, %v1054
      %v1057 = vshrl.u32 %v1029, 16
      %v1059 = vrot.slane %v1057, 7
      %v1060 = vrot.slane %v1059, 4
      %v1062 = vshrl.u32 %v1030, 16
      %v1064 = vrot.slane %v1062, 7
      %v1065 = vshll.u32 %v1030, 16
      %v1067 = vor.u32 %v1064, %v1065
      %v1068 = vsel %vm338, %v1060, %v1067
      %v1070 = vshrl.u32 %v1031, 16
      %v1072 = vrot.slane %v1070, 7
      %v1073 = vrot.slane %v1072, 4
      %v1075 = vshrl.u32 %v1032, 16
      %v1077 = vrot.slane %v1075, 7
      %v1078 = vshll.u32 %v1032, 16
      %v1080 = vor.u32 %v1077, %v1078
      %v1081 = vsel %vm338, %v1073, %v1080
      %v1083 = vshrl.u32 %v1033, 16
      %v1085 = vrot.slane %v1083, 7
      %v1086 = vrot.slane %v1085, 4
      %v1088 = vshrl.u32 %v1034, 16
      %v1090 = vrot.slane %v1088, 7
      %v1091 = vshll.u32 %v1034, 16
      %v1093 = vor.u32 %v1090, %v1091
      %v1094 = vsel %vm338, %v1086, %v1093
      %v1096 = vshrl.u32 %v1035, 16
      %v1098 = vrot.slane %v1096, 7
      %v1099 = vrot.slane %v1098, 4
      %v1101 = vshrl.u32 %v1036, 16
      %v1103 = vrot.slane %v1101, 7
      %v1104 = vshll.u32 %v1036, 16
      %v1106 = vor.u32 %v1103, %v1104
      %v1107 = vsel %vm338, %v1099, %v1106
      %v1109 = vshrl.u32 %v1037, 16
      %v1111 = vrot.slane %v1109, 7
      %v1112 = vrot.slane %v1111, 4
      %v1114 = vshrl.u32 %v1038, 16
      %v1116 = vrot.slane %v1114, 7
      %v1117 = vshll.u32 %v1038, 16
      %v1119 = vor.u32 %v1116, %v1117
      %v1120 = vsel %vm338, %v1112, %v1119
      %v1122 = vshrl.u32 %v1039, 16
      %v1124 = vrot.slane %v1122, 7
      %v1125 = vrot.slane %v1124, 4
      %v1127 = vshrl.u32 %v1040, 16
      %v1129 = vrot.slane %v1127, 7
      %v1130 = vshll.u32 %v1040, 16
      %v1132 = vor.u32 %v1129, %v1130
      %v1133 = vsel %vm338, %v1125, %v1132
      %v1135 = vshrl.u32 %v1041, 16
      %v1137 = vrot.slane %v1135, 7
      %v1138 = vrot.slane %v1137, 4
      %v1140 = vshrl.u32 %v1042, 16
      %v1142 = vrot.slane %v1140, 7
      %v1143 = vshll.u32 %v1042, 16
      %v1145 = vor.u32 %v1142, %v1143
      %v1146 = vsel %vm338, %v1138, %v1145
      %s1147 = scalar_lea.vmem %s4, 192
      %v1148 = vld [vmem:[%s1147] sm:$0xf]
      %v1149 = vld [vmem:[%s1147 + $0x4] sm:$0xf]
      %v1150 = vld [vmem:[%s1147 + $0x8] sm:$0xf]
      %v1151 = vld [vmem:[%s1147 + $0xc] sm:$0xf]
      %v1152 = vld [vmem:[%s1147 + $0x10] sm:$0xf]
      %v1153 = vld [vmem:[%s1147 + $0x14] sm:$0xf]
      %v1154 = vld [vmem:[%s1147 + $0x18] sm:$0xf]
      %v1155 = vld [vmem:[%s1147 + $0x1c] sm:$0xf]
      %v1156 = vld [vmem:[%s1147 + $0x20] sm:$0xf]
      %v1157 = vld [vmem:[%s1147 + $0x24] sm:$0xf]
      %v1158 = vld [vmem:[%s1147 + $0x28] sm:$0xf]
      %v1159 = vld [vmem:[%s1147 + $0x2c] sm:$0xf]
      %v1160 = vld [vmem:[%s1147 + $0x30] sm:$0xf]
      %v1161 = vld [vmem:[%s1147 + $0x34] sm:$0xf]
      %v1162 = vld [vmem:[%s1147 + $0x38] sm:$0xf]
      %v1163 = vld [vmem:[%s1147 + $0x3c] sm:$0xf]
      %v1164 = vunpack.c.l.b16 %v1055
      %v1165 = vunpack.c.l.b16 %v1068
      %v1166 = vunpack.c.l.b16 %v1081
      %v1167 = vunpack.c.l.b16 %v1094
      %v1168 = vunpack.c.l.b16 %v1107
      %v1169 = vunpack.c.l.b16 %v1120
      %v1170 = vunpack.c.l.b16 %v1133
      %v1171 = vunpack.c.l.b16 %v1146
      %v1172 = vpack.c.b16 %v1165, %v1164
      %v1173 = vpack.c.b16 %v1167, %v1166
      %v1174 = vpack.c.b16 %v1169, %v1168
      %v1175 = vpack.c.b16 %v1171, %v1170
      %v1196 = vunpack.c.l.b16 %v1148
      %v1197 = vunpack.c.l.b16 %v1149
      %v1198 = vunpack.c.l.b16 %v1150
      %v1199 = vunpack.c.l.b16 %v1151
      %v1200 = vunpack.c.l.b16 %v1152
      %v1201 = vunpack.c.l.b16 %v1153
      %v1202 = vunpack.c.l.b16 %v1154
      %v1203 = vunpack.c.l.b16 %v1155
      %v1204 = vunpack.c.l.b16 %v1156
      %v1205 = vunpack.c.l.b16 %v1157
      %v1206 = vunpack.c.l.b16 %v1158
      %v1207 = vunpack.c.l.b16 %v1159
      %v1208 = vunpack.c.l.b16 %v1160
      %v1209 = vunpack.c.l.b16 %v1161
      %v1210 = vunpack.c.l.b16 %v1162
      %v1211 = vunpack.c.l.b16 %v1163
      %v1212 = vpack.c.b16 %v1197, %v1196
      %v1213 = vpack.c.b16 %v1199, %v1198
      %v1214 = vpack.c.b16 %v1201, %v1200
      %v1215 = vpack.c.b16 %v1203, %v1202
      %v1216 = vpack.c.b16 %v1205, %v1204
      %v1217 = vpack.c.b16 %v1207, %v1206
      %v1218 = vpack.c.b16 %v1209, %v1208
      %v1219 = vpack.c.b16 %v1211, %v1210
      %1228 = vmatprep.subr.bf16.mxu0 0
      %1229 = vmatpush1.bf16.msra.mxu0 %v1219
      %1230 = vmatprep.subr.bf16.mxu0 0
      %1231 = vmatpush1.bf16.msra.mxu0 %v1218
      %1232 = vmatprep.subr.bf16.mxu0 0
      %1233 = vmatpush1.bf16.msra.mxu0 %v1217
      %1234 = vmatprep.subr.bf16.mxu0 0
      %1235 = vmatpush1.bf16.msra.mxu0 %v1216
      %1236 = vmatprep.subr.bf16.mxu0 0
      %1237 = vmatpush1.bf16.msra.mxu0 %v1215
      %1238 = vmatprep.subr.bf16.mxu0 0
      %1239 = vmatpush1.bf16.msra.mxu0 %v1214
      %1240 = vmatprep.subr.bf16.mxu0 0
      %1241 = vmatpush1.bf16.msra.mxu0 %v1213
      %1242 = vmatprep.subr.bf16.mxu0 0
      %1243 = vmatpush1.bf16.msra.mxu0 %v1212
      %1244 = vmatprep.subr.bf16.mxu0 0
      %1245 = vmatpush2.bf16.msra.mxu0 0
      %1246 = vmatprep.subr.bf16.mxu0 0
      %1247 = vmatpush2.bf16.msra.mxu0 0
      %1248 = vmatprep.subr.bf16.mxu0 0
      %1249 = vmatpush2.bf16.msra.mxu0 0
      %1250 = vmatprep.subr.bf16.mxu0 0
      %1251 = vmatpush2.bf16.msra.mxu0 0
      %1252 = vmatprep.subr.bf16.mxu0 0
      %1253 = vmatpush2.bf16.msra.mxu0 0
      %1254 = vmatprep.subr.bf16.mxu0 0
      %1255 = vmatpush2.bf16.msra.mxu0 0
      %1256 = vmatprep.subr.bf16.mxu0 0
      %1257 = vmatpush2.bf16.msra.mxu0 0
      %1258 = vmatprep.subr.bf16.mxu0 0
      %1259 = vmatpush2.bf16.msra.mxu0 0
      %1260 = vmatprep.mubr.bf16.mxu0 0
      %1261 = vmatmul.mubr.bf16.gmra.mxu0 %v1172
      %v1262 = vpop.f32.mrf.mxu0
      %v1263 = vadd.f32 0.0, %v1262
      %v1264 = vpop.f32.mrf.mxu0
      %v1265 = vpop.f32.mrf.mxu0
      %v1266 = vadd.f32 0.0, %v1265
      %v1267 = vpop.f32.mrf.mxu0
      %1268 = vmatprep.mubr.bf16.mxu0 0
      %1269 = vmatmul.mubr.bf16.gmra.mxu0 %v1173
      %v1270 = vpop.f32.mrf.mxu0
      %v1271 = vadd.f32 0.0, %v1270
      %v1272 = vpop.f32.mrf.mxu0
      %v1273 = vpop.f32.mrf.mxu0
      %v1274 = vadd.f32 0.0, %v1273
      %v1275 = vpop.f32.mrf.mxu0
      %1276 = vmatprep.mubr.bf16.mxu0 0
      %1277 = vmatmul.mubr.bf16.gmra.mxu0 %v1174
      %v1278 = vpop.f32.mrf.mxu0
      %v1279 = vadd.f32 0.0, %v1278
      %v1280 = vpop.f32.mrf.mxu0
      %v1281 = vpop.f32.mrf.mxu0
      %v1282 = vadd.f32 0.0, %v1281
      %v1283 = vpop.f32.mrf.mxu0
      %1284 = vmatprep.mubr.bf16.mxu0 0
      %1285 = vmatmul.mubr.bf16.gmra.mxu0 %v1175
      %v1286 = vpop.f32.mrf.mxu0
      %v1287 = vadd.f32 0.0, %v1286
      %v1288 = vpop.f32.mrf.mxu0
      %v1289 = vpop.f32.mrf.mxu0
      %v1290 = vadd.f32 0.0, %v1289
      %v1291 = vpop.f32.mrf.mxu0
      %1292 = vdwg.mxu0
      %v1293 = vadd.f32 %v1019, %v1263
      %v1294 = vadd.f32 %v1020, %v1266
      %v1295 = vadd.f32 %v1021, %v1271
      %v1296 = vadd.f32 %v1022, %v1274
      %v1297 = vadd.f32 %v1023, %v1279
      %v1298 = vadd.f32 %v1024, %v1282
      %v1299 = vadd.f32 %v1025, %v1287
      %v1300 = vadd.f32 %v1026, %v1290
      %s1301 = scalar_lea.vmem %s4, 256
      %v1302 = vld [vmem:[%s1301] sm:$0xf]
      %v1303 = vld [vmem:[%s1301 + $0x4] sm:$0xf]
      %v1304 = vld [vmem:[%s1301 + $0x8] sm:$0xf]
      %v1305 = vld [vmem:[%s1301 + $0xc] sm:$0xf]
      %v1306 = vld [vmem:[%s1301 + $0x10] sm:$0xf]
      %v1307 = vld [vmem:[%s1301 + $0x14] sm:$0xf]
      %v1308 = vld [vmem:[%s1301 + $0x18] sm:$0xf]
      %v1309 = vld [vmem:[%s1301 + $0x1c] sm:$0xf]
      %v1310 = vld [vmem:[%s1301 + $0x20] sm:$0xf]
      %v1311 = vld [vmem:[%s1301 + $0x24] sm:$0xf]
      %v1312 = vld [vmem:[%s1301 + $0x28] sm:$0xf]
      %v1313 = vld [vmem:[%s1301 + $0x2c] sm:$0xf]
      %v1314 = vld [vmem:[%s1301 + $0x30] sm:$0xf]
      %v1315 = vld [vmem:[%s1301 + $0x34] sm:$0xf]
      %v1316 = vld [vmem:[%s1301 + $0x38] sm:$0xf]
      %v1317 = vld [vmem:[%s1301 + $0x3c] sm:$0xf]
      %v1326 = vunpack.c.l.b16 %v1028
      %v1327 = vunpack.c.l.b16 %v1030
      %v1328 = vunpack.c.l.b16 %v1032
      %v1329 = vunpack.c.l.b16 %v1034
      %v1330 = vunpack.c.l.b16 %v1036
      %v1331 = vunpack.c.l.b16 %v1038
      %v1332 = vunpack.c.l.b16 %v1040
      %v1333 = vunpack.c.l.b16 %v1042
      %v1334 = vpack.c.b16 %v1327, %v1326
      %v1335 = vpack.c.b16 %v1329, %v1328
      %v1336 = vpack.c.b16 %v1331, %v1330
      %v1337 = vpack.c.b16 %v1333, %v1332
      %v1358 = vunpack.c.l.b16 %v1302
      %v1359 = vunpack.c.l.b16 %v1303
      %v1360 = vunpack.c.l.b16 %v1304
      %v1361 = vunpack.c.l.b16 %v1305
      %v1362 = vunpack.c.l.b16 %v1306
      %v1363 = vunpack.c.l.b16 %v1307
      %v1364 = vunpack.c.l.b16 %v1308
      %v1365 = vunpack.c.l.b16 %v1309
      %v1366 = vunpack.c.l.b16 %v1310
      %v1367 = vunpack.c.l.b16 %v1311
      %v1368 = vunpack.c.l.b16 %v1312
      %v1369 = vunpack.c.l.b16 %v1313
      %v1370 = vunpack.c.l.b16 %v1314
      %v1371 = vunpack.c.l.b16 %v1315
      %v1372 = vunpack.c.l.b16 %v1316
      %v1373 = vunpack.c.l.b16 %v1317
      %v1374 = vpack.c.b16 %v1359, %v1358
      %v1375 = vpack.c.b16 %v1361, %v1360
      %v1376 = vpack.c.b16 %v1363, %v1362
      %v1377 = vpack.c.b16 %v1365, %v1364
      %v1378 = vpack.c.b16 %v1367, %v1366
      %v1379 = vpack.c.b16 %v1369, %v1368
      %v1380 = vpack.c.b16 %v1371, %v1370
      %v1381 = vpack.c.b16 %v1373, %v1372
      %1390 = vmatprep.subr.bf16.mxu0 0
      %1391 = vmatpush1.bf16.msra.mxu0 %v1381
      %1392 = vmatprep.subr.bf16.mxu0 0
      %1393 = vmatpush1.bf16.msra.mxu0 %v1380
      %1394 = vmatprep.subr.bf16.mxu0 0
      %1395 = vmatpush1.bf16.msra.mxu0 %v1379
      %1396 = vmatprep.subr.bf16.mxu0 0
      %1397 = vmatpush1.bf16.msra.mxu0 %v1378
      %1398 = vmatprep.subr.bf16.mxu0 0
      %1399 = vmatpush1.bf16.msra.mxu0 %v1377
      %1400 = vmatprep.subr.bf16.mxu0 0
      %1401 = vmatpush1.bf16.msra.mxu0 %v1376
      %1402 = vmatprep.subr.bf16.mxu0 0
      %1403 = vmatpush1.bf16.msra.mxu0 %v1375
      %1404 = vmatprep.subr.bf16.mxu0 0
      %1405 = vmatpush1.bf16.msra.mxu0 %v1374
      %1406 = vmatprep.subr.bf16.mxu0 0
      %1407 = vmatpush2.bf16.msra.mxu0 0
      %1408 = vmatprep.subr.bf16.mxu0 0
      %1409 = vmatpush2.bf16.msra.mxu0 0
      %1410 = vmatprep.subr.bf16.mxu0 0
      %1411 = vmatpush2.bf16.msra.mxu0 0
      %1412 = vmatprep.subr.bf16.mxu0 0
      %1413 = vmatpush2.bf16.msra.mxu0 0
      %1414 = vmatprep.subr.bf16.mxu0 0
      %1415 = vmatpush2.bf16.msra.mxu0 0
      %1416 = vmatprep.subr.bf16.mxu0 0
      %1417 = vmatpush2.bf16.msra.mxu0 0
      %1418 = vmatprep.subr.bf16.mxu0 0
      %1419 = vmatpush2.bf16.msra.mxu0 0
      %1420 = vmatprep.subr.bf16.mxu0 0
      %1421 = vmatpush2.bf16.msra.mxu0 0
      %1422 = vmatprep.mubr.bf16.mxu0 0
      %1423 = vmatmul.mubr.bf16.gmra.mxu0 %v1334
      %v1424 = vpop.f32.mrf.mxu0
      %v1425 = vadd.f32 0.0, %v1424
      %v1426 = vpop.f32.mrf.mxu0
      %v1427 = vpop.f32.mrf.mxu0
      %v1428 = vadd.f32 0.0, %v1427
      %v1429 = vpop.f32.mrf.mxu0
      %1430 = vmatprep.mubr.bf16.mxu0 0
      %1431 = vmatmul.mubr.bf16.gmra.mxu0 %v1335
      %v1432 = vpop.f32.mrf.mxu0
      %v1433 = vadd.f32 0.0, %v1432
      %v1434 = vpop.f32.mrf.mxu0
      %v1435 = vpop.f32.mrf.mxu0
      %v1436 = vadd.f32 0.0, %v1435
      %v1437 = vpop.f32.mrf.mxu0
      %1438 = vmatprep.mubr.bf16.mxu0 0
      %1439 = vmatmul.mubr.bf16.gmra.mxu0 %v1336
      %v1440 = vpop.f32.mrf.mxu0
      %v1441 = vadd.f32 0.0, %v1440
      %v1442 = vpop.f32.mrf.mxu0
      %v1443 = vpop.f32.mrf.mxu0
      %v1444 = vadd.f32 0.0, %v1443
      %v1445 = vpop.f32.mrf.mxu0
      %1446 = vmatprep.mubr.bf16.mxu0 0
      %1447 = vmatmul.mubr.bf16.gmra.mxu0 %v1337
      %v1448 = vpop.f32.mrf.mxu0
      %v1449 = vadd.f32 0.0, %v1448
      %v1450 = vpop.f32.mrf.mxu0
      %v1451 = vpop.f32.mrf.mxu0
      %v1452 = vadd.f32 0.0, %v1451
      %v1453 = vpop.f32.mrf.mxu0
      %1454 = vdwg.mxu0
      %v1455 = vadd.f32 %v1293, %v1425
      %v1456 = vadd.f32 %v1294, %v1428
      %v1457 = vadd.f32 %v1295, %v1433
      %v1458 = vadd.f32 %v1296, %v1436
      %v1459 = vadd.f32 %v1297, %v1441
      %v1460 = vadd.f32 %v1298, %v1444
      %v1461 = vadd.f32 %v1299, %v1449
      %v1462 = vadd.f32 %v1300, %v1452
      %v1463 = vld [vmem:[%s311 + $0x4] sm:$0xf]
      %v1464 = vld [vmem:[%s311 + $0x8] sm:$0x1]
      %v1465 = vld [vmem:[%s311 + $0x10] sm:$0xf]
      %v1466 = vld [vmem:[%s311 + $0x14] sm:$0x1]
      %v1467 = vld [vmem:[%s311 + $0x1c] sm:$0xf]
      %v1468 = vld [vmem:[%s311 + $0x20] sm:$0x1]
      %v1469 = vld [vmem:[%s311 + $0x28] sm:$0xf]
      %v1470 = vld [vmem:[%s311 + $0x2c] sm:$0x1]
      %v1471 = vld [vmem:[%s311 + $0x34] sm:$0xf]
      %v1472 = vld [vmem:[%s311 + $0x38] sm:$0x1]
      %v1473 = vld [vmem:[%s311 + $0x40] sm:$0xf]
      %v1474 = vld [vmem:[%s311 + $0x44] sm:$0x1]
      %v1475 = vld [vmem:[%s311 + $0x4c] sm:$0xf]
      %v1476 = vld [vmem:[%s311 + $0x50] sm:$0x1]
      %v1477 = vld [vmem:[%s311 + $0x58] sm:$0xf]
      %v1478 = vld [vmem:[%s311 + $0x5c] sm:$0x1]
      %v1480 = vshrl.u32 %v1463, 16
      %v1482 = vrot.slane %v1480, 4
      %v1483 = vshll.u32 %v1463, 16
      %v1485 = vrot.slane %v1483, 5
      %v1486 = vor.u32 %v1482, %v1485
      %v1487 = vrot.slane %v1486, 4
      %v1489 = vshll.u32 %v1464, 16
      %v1491 = vrot.slane %v1489, 5
      %v1492 = vsel %vm760, %v1487, %v1491
      %v1494 = vshrl.u32 %v1465, 16
      %v1496 = vrot.slane %v1494, 4
      %v1497 = vshll.u32 %v1465, 16
      %v1499 = vrot.slane %v1497, 5
      %v1500 = vor.u32 %v1496, %v1499
      %v1501 = vrot.slane %v1500, 4
      %v1503 = vshll.u32 %v1466, 16
      %v1505 = vrot.slane %v1503, 5
      %v1506 = vsel %vm760, %v1501, %v1505
      %v1508 = vshrl.u32 %v1467, 16
      %v1510 = vrot.slane %v1508, 4
      %v1511 = vshll.u32 %v1467, 16
      %v1513 = vrot.slane %v1511, 5
      %v1514 = vor.u32 %v1510, %v1513
      %v1515 = vrot.slane %v1514, 4
      %v1517 = vshll.u32 %v1468, 16
      %v1519 = vrot.slane %v1517, 5
      %v1520 = vsel %vm760, %v1515, %v1519
      %v1522 = vshrl.u32 %v1469, 16
      %v1524 = vrot.slane %v1522, 4
      %v1525 = vshll.u32 %v1469, 16
      %v1527 = vrot.slane %v1525, 5
      %v1528 = vor.u32 %v1524, %v1527
      %v1529 = vrot.slane %v1528, 4
      %v1531 = vshll.u32 %v1470, 16
      %v1533 = vrot.slane %v1531, 5
      %v1534 = vsel %vm760, %v1529, %v1533
      %v1536 = vshrl.u32 %v1471, 16
      %v1538 = vrot.slane %v1536, 4
      %v1539 = vshll.u32 %v1471, 16
      %v1541 = vrot.slane %v1539, 5
      %v1542 = vor.u32 %v1538, %v1541
      %v1543 = vrot.slane %v1542, 4
      %v1545 = vshll.u32 %v1472, 16
      %v1547 = vrot.slane %v1545, 5
      %v1548 = vsel %vm760, %v1543, %v1547
      %v1550 = vshrl.u32 %v1473, 16
      %v1552 = vrot.slane %v1550, 4
      %v1553 = vshll.u32 %v1473, 16
      %v1555 = vrot.slane %v1553, 5
      %v1556 = vor.u32 %v1552, %v1555
      %v1557 = vrot.slane %v1556, 4
      %v1559 = vshll.u32 %v1474, 16
      %v1561 = vrot.slane %v1559, 5
      %v1562 = vsel %vm760, %v1557, %v1561
      %v1564 = vshrl.u32 %v1475, 16
      %v1566 = vrot.slane %v1564, 4
      %v1567 = vshll.u32 %v1475, 16
      %v1569 = vrot.slane %v1567, 5
      %v1570 = vor.u32 %v1566, %v1569
      %v1571 = vrot.slane %v1570, 4
      %v1573 = vshll.u32 %v1476, 16
      %v1575 = vrot.slane %v1573, 5
      %v1576 = vsel %vm760, %v1571, %v1575
      %v1578 = vshrl.u32 %v1477, 16
      %v1580 = vrot.slane %v1578, 4
      %v1581 = vshll.u32 %v1477, 16
      %v1583 = vrot.slane %v1581, 5
      %v1584 = vor.u32 %v1580, %v1583
      %v1585 = vrot.slane %v1584, 4
      %v1587 = vshll.u32 %v1478, 16
      %v1589 = vrot.slane %v1587, 5
      %v1590 = vsel %vm760, %v1585, %v1589
      %s1591 = scalar_lea.vmem %s4, 320
      %v1592 = vld [vmem:[%s1591] sm:$0xf]
      %v1593 = vld [vmem:[%s1591 + $0x4] sm:$0xf]
      %v1594 = vld [vmem:[%s1591 + $0x8] sm:$0xf]
      %v1595 = vld [vmem:[%s1591 + $0xc] sm:$0xf]
      %v1596 = vld [vmem:[%s1591 + $0x10] sm:$0xf]
      %v1597 = vld [vmem:[%s1591 + $0x14] sm:$0xf]
      %v1598 = vld [vmem:[%s1591 + $0x18] sm:$0xf]
      %v1599 = vld [vmem:[%s1591 + $0x1c] sm:$0xf]
      %v1600 = vld [vmem:[%s1591 + $0x20] sm:$0xf]
      %v1601 = vld [vmem:[%s1591 + $0x24] sm:$0xf]
      %v1602 = vld [vmem:[%s1591 + $0x28] sm:$0xf]
      %v1603 = vld [vmem:[%s1591 + $0x2c] sm:$0xf]
      %v1604 = vld [vmem:[%s1591 + $0x30] sm:$0xf]
      %v1605 = vld [vmem:[%s1591 + $0x34] sm:$0xf]
      %v1606 = vld [vmem:[%s1591 + $0x38] sm:$0xf]
      %v1607 = vld [vmem:[%s1591 + $0x3c] sm:$0xf]
      %v1608 = vunpack.c.l.b16 %v1492
      %v1609 = vunpack.c.l.b16 %v1506
      %v1610 = vunpack.c.l.b16 %v1520
      %v1611 = vunpack.c.l.b16 %v1534
      %v1612 = vunpack.c.l.b16 %v1548
      %v1613 = vunpack.c.l.b16 %v1562
      %v1614 = vunpack.c.l.b16 %v1576
      %v1615 = vunpack.c.l.b16 %v1590
      %v1616 = vpack.c.b16 %v1609, %v1608
      %v1617 = vpack.c.b16 %v1611, %v1610
      %v1618 = vpack.c.b16 %v1613, %v1612
      %v1619 = vpack.c.b16 %v1615, %v1614
      %v1640 = vunpack.c.l.b16 %v1592
      %v1641 = vunpack.c.l.b16 %v1593
      %v1642 = vunpack.c.l.b16 %v1594
      %v1643 = vunpack.c.l.b16 %v1595
      %v1644 = vunpack.c.l.b16 %v1596
      %v1645 = vunpack.c.l.b16 %v1597
      %v1646 = vunpack.c.l.b16 %v1598
      %v1647 = vunpack.c.l.b16 %v1599
      %v1648 = vunpack.c.l.b16 %v1600
      %v1649 = vunpack.c.l.b16 %v1601
      %v1650 = vunpack.c.l.b16 %v1602
      %v1651 = vunpack.c.l.b16 %v1603
      %v1652 = vunpack.c.l.b16 %v1604
      %v1653 = vunpack.c.l.b16 %v1605
      %v1654 = vunpack.c.l.b16 %v1606
      %v1655 = vunpack.c.l.b16 %v1607
      %v1656 = vpack.c.b16 %v1641, %v1640
      %v1657 = vpack.c.b16 %v1643, %v1642
      %v1658 = vpack.c.b16 %v1645, %v1644
      %v1659 = vpack.c.b16 %v1647, %v1646
      %v1660 = vpack.c.b16 %v1649, %v1648
      %v1661 = vpack.c.b16 %v1651, %v1650
      %v1662 = vpack.c.b16 %v1653, %v1652
      %v1663 = vpack.c.b16 %v1655, %v1654
      %1672 = vmatprep.subr.bf16.mxu0 0
      %1673 = vmatpush1.bf16.msra.mxu0 %v1663
      %1674 = vmatprep.subr.bf16.mxu0 0
      %1675 = vmatpush1.bf16.msra.mxu0 %v1662
      %1676 = vmatprep.subr.bf16.mxu0 0
      %1677 = vmatpush1.bf16.msra.mxu0 %v1661
      %1678 = vmatprep.subr.bf16.mxu0 0
      %1679 = vmatpush1.bf16.msra.mxu0 %v1660
      %1680 = vmatprep.subr.bf16.mxu0 0
      %1681 = vmatpush1.bf16.msra.mxu0 %v1659
      %1682 = vmatprep.subr.bf16.mxu0 0
      %1683 = vmatpush1.bf16.msra.mxu0 %v1658
      %1684 = vmatprep.subr.bf16.mxu0 0
      %1685 = vmatpush1.bf16.msra.mxu0 %v1657
      %1686 = vmatprep.subr.bf16.mxu0 0
      %1687 = vmatpush1.bf16.msra.mxu0 %v1656
      %1688 = vmatprep.subr.bf16.mxu0 0
      %1689 = vmatpush2.bf16.msra.mxu0 0
      %1690 = vmatprep.subr.bf16.mxu0 0
      %1691 = vmatpush2.bf16.msra.mxu0 0
      %1692 = vmatprep.subr.bf16.mxu0 0
      %1693 = vmatpush2.bf16.msra.mxu0 0
      %1694 = vmatprep.subr.bf16.mxu0 0
      %1695 = vmatpush2.bf16.msra.mxu0 0
      %1696 = vmatprep.subr.bf16.mxu0 0
      %1697 = vmatpush2.bf16.msra.mxu0 0
      %1698 = vmatprep.subr.bf16.mxu0 0
      %1699 = vmatpush2.bf16.msra.mxu0 0
      %1700 = vmatprep.subr.bf16.mxu0 0
      %1701 = vmatpush2.bf16.msra.mxu0 0
      %1702 = vmatprep.subr.bf16.mxu0 0
      %1703 = vmatpush2.bf16.msra.mxu0 0
      %1704 = vmatprep.mubr.bf16.mxu0 0
      %1705 = vmatmul.mubr.bf16.gmra.mxu0 %v1616
      %v1706 = vpop.f32.mrf.mxu0
      %v1707 = vadd.f32 0.0, %v1706
      %v1708 = vpop.f32.mrf.mxu0
      %v1709 = vpop.f32.mrf.mxu0
      %v1710 = vadd.f32 0.0, %v1709
      %v1711 = vpop.f32.mrf.mxu0
      %1712 = vmatprep.mubr.bf16.mxu0 0
      %1713 = vmatmul.mubr.bf16.gmra.mxu0 %v1617
      %v1714 = vpop.f32.mrf.mxu0
      %v1715 = vadd.f32 0.0, %v1714
      %v1716 = vpop.f32.mrf.mxu0
      %v1717 = vpop.f32.mrf.mxu0
      %v1718 = vadd.f32 0.0, %v1717
      %v1719 = vpop.f32.mrf.mxu0
      %1720 = vmatprep.mubr.bf16.mxu0 0
      %1721 = vmatmul.mubr.bf16.gmra.mxu0 %v1618
      %v1722 = vpop.f32.mrf.mxu0
      %v1723 = vadd.f32 0.0, %v1722
      %v1724 = vpop.f32.mrf.mxu0
      %v1725 = vpop.f32.mrf.mxu0
      %v1726 = vadd.f32 0.0, %v1725
      %v1727 = vpop.f32.mrf.mxu0
      %1728 = vmatprep.mubr.bf16.mxu0 0
      %1729 = vmatmul.mubr.bf16.gmra.mxu0 %v1619
      %v1730 = vpop.f32.mrf.mxu0
      %v1731 = vadd.f32 0.0, %v1730
      %v1732 = vpop.f32.mrf.mxu0
      %v1733 = vpop.f32.mrf.mxu0
      %v1734 = vadd.f32 0.0, %v1733
      %v1735 = vpop.f32.mrf.mxu0
      %1736 = vdwg.mxu0
      %v1737 = vadd.f32 %v1455, %v1707
      %v1738 = vadd.f32 %v1456, %v1710
      %v1739 = vadd.f32 %v1457, %v1715
      %v1740 = vadd.f32 %v1458, %v1718
      %v1741 = vadd.f32 %v1459, %v1723
      %v1742 = vadd.f32 %v1460, %v1726
      %v1743 = vadd.f32 %v1461, %v1731
      %v1744 = vadd.f32 %v1462, %v1734
      %s1745 = scalar_lea.vmem [#allocation2], 24
      %v1746 = vld [vmem:[%s1745] sm:$0x8]
      %v1747 = vld [vmem:[%s1745 + $0x4] sm:$0xf]
      %v1748 = vld [vmem:[%s1745 + $0xc] sm:$0x8]
      %v1749 = vld [vmem:[%s1745 + $0x10] sm:$0xf]
      %v1750 = vld [vmem:[%s1745 + $0x18] sm:$0x8]
      %v1751 = vld [vmem:[%s1745 + $0x1c] sm:$0xf]
      %v1752 = vld [vmem:[%s1745 + $0x24] sm:$0x8]
      %v1753 = vld [vmem:[%s1745 + $0x28] sm:$0xf]
      %v1754 = vld [vmem:[%s1745 + $0x30] sm:$0x8]
      %v1755 = vld [vmem:[%s1745 + $0x34] sm:$0xf]
      %v1756 = vld [vmem:[%s1745 + $0x3c] sm:$0x8]
      %v1757 = vld [vmem:[%s1745 + $0x40] sm:$0xf]
      %v1758 = vld [vmem:[%s1745 + $0x48] sm:$0x8]
      %v1759 = vld [vmem:[%s1745 + $0x4c] sm:$0xf]
      %v1760 = vld [vmem:[%s1745 + $0x54] sm:$0x8]
      %v1761 = vld [vmem:[%s1745 + $0x58] sm:$0xf]
      %v1763 = vshrl.u32 %v1746, 16
      %v1765 = vrot.slane %v1763, 7
      %v1766 = vrot.slane %v1765, 4
      %v1768 = vshrl.u32 %v1747, 16
      %v1770 = vrot.slane %v1768, 7
      %v1771 = vshll.u32 %v1747, 16
      %v1773 = vor.u32 %v1770, %v1771
      %v1774 = vsel %vm338, %v1766, %v1773
      %v1776 = vshrl.u32 %v1748, 16
      %v1778 = vrot.slane %v1776, 7
      %v1779 = vrot.slane %v1778, 4
      %v1781 = vshrl.u32 %v1749, 16
      %v1783 = vrot.slane %v1781, 7
      %v1784 = vshll.u32 %v1749, 16
      %v1786 = vor.u32 %v1783, %v1784
      %v1787 = vsel %vm338, %v1779, %v1786
      %v1789 = vshrl.u32 %v1750, 16
      %v1791 = vrot.slane %v1789, 7
      %v1792 = vrot.slane %v1791, 4
      %v1794 = vshrl.u32 %v1751, 16
      %v1796 = vrot.slane %v1794, 7
      %v1797 = vshll.u32 %v1751, 16
      %v1799 = vor.u32 %v1796, %v1797
      %v1800 = vsel %vm338, %v1792, %v1799
      %v1802 = vshrl.u32 %v1752, 16
      %v1804 = vrot.slane %v1802, 7
      %v1805 = vrot.slane %v1804, 4
      %v1807 = vshrl.u32 %v1753, 16
      %v1809 = vrot.slane %v1807, 7
      %v1810 = vshll.u32 %v1753, 16
      %v1812 = vor.u32 %v1809, %v1810
      %v1813 = vsel %vm338, %v1805, %v1812
      %v1815 = vshrl.u32 %v1754, 16
      %v1817 = vrot.slane %v1815, 7
      %v1818 = vrot.slane %v1817, 4
      %v1820 = vshrl.u32 %v1755, 16
      %v1822 = vrot.slane %v1820, 7
      %v1823 = vshll.u32 %v1755, 16
      %v1825 = vor.u32 %v1822, %v1823
      %v1826 = vsel %vm338, %v1818, %v1825
      %v1828 = vshrl.u32 %v1756, 16
      %v1830 = vrot.slane %v1828, 7
      %v1831 = vrot.slane %v1830, 4
      %v1833 = vshrl.u32 %v1757, 16
      %v1835 = vrot.slane %v1833, 7
      %v1836 = vshll.u32 %v1757, 16
      %v1838 = vor.u32 %v1835, %v1836
      %v1839 = vsel %vm338, %v1831, %v1838
      %v1841 = vshrl.u32 %v1758, 16
      %v1843 = vrot.slane %v1841, 7
      %v1844 = vrot.slane %v1843, 4
      %v1846 = vshrl.u32 %v1759, 16
      %v1848 = vrot.slane %v1846, 7
      %v1849 = vshll.u32 %v1759, 16
      %v1851 = vor.u32 %v1848, %v1849
      %v1852 = vsel %vm338, %v1844, %v1851
      %v1854 = vshrl.u32 %v1760, 16
      %v1856 = vrot.slane %v1854, 7
      %v1857 = vrot.slane %v1856, 4
      %v1859 = vshrl.u32 %v1761, 16
      %v1861 = vrot.slane %v1859, 7
      %v1862 = vshll.u32 %v1761, 16
      %v1864 = vor.u32 %v1861, %v1862
      %v1865 = vsel %vm338, %v1857, %v1864
      %s1866 = scalar_lea.vmem %s4, 384
      %v1867 = vld [vmem:[%s1866] sm:$0xf]
      %v1868 = vld [vmem:[%s1866 + $0x4] sm:$0xf]
      %v1869 = vld [vmem:[%s1866 + $0x8] sm:$0xf]
      %v1870 = vld [vmem:[%s1866 + $0xc] sm:$0xf]
      %v1871 = vld [vmem:[%s1866 + $0x10] sm:$0xf]
      %v1872 = vld [vmem:[%s1866 + $0x14] sm:$0xf]
      %v1873 = vld [vmem:[%s1866 + $0x18] sm:$0xf]
      %v1874 = vld [vmem:[%s1866 + $0x1c] sm:$0xf]
      %v1875 = vld [vmem:[%s1866 + $0x20] sm:$0xf]
      %v1876 = vld [vmem:[%s1866 + $0x24] sm:$0xf]
      %v1877 = vld [vmem:[%s1866 + $0x28] sm:$0xf]
      %v1878 = vld [vmem:[%s1866 + $0x2c] sm:$0xf]
      %v1879 = vld [vmem:[%s1866 + $0x30] sm:$0xf]
      %v1880 = vld [vmem:[%s1866 + $0x34] sm:$0xf]
      %v1881 = vld [vmem:[%s1866 + $0x38] sm:$0xf]
      %v1882 = vld [vmem:[%s1866 + $0x3c] sm:$0xf]
      %v1883 = vunpack.c.l.b16 %v1774
      %v1884 = vunpack.c.l.b16 %v1787
      %v1885 = vunpack.c.l.b16 %v1800
      %v1886 = vunpack.c.l.b16 %v1813
      %v1887 = vunpack.c.l.b16 %v1826
      %v1888 = vunpack.c.l.b16 %v1839
      %v1889 = vunpack.c.l.b16 %v1852
      %v1890 = vunpack.c.l.b16 %v1865
      %v1891 = vpack.c.b16 %v1884, %v1883
      %v1892 = vpack.c.b16 %v1886, %v1885
      %v1893 = vpack.c.b16 %v1888, %v1887
      %v1894 = vpack.c.b16 %v1890, %v1889
      %v1915 = vunpack.c.l.b16 %v1867
      %v1916 = vunpack.c.l.b16 %v1868
      %v1917 = vunpack.c.l.b16 %v1869
      %v1918 = vunpack.c.l.b16 %v1870
      %v1919 = vunpack.c.l.b16 %v1871
      %v1920 = vunpack.c.l.b16 %v1872
      %v1921 = vunpack.c.l.b16 %v1873
      %v1922 = vunpack.c.l.b16 %v1874
      %v1923 = vunpack.c.l.b16 %v1875
      %v1924 = vunpack.c.l.b16 %v1876
      %v1925 = vunpack.c.l.b16 %v1877
      %v1926 = vunpack.c.l.b16 %v1878
      %v1927 = vunpack.c.l.b16 %v1879
      %v1928 = vunpack.c.l.b16 %v1880
      %v1929 = vunpack.c.l.b16 %v1881
      %v1930 = vunpack.c.l.b16 %v1882
      %v1931 = vpack.c.b16 %v1916, %v1915
      %v1932 = vpack.c.b16 %v1918, %v1917
      %v1933 = vpack.c.b16 %v1920, %v1919
      %v1934 = vpack.c.b16 %v1922, %v1921
      %v1935 = vpack.c.b16 %v1924, %v1923
      %v1936 = vpack.c.b16 %v1926, %v1925
      %v1937 = vpack.c.b16 %v1928, %v1927
      %v1938 = vpack.c.b16 %v1930, %v1929
      %1947 = vmatprep.subr.bf16.mxu0 0
      %1948 = vmatpush1.bf16.msra.mxu0 %v1938
      %1949 = vmatprep.subr.bf16.mxu0 0
      %1950 = vmatpush1.bf16.msra.mxu0 %v1937
      %1951 = vmatprep.subr.bf16.mxu0 0
      %1952 = vmatpush1.bf16.msra.mxu0 %v1936
      %1953 = vmatprep.subr.bf16.mxu0 0
      %1954 = vmatpush1.bf16.msra.mxu0 %v1935
      %1955 = vmatprep.subr.bf16.mxu0 0
      %1956 = vmatpush1.bf16.msra.mxu0 %v1934
      %1957 = vmatprep.subr.bf16.mxu0 0
      %1958 = vmatpush1.bf16.msra.mxu0 %v1933
      %1959 = vmatprep.subr.bf16.mxu0 0
      %1960 = vmatpush1.bf16.msra.mxu0 %v1932
      %1961 = vmatprep.subr.bf16.mxu0 0
      %1962 = vmatpush1.bf16.msra.mxu0 %v1931
      %1963 = vmatprep.subr.bf16.mxu0 0
      %1964 = vmatpush2.bf16.msra.mxu0 0
      %1965 = vmatprep.subr.bf16.mxu0 0
      %1966 = vmatpush2.bf16.msra.mxu0 0
      %1967 = vmatprep.subr.bf16.mxu0 0
      %1968 = vmatpush2.bf16.msra.mxu0 0
      %1969 = vmatprep.subr.bf16.mxu0 0
      %1970 = vmatpush2.bf16.msra.mxu0 0
      %1971 = vmatprep.subr.bf16.mxu0 0
      %1972 = vmatpush2.bf16.msra.mxu0 0
      %1973 = vmatprep.subr.bf16.mxu0 0
      %1974 = vmatpush2.bf16.msra.mxu0 0
      %1975 = vmatprep.subr.bf16.mxu0 0
      %1976 = vmatpush2.bf16.msra.mxu0 0
      %1977 = vmatprep.subr.bf16.mxu0 0
      %1978 = vmatpush2.bf16.msra.mxu0 0
      %1979 = vmatprep.mubr.bf16.mxu0 0
      %1980 = vmatmul.mubr.bf16.gmra.mxu0 %v1891
      %v1981 = vpop.f32.mrf.mxu0
      %v1982 = vadd.f32 0.0, %v1981
      %v1983 = vpop.f32.mrf.mxu0
      %v1984 = vpop.f32.mrf.mxu0
      %v1985 = vadd.f32 0.0, %v1984
      %v1986 = vpop.f32.mrf.mxu0
      %1987 = vmatprep.mubr.bf16.mxu0 0
      %1988 = vmatmul.mubr.bf16.gmra.mxu0 %v1892
      %v1989 = vpop.f32.mrf.mxu0
      %v1990 = vadd.f32 0.0, %v1989
      %v1991 = vpop.f32.mrf.mxu0
      %v1992 = vpop.f32.mrf.mxu0
      %v1993 = vadd.f32 0.0, %v1992
      %v1994 = vpop.f32.mrf.mxu0
      %1995 = vmatprep.mubr.bf16.mxu0 0
      %1996 = vmatmul.mubr.bf16.gmra.mxu0 %v1893
      %v1997 = vpop.f32.mrf.mxu0
      %v1998 = vadd.f32 0.0, %v1997
      %v1999 = vpop.f32.mrf.mxu0
      %v2000 = vpop.f32.mrf.mxu0
      %v2001 = vadd.f32 0.0, %v2000
      %v2002 = vpop.f32.mrf.mxu0
      %2003 = vmatprep.mubr.bf16.mxu0 0
      %2004 = vmatmul.mubr.bf16.gmra.mxu0 %v1894
      %v2005 = vpop.f32.mrf.mxu0
      %v2006 = vadd.f32 0.0, %v2005
      %v2007 = vpop.f32.mrf.mxu0
      %v2008 = vpop.f32.mrf.mxu0
      %v2009 = vadd.f32 0.0, %v2008
      %v2010 = vpop.f32.mrf.mxu0
      %2011 = vdwg.mxu0
      %v2012 = vadd.f32 %v1737, %v1982
      %v2013 = vadd.f32 %v1738, %v1985
      %v2014 = vadd.f32 %v1739, %v1990
      %v2015 = vadd.f32 %v1740, %v1993
      %v2016 = vadd.f32 %v1741, %v1998
      %v2017 = vadd.f32 %v1742, %v2001
      %v2018 = vadd.f32 %v1743, %v2006
      %v2019 = vadd.f32 %v1744, %v2009
      %s2020 = scalar_lea.vmem %s4, 448
      %v2021 = vld [vmem:[%s2020] sm:$0xf]
      %v2022 = vld [vmem:[%s2020 + $0x4] sm:$0xf]
      %v2023 = vld [vmem:[%s2020 + $0x8] sm:$0xf]
      %v2024 = vld [vmem:[%s2020 + $0xc] sm:$0xf]
      %v2025 = vld [vmem:[%s2020 + $0x10] sm:$0xf]
      %v2026 = vld [vmem:[%s2020 + $0x14] sm:$0xf]
      %v2027 = vld [vmem:[%s2020 + $0x18] sm:$0xf]
      %v2028 = vld [vmem:[%s2020 + $0x1c] sm:$0xf]
      %v2029 = vld [vmem:[%s2020 + $0x20] sm:$0xf]
      %v2030 = vld [vmem:[%s2020 + $0x24] sm:$0xf]
      %v2031 = vld [vmem:[%s2020 + $0x28] sm:$0xf]
      %v2032 = vld [vmem:[%s2020 + $0x2c] sm:$0xf]
      %v2033 = vld [vmem:[%s2020 + $0x30] sm:$0xf]
      %v2034 = vld [vmem:[%s2020 + $0x34] sm:$0xf]
      %v2035 = vld [vmem:[%s2020 + $0x38] sm:$0xf]
      %v2036 = vld [vmem:[%s2020 + $0x3c] sm:$0xf]
      %v2045 = vunpack.c.l.b16 %v1747
      %v2046 = vunpack.c.l.b16 %v1749
      %v2047 = vunpack.c.l.b16 %v1751
      %v2048 = vunpack.c.l.b16 %v1753
      %v2049 = vunpack.c.l.b16 %v1755
      %v2050 = vunpack.c.l.b16 %v1757
      %v2051 = vunpack.c.l.b16 %v1759
      %v2052 = vunpack.c.l.b16 %v1761
      %v2053 = vpack.c.b16 %v2046, %v2045
      %v2054 = vpack.c.b16 %v2048, %v2047
      %v2055 = vpack.c.b16 %v2050, %v2049
      %v2056 = vpack.c.b16 %v2052, %v2051
      %v2077 = vunpack.c.l.b16 %v2021
      %v2078 = vunpack.c.l.b16 %v2022
      %v2079 = vunpack.c.l.b16 %v2023
      %v2080 = vunpack.c.l.b16 %v2024
      %v2081 = vunpack.c.l.b16 %v2025
      %v2082 = vunpack.c.l.b16 %v2026
      %v2083 = vunpack.c.l.b16 %v2027
      %v2084 = vunpack.c.l.b16 %v2028
      %v2085 = vunpack.c.l.b16 %v2029
      %v2086 = vunpack.c.l.b16 %v2030
      %v2087 = vunpack.c.l.b16 %v2031
      %v2088 = vunpack.c.l.b16 %v2032
      %v2089 = vunpack.c.l.b16 %v2033
      %v2090 = vunpack.c.l.b16 %v2034
      %v2091 = vunpack.c.l.b16 %v2035
      %v2092 = vunpack.c.l.b16 %v2036
      %v2093 = vpack.c.b16 %v2078, %v2077
      %v2094 = vpack.c.b16 %v2080, %v2079
      %v2095 = vpack.c.b16 %v2082, %v2081
      %v2096 = vpack.c.b16 %v2084, %v2083
      %v2097 = vpack.c.b16 %v2086, %v2085
      %v2098 = vpack.c.b16 %v2088, %v2087
      %v2099 = vpack.c.b16 %v2090, %v2089
      %v2100 = vpack.c.b16 %v2092, %v2091
      %2109 = vmatprep.subr.bf16.mxu0 0
      %2110 = vmatpush1.bf16.msra.mxu0 %v2100
      %2111 = vmatprep.subr.bf16.mxu0 0
      %2112 = vmatpush1.bf16.msra.mxu0 %v2099
      %2113 = vmatprep.subr.bf16.mxu0 0
      %2114 = vmatpush1.bf16.msra.mxu0 %v2098
      %2115 = vmatprep.subr.bf16.mxu0 0
      %2116 = vmatpush1.bf16.msra.mxu0 %v2097
      %2117 = vmatprep.subr.bf16.mxu0 0
      %2118 = vmatpush1.bf16.msra.mxu0 %v2096
      %2119 = vmatprep.subr.bf16.mxu0 0
      %2120 = vmatpush1.bf16.msra.mxu0 %v2095
      %2121 = vmatprep.subr.bf16.mxu0 0
      %2122 = vmatpush1.bf16.msra.mxu0 %v2094
      %2123 = vmatprep.subr.bf16.mxu0 0
      %2124 = vmatpush1.bf16.msra.mxu0 %v2093
      %2125 = vmatprep.subr.bf16.mxu0 0
      %2126 = vmatpush2.bf16.msra.mxu0 0
      %2127 = vmatprep.subr.bf16.mxu0 0
      %2128 = vmatpush2.bf16.msra.mxu0 0
      %2129 = vmatprep.subr.bf16.mxu0 0
      %2130 = vmatpush2.bf16.msra.mxu0 0
      %2131 = vmatprep.subr.bf16.mxu0 0
      %2132 = vmatpush2.bf16.msra.mxu0 0
      %2133 = vmatprep.subr.bf16.mxu0 0
      %2134 = vmatpush2.bf16.msra.mxu0 0
      %2135 = vmatprep.subr.bf16.mxu0 0
      %2136 = vmatpush2.bf16.msra.mxu0 0
      %2137 = vmatprep.subr.bf16.mxu0 0
      %2138 = vmatpush2.bf16.msra.mxu0 0
      %2139 = vmatprep.subr.bf16.mxu0 0
      %2140 = vmatpush2.bf16.msra.mxu0 0
      %2141 = vmatprep.mubr.bf16.mxu0 0
      %2142 = vmatmul.mubr.bf16.gmra.mxu0 %v2053
      %v2143 = vpop.f32.mrf.mxu0
      %v2144 = vadd.f32 0.0, %v2143
      %v2145 = vpop.f32.mrf.mxu0
      %v2146 = vpop.f32.mrf.mxu0
      %v2147 = vadd.f32 0.0, %v2146
      %v2148 = vpop.f32.mrf.mxu0
      %2149 = vmatprep.mubr.bf16.mxu0 0
      %2150 = vmatmul.mubr.bf16.gmra.mxu0 %v2054
      %v2151 = vpop.f32.mrf.mxu0
      %v2152 = vadd.f32 0.0, %v2151
      %v2153 = vpop.f32.mrf.mxu0
      %v2154 = vpop.f32.mrf.mxu0
      %v2155 = vadd.f32 0.0, %v2154
      %v2156 = vpop.f32.mrf.mxu0
      %2157 = vmatprep.mubr.bf16.mxu0 0
      %2158 = vmatmul.mubr.bf16.gmra.mxu0 %v2055
      %v2159 = vpop.f32.mrf.mxu0
      %v2160 = vadd.f32 0.0, %v2159
      %v2161 = vpop.f32.mrf.mxu0
      %v2162 = vpop.f32.mrf.mxu0
      %v2163 = vadd.f32 0.0, %v2162
      %v2164 = vpop.f32.mrf.mxu0
      %2165 = vmatprep.mubr.bf16.mxu0 0
      %2166 = vmatmul.mubr.bf16.gmra.mxu0 %v2056
      %v2167 = vpop.f32.mrf.mxu0
      %v2168 = vadd.f32 0.0, %v2167
      %v2169 = vpop.f32.mrf.mxu0
      %v2170 = vpop.f32.mrf.mxu0
      %v2171 = vadd.f32 0.0, %v2170
      %v2172 = vpop.f32.mrf.mxu0
      %2173 = vdwg.mxu0
      %v2174 = vadd.f32 %v2012, %v2144
      %v2175 = vadd.f32 %v2013, %v2147
      %v2176 = vadd.f32 %v2014, %v2152
      %v2177 = vadd.f32 %v2015, %v2155
      %v2178 = vadd.f32 %v2016, %v2160
      %v2179 = vadd.f32 %v2017, %v2163
      %v2180 = vadd.f32 %v2018, %v2168
      %v2181 = vadd.f32 %v2019, %v2171
      %v2182 = vld [vmem:[%s1745 + $0x4] sm:$0xf]
      %v2183 = vld [vmem:[%s1745 + $0x8] sm:$0x1]
      %v2184 = vld [vmem:[%s1745 + $0x10] sm:$0xf]
      %v2185 = vld [vmem:[%s1745 + $0x14] sm:$0x1]
      %v2186 = vld [vmem:[%s1745 + $0x1c] sm:$0xf]
      %v2187 = vld [vmem:[%s1745 + $0x20] sm:$0x1]
      %v2188 = vld [vmem:[%s1745 + $0x28] sm:$0xf]
      %v2189 = vld [vmem:[%s1745 + $0x2c] sm:$0x1]
      %v2190 = vld [vmem:[%s1745 + $0x34] sm:$0xf]
      %v2191 = vld [vmem:[%s1745 + $0x38] sm:$0x1]
      %v2192 = vld [vmem:[%s1745 + $0x40] sm:$0xf]
      %v2193 = vld [vmem:[%s1745 + $0x44] sm:$0x1]
      %v2194 = vld [vmem:[%s1745 + $0x4c] sm:$0xf]
      %v2195 = vld [vmem:[%s1745 + $0x50] sm:$0x1]
      %v2196 = vld [vmem:[%s1745 + $0x58] sm:$0xf]
      %v2197 = vld [vmem:[%s1745 + $0x5c] sm:$0x1]
      %v2199 = vshrl.u32 %v2182, 16
      %v2201 = vrot.slane %v2199, 4
      %v2202 = vshll.u32 %v2182, 16
      %v2204 = vrot.slane %v2202, 5
      %v2205 = vor.u32 %v2201, %v2204
      %v2206 = vrot.slane %v2205, 4
      %v2208 = vshll.u32 %v2183, 16
      %v2210 = vrot.slane %v2208, 5
      %v2211 = vsel %vm760, %v2206, %v2210
      %v2213 = vshrl.u32 %v2184, 16
      %v2215 = vrot.slane %v2213, 4
      %v2216 = vshll.u32 %v2184, 16
      %v2218 = vrot.slane %v2216, 5
      %v2219 = vor.u32 %v2215, %v2218
      %v2220 = vrot.slane %v2219, 4
      %v2222 = vshll.u32 %v2185, 16
      %v2224 = vrot.slane %v2222, 5
      %v2225 = vsel %vm760, %v2220, %v2224
      %v2227 = vshrl.u32 %v2186, 16
      %v2229 = vrot.slane %v2227, 4
      %v2230 = vshll.u32 %v2186, 16
      %v2232 = vrot.slane %v2230, 5
      %v2233 = vor.u32 %v2229, %v2232
      %v2234 = vrot.slane %v2233, 4
      %v2236 = vshll.u32 %v2187, 16
      %v2238 = vrot.slane %v2236, 5
      %v2239 = vsel %vm760, %v2234, %v2238
      %v2241 = vshrl.u32 %v2188, 16
      %v2243 = vrot.slane %v2241, 4
      %v2244 = vshll.u32 %v2188, 16
      %v2246 = vrot.slane %v2244, 5
      %v2247 = vor.u32 %v2243, %v2246
      %v2248 = vrot.slane %v2247, 4
      %v2250 = vshll.u32 %v2189, 16
      %v2252 = vrot.slane %v2250, 5
      %v2253 = vsel %vm760, %v2248, %v2252
      %v2255 = vshrl.u32 %v2190, 16
      %v2257 = vrot.slane %v2255, 4
      %v2258 = vshll.u32 %v2190, 16
      %v2260 = vrot.slane %v2258, 5
      %v2261 = vor.u32 %v2257, %v2260
      %v2262 = vrot.slane %v2261, 4
      %v2264 = vshll.u32 %v2191, 16
      %v2266 = vrot.slane %v2264, 5
      %v2267 = vsel %vm760, %v2262, %v2266
      %v2269 = vshrl.u32 %v2192, 16
      %v2271 = vrot.slane %v2269, 4
      %v2272 = vshll.u32 %v2192, 16
      %v2274 = vrot.slane %v2272, 5
      %v2275 = vor.u32 %v2271, %v2274
      %v2276 = vrot.slane %v2275, 4
      %v2278 = vshll.u32 %v2193, 16
      %v2280 = vrot.slane %v2278, 5
      %v2281 = vsel %vm760, %v2276, %v2280
      %v2283 = vshrl.u32 %v2194, 16
      %v2285 = vrot.slane %v2283, 4
      %v2286 = vshll.u32 %v2194, 16
      %v2288 = vrot.slane %v2286, 5
      %v2289 = vor.u32 %v2285, %v2288
      %v2290 = vrot.slane %v2289, 4
      %v2292 = vshll.u32 %v2195, 16
      %v2294 = vrot.slane %v2292, 5
      %v2295 = vsel %vm760, %v2290, %v2294
      %v2297 = vshrl.u32 %v2196, 16
      %v2299 = vrot.slane %v2297, 4
      %v2300 = vshll.u32 %v2196, 16
      %v2302 = vrot.slane %v2300, 5
      %v2303 = vor.u32 %v2299, %v2302
      %v2304 = vrot.slane %v2303, 4
      %v2306 = vshll.u32 %v2197, 16
      %v2308 = vrot.slane %v2306, 5
      %v2309 = vsel %vm760, %v2304, %v2308
      %s2310 = scalar_lea.vmem %s4, 512
      %v2311 = vld [vmem:[%s2310] sm:$0xf]
      %v2312 = vld [vmem:[%s2310 + $0x4] sm:$0xf]
      %v2313 = vld [vmem:[%s2310 + $0x8] sm:$0xf]
      %v2314 = vld [vmem:[%s2310 + $0xc] sm:$0xf]
      %v2315 = vld [vmem:[%s2310 + $0x10] sm:$0xf]
      %v2316 = vld [vmem:[%s2310 + $0x14] sm:$0xf]
      %v2317 = vld [vmem:[%s2310 + $0x18] sm:$0xf]
      %v2318 = vld [vmem:[%s2310 + $0x1c] sm:$0xf]
      %v2319 = vld [vmem:[%s2310 + $0x20] sm:$0xf]
      %v2320 = vld [vmem:[%s2310 + $0x24] sm:$0xf]
      %v2321 = vld [vmem:[%s2310 + $0x28] sm:$0xf]
      %v2322 = vld [vmem:[%s2310 + $0x2c] sm:$0xf]
      %v2323 = vld [vmem:[%s2310 + $0x30] sm:$0xf]
      %v2324 = vld [vmem:[%s2310 + $0x34] sm:$0xf]
      %v2325 = vld [vmem:[%s2310 + $0x38] sm:$0xf]
      %v2326 = vld [vmem:[%s2310 + $0x3c] sm:$0xf]
      %v2327 = vunpack.c.l.b16 %v2211
      %v2328 = vunpack.c.l.b16 %v2225
      %v2329 = vunpack.c.l.b16 %v2239
      %v2330 = vunpack.c.l.b16 %v2253
      %v2331 = vunpack.c.l.b16 %v2267
      %v2332 = vunpack.c.l.b16 %v2281
      %v2333 = vunpack.c.l.b16 %v2295
      %v2334 = vunpack.c.l.b16 %v2309
      %v2335 = vpack.c.b16 %v2328, %v2327
      %v2336 = vpack.c.b16 %v2330, %v2329
      %v2337 = vpack.c.b16 %v2332, %v2331
      %v2338 = vpack.c.b16 %v2334, %v2333
      %v2359 = vunpack.c.l.b16 %v2311
      %v2360 = vunpack.c.l.b16 %v2312
      %v2361 = vunpack.c.l.b16 %v2313
      %v2362 = vunpack.c.l.b16 %v2314
      %v2363 = vunpack.c.l.b16 %v2315
      %v2364 = vunpack.c.l.b16 %v2316
      %v2365 = vunpack.c.l.b16 %v2317
      %v2366 = vunpack.c.l.b16 %v2318
      %v2367 = vunpack.c.l.b16 %v2319
      %v2368 = vunpack.c.l.b16 %v2320
      %v2369 = vunpack.c.l.b16 %v2321
      %v2370 = vunpack.c.l.b16 %v2322
      %v2371 = vunpack.c.l.b16 %v2323
      %v2372 = vunpack.c.l.b16 %v2324
      %v2373 = vunpack.c.l.b16 %v2325
      %v2374 = vunpack.c.l.b16 %v2326
      %v2375 = vpack.c.b16 %v2360, %v2359
      %v2376 = vpack.c.b16 %v2362, %v2361
      %v2377 = vpack.c.b16 %v2364, %v2363
      %v2378 = vpack.c.b16 %v2366, %v2365
      %v2379 = vpack.c.b16 %v2368, %v2367
      %v2380 = vpack.c.b16 %v2370, %v2369
      %v2381 = vpack.c.b16 %v2372, %v2371
      %v2382 = vpack.c.b16 %v2374, %v2373
      %2391 = vmatprep.subr.bf16.mxu0 0
      %2392 = vmatpush1.bf16.msra.mxu0 %v2382
      %2393 = vmatprep.subr.bf16.mxu0 0
      %2394 = vmatpush1.bf16.msra.mxu0 %v2381
      %2395 = vmatprep.subr.bf16.mxu0 0
      %2396 = vmatpush1.bf16.msra.mxu0 %v2380
      %2397 = vmatprep.subr.bf16.mxu0 0
      %2398 = vmatpush1.bf16.msra.mxu0 %v2379
      %2399 = vmatprep.subr.bf16.mxu0 0
      %2400 = vmatpush1.bf16.msra.mxu0 %v2378
      %2401 = vmatprep.subr.bf16.mxu0 0
      %2402 = vmatpush1.bf16.msra.mxu0 %v2377
      %2403 = vmatprep.subr.bf16.mxu0 0
      %2404 = vmatpush1.bf16.msra.mxu0 %v2376
      %2405 = vmatprep.subr.bf16.mxu0 0
      %2406 = vmatpush1.bf16.msra.mxu0 %v2375
      %2407 = vmatprep.subr.bf16.mxu0 0
      %2408 = vmatpush2.bf16.msra.mxu0 0
      %2409 = vmatprep.subr.bf16.mxu0 0
      %2410 = vmatpush2.bf16.msra.mxu0 0
      %2411 = vmatprep.subr.bf16.mxu0 0
      %2412 = vmatpush2.bf16.msra.mxu0 0
      %2413 = vmatprep.subr.bf16.mxu0 0
      %2414 = vmatpush2.bf16.msra.mxu0 0
      %2415 = vmatprep.subr.bf16.mxu0 0
      %2416 = vmatpush2.bf16.msra.mxu0 0
      %2417 = vmatprep.subr.bf16.mxu0 0
      %2418 = vmatpush2.bf16.msra.mxu0 0
      %2419 = vmatprep.subr.bf16.mxu0 0
      %2420 = vmatpush2.bf16.msra.mxu0 0
      %2421 = vmatprep.subr.bf16.mxu0 0
      %2422 = vmatpush2.bf16.msra.mxu0 0
      %2423 = vmatprep.mubr.bf16.mxu0 0
      %2424 = vmatmul.mubr.bf16.gmra.mxu0 %v2335
      %v2425 = vpop.f32.mrf.mxu0
      %v2426 = vadd.f32 0.0, %v2425
      %v2427 = vpop.f32.mrf.mxu0
      %v2428 = vpop.f32.mrf.mxu0
      %v2429 = vadd.f32 0.0, %v2428
      %v2430 = vpop.f32.mrf.mxu0
      %2431 = vmatprep.mubr.bf16.mxu0 0
      %2432 = vmatmul.mubr.bf16.gmra.mxu0 %v2336
      %v2433 = vpop.f32.mrf.mxu0
      %v2434 = vadd.f32 0.0, %v2433
      %v2435 = vpop.f32.mrf.mxu0
      %v2436 = vpop.f32.mrf.mxu0
      %v2437 = vadd.f32 0.0, %v2436
      %v2438 = vpop.f32.mrf.mxu0
      %2439 = vmatprep.mubr.bf16.mxu0 0
      %2440 = vmatmul.mubr.bf16.gmra.mxu0 %v2337
      %v2441 = vpop.f32.mrf.mxu0
      %v2442 = vadd.f32 0.0, %v2441
      %v2443 = vpop.f32.mrf.mxu0
      %v2444 = vpop.f32.mrf.mxu0
      %v2445 = vadd.f32 0.0, %v2444
      %v2446 = vpop.f32.mrf.mxu0
      %2447 = vmatprep.mubr.bf16.mxu0 0
      %2448 = vmatmul.mubr.bf16.gmra.mxu0 %v2338
      %v2449 = vpop.f32.mrf.mxu0
      %v2450 = vadd.f32 0.0, %v2449
      %v2451 = vpop.f32.mrf.mxu0
      %v2452 = vpop.f32.mrf.mxu0
      %v2453 = vadd.f32 0.0, %v2452
      %v2454 = vpop.f32.mrf.mxu0
      %2455 = vdwg.mxu0
      %v2456 = vadd.f32 %v2174, %v2426
      %v2457 = vadd.f32 %v2175, %v2429
      %v2458 = vadd.f32 %v2176, %v2434
      %v2459 = vadd.f32 %v2177, %v2437
      %v2460 = vadd.f32 %v2178, %v2442
      %v2461 = vadd.f32 %v2179, %v2445
      %v2462 = vadd.f32 %v2180, %v2450
      %v2463 = vadd.f32 %v2181, %v2453
      %v2464 = vld [vmem:[%s266] sm:$0xf]
      %v2465 = vld [vmem:[%s266 + $0x4] sm:$0xf]
      %v2466 = vld [vmem:[%s266 + $0x8] sm:$0xf]
      %v2467 = vld [vmem:[%s266 + $0xc] sm:$0xf]
      %v2468 = vld [vmem:[%s266 + $0x10] sm:$0xf]
      %v2469 = vld [vmem:[%s266 + $0x14] sm:$0xf]
      %v2470 = vld [vmem:[%s266 + $0x18] sm:$0xf]
      %v2471 = vld [vmem:[%s266 + $0x1c] sm:$0xf]
      %v2472 = vunpack.c.l.bf16 %v2464
      %v2473 = vunpack.c.l.bf16 %v2465
      %v2474 = vunpack.c.l.bf16 %v2466
      %v2475 = vunpack.c.l.bf16 %v2467
      %v2476 = vunpack.c.l.bf16 %v2468
      %v2477 = vunpack.c.l.bf16 %v2469
      %v2478 = vunpack.c.l.bf16 %v2470
      %v2479 = vunpack.c.l.bf16 %v2471
      %v2480 = vld [vmem:[%s2] sm:$0x1]
      %v2482 = vlaneseq
      %v2483 = vshrl.u32 %v2482, 7
      %v2484 = vsub.s32 0, %v2483
      %v2485 = vrot.slane %v2480, %v2484
      %v2487 = vmul.f32 %v2472, %v2485
      %v2488 = vmul.f32 %v2473, %v2485
      %v2489 = vmul.f32 %v2474, %v2485
      %v2490 = vmul.f32 %v2475, %v2485
      %v2491 = vmul.f32 %v2476, %v2485
      %v2492 = vmul.f32 %v2477, %v2485
      %v2493 = vmul.f32 %v2478, %v2485
      %v2494 = vmul.f32 %v2479, %v2485
      %v2495 = vld [vmem:[%s3] sm:$0x1]
      %v2497 = vlaneseq
      %v2498 = vshrl.u32 %v2497, 7
      %v2499 = vsub.s32 0, %v2498
      %v2500 = vrot.slane %v2495, %v2499
      %v2502 = vadd.f32 %v2487, %v2500
      %v2503 = vadd.f32 %v2488, %v2500
      %v2504 = vadd.f32 %v2489, %v2500
      %v2505 = vadd.f32 %v2490, %v2500
      %v2506 = vadd.f32 %v2491, %v2500
      %v2507 = vadd.f32 %v2492, %v2500
      %v2508 = vadd.f32 %v2493, %v2500
      %v2509 = vadd.f32 %v2494, %v2500
      %v2510 = vmax.f32 %v2502, 0.0
      %v2511 = vmax.f32 %v2503, 0.0
      %v2512 = vmax.f32 %v2504, 0.0
      %v2513 = vmax.f32 %v2505, 0.0
      %v2514 = vmax.f32 %v2506, 0.0
      %v2515 = vmax.f32 %v2507, 0.0
      %v2516 = vmax.f32 %v2508, 0.0
      %v2517 = vmax.f32 %v2509, 0.0
      %v2518 = vpack.c.bf16 %v2510, %v2510
      %v2519 = vpack.c.bf16 %v2511, %v2511
      %v2520 = vpack.c.bf16 %v2512, %v2512
      %v2521 = vpack.c.bf16 %v2513, %v2513
      %v2522 = vpack.c.bf16 %v2514, %v2514
      %v2523 = vpack.c.bf16 %v2515, %v2515
      %v2524 = vpack.c.bf16 %v2516, %v2516
      %v2525 = vpack.c.bf16 %v2517, %v2517
      %v2526 = vld [vmem:[%s5] sm:$0xf]
      %v2527 = vld [vmem:[%s5 + $0x4] sm:$0xf]
      %v2536 = vunpack.c.l.b16 %v2518
      %v2537 = vunpack.c.l.b16 %v2519
      %v2538 = vunpack.c.l.b16 %v2520
      %v2539 = vunpack.c.l.b16 %v2521
      %v2540 = vunpack.c.l.b16 %v2522
      %v2541 = vunpack.c.l.b16 %v2523
      %v2542 = vunpack.c.l.b16 %v2524
      %v2543 = vunpack.c.l.b16 %v2525
      %v2544 = vpack.c.b16 %v2537, %v2536
      %v2545 = vpack.c.b16 %v2539, %v2538
      %v2546 = vpack.c.b16 %v2541, %v2540
      %v2547 = vpack.c.b16 %v2543, %v2542
      %v2550 = vunpack.c.l.b16 %v2526
      %v2551 = vunpack.c.l.b16 %v2527
      %v2552 = vpack.c.b16 %v2551, %v2550
      %vm2554 = vcmask 130048
      %v2556 = vsel %vm2554, %v2544, 0
      %v2559 = vsel %vm2554, %v2545, 0
      %v2562 = vsel %vm2554, %v2546, 0
      %v2565 = vsel %vm2554, %v2547, 0
      %2567 = vmatprep.subr.bf16.mxu0 0
      %2568 = vmatpush1.bf16.msra.mxu0 0
      %2569 = vmatprep.subr.bf16.mxu0 0
      %2570 = vmatpush1.bf16.msra.mxu0 0
      %2571 = vmatprep.subr.bf16.mxu0 0
      %2572 = vmatpush1.bf16.msra.mxu0 0
      %2573 = vmatprep.subr.bf16.mxu0 0
      %2574 = vmatpush1.bf16.msra.mxu0 0
      %2575 = vmatprep.subr.bf16.mxu0 0
      %2576 = vmatpush1.bf16.msra.mxu0 0
      %2577 = vmatprep.subr.bf16.mxu0 0
      %2578 = vmatpush1.bf16.msra.mxu0 0
      %2579 = vmatprep.subr.bf16.mxu0 0
      %2580 = vmatpush1.bf16.msra.mxu0 0
      %2581 = vmatprep.subr.bf16.mxu0 0
      %2582 = vmatpush1.bf16.msra.mxu0 %v2552
      %2583 = vmatprep.subr.bf16.mxu0 0
      %2584 = vmatpush2.bf16.msra.mxu0 0
      %2585 = vmatprep.subr.bf16.mxu0 0
      %2586 = vmatpush2.bf16.msra.mxu0 0
      %2587 = vmatprep.subr.bf16.mxu0 0
      %2588 = vmatpush2.bf16.msra.mxu0 0
      %2589 = vmatprep.subr.bf16.mxu0 0
      %2590 = vmatpush2.bf16.msra.mxu0 0
      %2591 = vmatprep.subr.bf16.mxu0 0
      %2592 = vmatpush2.bf16.msra.mxu0 0
      %2593 = vmatprep.subr.bf16.mxu0 0
      %2594 = vmatpush2.bf16.msra.mxu0 0
      %2595 = vmatprep.subr.bf16.mxu0 0
      %2596 = vmatpush2.bf16.msra.mxu0 0
      %2597 = vmatprep.subr.bf16.mxu0 0
      %2598 = vmatpush2.bf16.msra.mxu0 0
      %2599 = vmatprep.mubr.bf16.mxu0 0
      %2600 = vmatmul.mubr.bf16.gmra.mxu0 %v2556
      %v2601 = vpop.f32.mrf.mxu0
      %v2602 = vadd.f32 0.0, %v2601
      %v2603 = vpop.f32.mrf.mxu0
      %v2604 = vpop.f32.mrf.mxu0
      %v2605 = vadd.f32 0.0, %v2604
      %v2606 = vpop.f32.mrf.mxu0
      %2607 = vmatprep.mubr.bf16.mxu0 0
      %2608 = vmatmul.mubr.bf16.gmra.mxu0 %v2559
      %v2609 = vpop.f32.mrf.mxu0
      %v2610 = vadd.f32 0.0, %v2609
      %v2611 = vpop.f32.mrf.mxu0
      %v2612 = vpop.f32.mrf.mxu0
      %v2613 = vadd.f32 0.0, %v2612
      %v2614 = vpop.f32.mrf.mxu0
      %2615 = vmatprep.mubr.bf16.mxu0 0
      %2616 = vmatmul.mubr.bf16.gmra.mxu0 %v2562
      %v2617 = vpop.f32.mrf.mxu0
      %v2618 = vadd.f32 0.0, %v2617
      %v2619 = vpop.f32.mrf.mxu0
      %v2620 = vpop.f32.mrf.mxu0
      %v2621 = vadd.f32 0.0, %v2620
      %v2622 = vpop.f32.mrf.mxu0
      %2623 = vmatprep.mubr.bf16.mxu0 0
      %2624 = vmatmul.mubr.bf16.gmra.mxu0 %v2565
      %v2625 = vpop.f32.mrf.mxu0
      %v2626 = vadd.f32 0.0, %v2625
      %v2627 = vpop.f32.mrf.mxu0
      %v2628 = vpop.f32.mrf.mxu0
      %v2629 = vadd.f32 0.0, %v2628
      %v2630 = vpop.f32.mrf.mxu0
      %2631 = vdwg.mxu0
      %v2632 = vadd.f32 %v2456, %v2602
      %v2633 = vadd.f32 %v2457, %v2605
      %v2634 = vadd.f32 %v2458, %v2610
      %v2635 = vadd.f32 %v2459, %v2613
      %v2636 = vadd.f32 %v2460, %v2618
      %v2637 = vadd.f32 %v2461, %v2621
      %v2638 = vadd.f32 %v2462, %v2626
      %v2639 = vadd.f32 %v2463, %v2629
      %v2640 = vpack.c.bf16 %v2632, %v2632
      %v2641 = vpack.c.bf16 %v2633, %v2633
      %v2642 = vpack.c.bf16 %v2634, %v2634
      %v2643 = vpack.c.bf16 %v2635, %v2635
      %v2644 = vpack.c.bf16 %v2636, %v2636
      %v2645 = vpack.c.bf16 %v2637, %v2637
      %v2646 = vpack.c.bf16 %v2638, %v2638
      %v2647 = vpack.c.bf16 %v2639, %v2639
      %2648 = vst [vmem:[%s271] sm:$0xf] %v2640
      %2649 = vst [vmem:[%s271 + $0x4] sm:$0xf] %v2641
      %2650 = vst [vmem:[%s271 + $0x8] sm:$0xf] %v2642
      %2651 = vst [vmem:[%s271 + $0xc] sm:$0xf] %v2643
      %2652 = vst [vmem:[%s271 + $0x10] sm:$0xf] %v2644
      %2653 = vst [vmem:[%s271 + $0x14] sm:$0xf] %v2645
      %2654 = vst [vmem:[%s271 + $0x18] sm:$0xf] %v2646
      %2655 = vst [vmem:[%s271 + $0x1c] sm:$0xf] %v2647
      %p2656 = scmp.lt.s32.totalorder %s17, 1
      %s2657 = scalar_select %p2656, %s17, 1
      %s2658 = smul.addr %s2657, 8
      %s2659 = smul.addr %s2658, 4
      %s2660 = scalar_lea.vmem %s6, %s2659
      // Predicated region
      $region45: #{basic_block_forward.5} parent=43 // pred_check
        %p2661 = pneg %p171
      $region46: #{basic_block_forward.5} parent=43 // pred_check_branch
        %2663 = sbr.rel (%p2661) target = $region48
      $region47: #{basic_block_forward.5} parent=43 // pred_region
        _
      $region48: #{basic_block_forward.5} parent=43 // pred_fallthru
        _
    $region44: #{basic_block_forward.5} parent=5 // pred_fallthru
      _
    %p2664 = scmp.le.s32.totalorder 2, %s12
    // Predicated region
    $region49: #{basic_block_forward.5} parent=5 // pred_check
      %p2665 = pneg %p2664
    $region50: #{basic_block_forward.5} parent=5 // pred_check_branch
      %2667 = sbr.rel (%p2665) target = $region52
    $region51: #{basic_block_forward.5} parent=5 // pred_region
      %s2668 = ssub.s32 %s12, 2
      // Predicated region
      $region53: #{basic_block_forward.5} parent=51 // pred_check
        %p2669 = pneg %p177
      $region54: #{basic_block_forward.5} parent=51 // pred_check_branch
        %2671 = sbr.rel (%p2669) target = $region56
      $region55: #{basic_block_forward.5} parent=51 // pred_region
        %p2672 = scmp.lt.s32.totalorder %s18, 1
        %s2673 = scalar_select %p2672, %s18, 1
        %s2674 = smul.addr %s2673, 8
        %s2675 = smul.addr %s2674, 4
        %s2676 = scalar_lea.vmem %s6, %s2675
      $region56: #{basic_block_forward.5} parent=51 // pred_fallthru
        _
    $region52: #{basic_block_forward.5} parent=5 // pred_fallthru
      _
  $region6: #{basic_block_forward.5} parent=0 // loop_footer
    %s16 = sadd.s32 1, %s12
  $region7: #{basic_block_forward.5} parent=0 // loop_footer_branch
    %11 = sbr.rel target = $region3
  $region8: #{basic_block_forward.5} parent=0 // loop_exit
    _

</llo_original>
